<compile_context>
chip_gen: v5e
topology: v5e:2x2
jax: 0.10.0
libtpu: 0.0.40
codegen_flags: <defaults>
</compile_context>

<pallas_src>
import math

import jax
import jax.numpy as jnp
from jax.experimental import pallas as pl
from jax.experimental.pallas import tpu as pltpu


# ----------------------------- Pallas kernel -----------------------------

def _boundary_kernel(tok_ref, ent_ref, mask_ref,
                     wt_ref, bt_ref, we_ref, be_ref, wb_ref,
                     cls_ref, p_ref, tp_ref):
    """Grid step (b, st, se). Blocks:
         tok  (1, St_blk, H) f32     ent (1, Se_blk, H) f32    mask (1, 1, St_blk) f32
         wt/we (H, H) bf16           bt/be (1, H) f32          wb (1, H) bf16
       outputs: cls (1, Se_blk, St_blk) f32, p (1, Se_blk, St_blk) bf16
       scratch: tp_ref (St_blk, H) bf16  (token projection, reused across the Se axis)
    """
    # Token projection for this St block: compute once (Se is the innermost grid axis).
    @pl.when(pl.program_id(2) == 0)
    def _():
        tok = tok_ref[0].astype(jnp.bfloat16)                              # (St_blk, H)
        tp = jnp.dot(tok, wt_ref[...], preferred_element_type=jnp.float32) # MXU, f32 acc
        tp_ref[...] = (tp + bt_ref[...]).astype(jnp.bfloat16)

    # Entity projection for this Se block (small, recomputed per step).
    ent = ent_ref[0].astype(jnp.bfloat16)                                  # (Se_blk, H)
    ep = jnp.dot(ent, we_ref[...], preferred_element_type=jnp.float32) + be_ref[...]
    ep = ep.astype(jnp.bfloat16)

    # Pairwise broadcast add + ReLU in bf16, then contract H with f32 accumulation.
    slab = jnp.maximum(ep[:, None, :] + tp_ref[...][None, :, :], 0.0)      # (Se_blk, St_blk, H) bf16
    cls = jnp.sum(slab * wb_ref[...], axis=-1, dtype=jnp.float32)          # (Se_blk, St_blk) f32

    # cls[~token_mask] = -10000 (exact constant, matching the PyTorch module).
    valid = mask_ref[0] > 0.0                                              # (1, St_blk)
    cls = jnp.where(valid, cls, -10000.0)

    cls_ref[0] = cls
    p_ref[0] = jax.nn.sigmoid(cls).astype(p_ref.dtype)


# ----------------------------- wrapper -----------------------------

def _pick_tile(n, target, granule):
    """Largest divisor of n that is <= target and a multiple of `granule`;
    falls back to the full dim (single block) if none exists."""
    if n <= target:
        return n
    t = (target // granule) * granule
    while t >= granule:
        if n % t == 0:
            return t
        t -= granule
    return n


def head_tail_boundary_predictor(params, token_embedding, entity_embedding, token_mask,
                                 *, st_blk_target=256, se_blk_target=64):
    B, St, H = token_embedding.shape
    Se = entity_embedding.shape[1]

    # Tile targets sized for v7x's 64 MiB VMEM (bf16 slab <= ~24 MiB at H=768);
    # v5e/v6e (128 MiB) are comfortably within budget too.
    St_blk = _pick_tile(St, st_blk_target, 128)   # lane-dense stores when tiled
    Se_blk = _pick_tile(Se, se_blk_target, 16)    # bf16 sublane-packing friendly
    n_st, n_se = St // St_blk, Se // Se_blk

    mask_f = token_mask.astype(jnp.float32).reshape(B, 1, St)
    wt = params["wt"].astype(jnp.bfloat16)
    we = params["we"].astype(jnp.bfloat16)
    wb = params["wb"].astype(jnp.bfloat16)
    bt, be = params["bt"], params["be"]

    out_shape = (jax.ShapeDtypeStruct((B, Se, St), jnp.float32),    # cls
                 jax.ShapeDtypeStruct((B, Se, St), jnp.bfloat16))   # p (bf16 writeback)

    cls, p = pl.pallas_call(
        _boundary_kernel,
        out_shape=out_shape,
        grid=(B, n_st, n_se),
        in_specs=[
            pl.BlockSpec((1, St_blk, H), lambda b, st, se: (b, st, 0)),   # token_embedding
            pl.BlockSpec((1, Se_blk, H), lambda b, st, se: (b, se, 0)),   # entity_embedding
            pl.BlockSpec((1, 1, St_blk), lambda b, st, se: (b, 0, st)),   # token_mask (float)
            pl.BlockSpec((H, H), lambda b, st, se: (0, 0)),               # token linear W (bf16)
            pl.BlockSpec((1, H), lambda b, st, se: (0, 0)),               # token linear b
            pl.BlockSpec((H, H), lambda b, st, se: (0, 0)),               # entity linear W (bf16)
            pl.BlockSpec((1, H), lambda b, st, se: (0, 0)),               # entity linear b
            pl.BlockSpec((1, H), lambda b, st, se: (0, 0)),               # boundary vector (bf16)
        ],
        out_specs=(
            pl.BlockSpec((1, Se_blk, St_blk), lambda b, st, se: (b, se, st)),
            pl.BlockSpec((1, Se_blk, St_blk), lambda b, st, se: (b, se, st)),
        ),
        scratch_shapes=[pltpu.VMEM((St_blk, H), jnp.bfloat16)],           # hoisted token proj
        compiler_params=pltpu.CompilerParams(
            # Se must be "arbitrary": the token-projection scratch is reused across it.
            dimension_semantics=("parallel", "parallel", "arbitrary"),
            vmem_limit_bytes=48 * 1024 * 1024,
        ),
    )(token_embedding, entity_embedding, mask_f, wt, bt, we, be, wb)
    return cls, p


# ----------------------------- reference (pure JAX, f32) -----------------------------

def reference(params, token_embedding, entity_embedding, token_mask):
    tp = token_embedding @ params["wt"] + params["bt"]                   # (B, St, H)
    ep = entity_embedding @ params["we"] + params["be"]                  # (B, Se, H)
    m = jnp.maximum(tp[:, None, :, :] + ep[:, :, None, :], 0.0)         # (B, Se, St, H)
    cls = jnp.einsum("beth,h->bet", m, params["wb"][0])                  # (B, Se, St)
    cls = jnp.where(token_mask[:, None, :], cls, -10000.0)
    return cls, jax.nn.sigmoid(cls)


# ----------------------------- parameter init -----------------------------

def init_params(key, H):
    k1, k2, k3, k4, k5 = jax.random.split(key, 5)

    def orthogonal(k):                                  # mirrors torch.nn.init.orthogonal_
        q, _ = jnp.linalg.qr(jax.random.normal(k, (H, H), jnp.float32))
        return q

    bound = 1.0 / math.sqrt(H)
    return {
        "wt": orthogonal(k1),                                            # (H, H), x @ W layout
        "bt": jax.random.uniform(k3, (1, H), jnp.float32, -bound, bound),
        "we": orthogonal(k2),
        "be": jax.random.uniform(k4, (1, H), jnp.float32, -bound, bound),
        "wb": jax.random.normal(k5, (1, H), jnp.float32) * bound,        # Linear(H, 1, bias=False)
    }


# ----------------------------- main -----------------------------

if __name__ == "__main__":
    # Small but tiling-exercising shapes: grid = (B=2, St tiles=2, Se tiles=2).
    B, St, Se, H = 2, 256, 32, 32
    root = jax.random.PRNGKey(0)
    k_tok, k_ent, k_par = jax.random.split(root, 3)

    token_embedding = jax.random.normal(k_tok, (B, St, H), jnp.float32)
    entity_embedding = jax.random.normal(k_ent, (B, Se, H), jnp.float32)
    # Boolean token mask with padded (False) positions at the tail of batch 1.
    lengths = jnp.array([St, St - 100], jnp.int32)
    token_mask = jnp.arange(St)[None, :] < lengths[:, None]              # (B, St) bool

    params = init_params(k_par, H)

    cls, p = head_tail_boundary_predictor(
        params, token_embedding, entity_embedding, token_mask,
        st_blk_target=128, se_blk_target=16)
    jax.block_until_ready(cls)
    jax.block_until_ready(p)

    ref_cls, ref_p = reference(params, token_embedding, entity_embedding, token_mask)
    assert cls.shape == (B, Se, St) and p.shape == (B, Se, St)
    assert cls.dtype == jnp.float32 and p.dtype == jnp.bfloat16
    # bf16 pairwise intermediate with f32 accumulation -> loose-ish tolerance.
    assert bool(jnp.allclose(cls, ref_cls, rtol=2e-2, atol=5e-2))
    assert bool(jnp.allclose(p.astype(jnp.float32), ref_p, rtol=2e-2, atol=5e-2))
    print("KERNEL_OK")
</pallas_src>

<mosaic_0001>
module attributes {stable_mosaic.version = 11 : i64} {
  func.func @_boundary_kernel(%arg0: i32, %arg1: i32, %arg2: i32, %arg3: memref<1x128x32xf32, #tpu.memory_space<vmem>>, %arg4: memref<1x16x32xf32, #tpu.memory_space<vmem>>, %arg5: memref<1x1x128xf32, #tpu.memory_space<vmem>>, %arg6: memref<32x32xbf16, #tpu.memory_space<vmem>>, %arg7: memref<1x32xf32, #tpu.memory_space<vmem>>, %arg8: memref<32x32xbf16, #tpu.memory_space<vmem>>, %arg9: memref<1x32xf32, #tpu.memory_space<vmem>>, %arg10: memref<1x32xbf16, #tpu.memory_space<vmem>>, %arg11: memref<1x16x128xf32, #tpu.memory_space<vmem>>, %arg12: memref<1x16x128xbf16, #tpu.memory_space<vmem>>, %arg13: memref<128x32xbf16, #tpu.memory_space<vmem>>) attributes {dimension_semantics = [#tpu.dimension_semantics<parallel>, #tpu.dimension_semantics<parallel>, #tpu.dimension_semantics<arbitrary>], iteration_bounds = array<i64: 2, 2, 2>, scalar_prefetch = 0 : i64, scratch_operands = 1 : i64, tpu.core_type = #tpu.core_type<tc>, window_params = [{transform_indices = @transform_0, window_bounds = array<i64: 1, 128, 32>}, {transform_indices = @transform_1, window_bounds = array<i64: 1, 16, 32>}, {transform_indices = @transform_2, window_bounds = array<i64: 1, 1, 128>}, {pipeline_mode = #tpu.pipeline_mode<synchronous>, transform_indices = @transform_3, window_bounds = array<i64: 32, 32>}, {pipeline_mode = #tpu.pipeline_mode<synchronous>, transform_indices = @transform_4, window_bounds = array<i64: 1, 32>}, {pipeline_mode = #tpu.pipeline_mode<synchronous>, transform_indices = @transform_5, window_bounds = array<i64: 32, 32>}, {pipeline_mode = #tpu.pipeline_mode<synchronous>, transform_indices = @transform_6, window_bounds = array<i64: 1, 32>}, {pipeline_mode = #tpu.pipeline_mode<synchronous>, transform_indices = @transform_7, window_bounds = array<i64: 1, 32>}, {transform_indices = @transform_8, window_bounds = array<i64: 1, 16, 128>}, {transform_indices = @transform_9, window_bounds = array<i64: 1, 16, 128>}]} {
    %c0_i32 = arith.constant 0 : i32
    %0 = arith.cmpi eq, %arg2, %c0_i32 : i32
    %1 = arith.extui %0 : i1 to i32
    %c0_i32_0 = arith.constant 0 : i32
    %2 = arith.cmpi ne, %1, %c0_i32_0 : i32
    scf.if %2 {
      %c0_25 = arith.constant 0 : index
      %c0_26 = arith.constant 0 : index
      %c0_27 = arith.constant 0 : index
      %46 = vector.load %arg3[%c0_25, %c0_26, %c0_27] : memref<1x128x32xf32, #tpu.memory_space<vmem>>, vector<1x128x32xf32>
      %47 = vector.shape_cast %46 : vector<1x128x32xf32> to vector<128x32xf32>
      %48 = arith.truncf %47 : vector<128x32xf32> to vector<128x32xbf16>
      %c0_28 = arith.constant 0 : index
      %c0_29 = arith.constant 0 : index
      %49 = vector.load %arg6[%c0_28, %c0_29] : memref<32x32xbf16, #tpu.memory_space<vmem>>, vector<32x32xbf16>
      %cst_30 = arith.constant dense<0.000000e+00> : vector<128x32xf32>
      %50 = tpu.matmul %48, %49, %cst_30 {dimension_numbers = #tpu.dot_dimension_numbers<[1], [0], [0], [1], [0, 0, 1, 1], [], []>} : vector<128x32xbf16>, vector<32x32xbf16>, vector<128x32xf32> -> vector<128x32xf32>
      %c0_31 = arith.constant 0 : index
      %c0_32 = arith.constant 0 : index
      %51 = vector.load %arg7[%c0_31, %c0_32] : memref<1x32xf32, #tpu.memory_space<vmem>>, vector<1x32xf32>
      %52 = vector.broadcast %51 : vector<1x32xf32> to vector<128x32xf32>
      %53 = arith.addf %50, %52 : vector<128x32xf32>
      %54 = arith.truncf %53 : vector<128x32xf32> to vector<128x32xbf16>
      %c0_33 = arith.constant 0 : index
      %c0_34 = arith.constant 0 : index
      %55 = vector.load %arg13[%c0_33, %c0_34] : memref<128x32xbf16, #tpu.memory_space<vmem>>, vector<128x32xbf16>
      tpu.vector_store %arg13[%c0_33, %c0_34], %54 {strides = array<i32>} : memref<128x32xbf16, #tpu.memory_space<vmem>>, vector<128x32xbf16>,
    } else {
    }
    %c0 = arith.constant 0 : index
    %c0_1 = arith.constant 0 : index
    %c0_2 = arith.constant 0 : index
    %3 = vector.load %arg4[%c0, %c0_1, %c0_2] : memref<1x16x32xf32, #tpu.memory_space<vmem>>, vector<1x16x32xf32>
    %4 = vector.shape_cast %3 : vector<1x16x32xf32> to vector<16x32xf32>
    %5 = arith.truncf %4 : vector<16x32xf32> to vector<16x32xbf16>
    %c0_3 = arith.constant 0 : index
    %c0_4 = arith.constant 0 : index
    %6 = vector.load %arg8[%c0_3, %c0_4] : memref<32x32xbf16, #tpu.memory_space<vmem>>, vector<32x32xbf16>
    %cst = arith.constant dense<0.000000e+00> : vector<16x32xf32>
    %7 = tpu.matmul %5, %6, %cst {dimension_numbers = #tpu.dot_dimension_numbers<[1], [0], [0], [1], [0, 0, 1, 1], [], []>} : vector<16x32xbf16>, vector<32x32xbf16>, vector<16x32xf32> -> vector<16x32xf32>
    %c0_5 = arith.constant 0 : index
    %c0_6 = arith.constant 0 : index
    %8 = vector.load %arg9[%c0_5, %c0_6] : memref<1x32xf32, #tpu.memory_space<vmem>>, vector<1x32xf32>
    %9 = vector.broadcast %8 : vector<1x32xf32> to vector<16x32xf32>
    %10 = arith.addf %7, %9 : vector<16x32xf32>
    %11 = arith.truncf %10 : vector<16x32xf32> to vector<16x32xbf16>
    %12 = vector.shape_cast %11 : vector<16x32xbf16> to vector<16x1x32xbf16>
    %c0_7 = arith.constant 0 : index
    %c0_8 = arith.constant 0 : index
    %13 = vector.load %arg13[%c0_7, %c0_8] : memref<128x32xbf16, #tpu.memory_space<vmem>>, vector<128x32xbf16>
    %14 = vector.shape_cast %13 : vector<128x32xbf16> to vector<1x128x32xbf16>
    %15 = vector.broadcast %12 : vector<16x1x32xbf16> to vector<16x128x32xbf16>
    %16 = vector.broadcast %14 : vector<1x128x32xbf16> to vector<16x128x32xbf16>
    %17 = arith.addf %15, %16 : vector<16x128x32xbf16>
    %cst_9 = arith.constant 0.000000e+00 : bf16
    %18 = vector.broadcast %cst_9 : bf16 to vector<16x128x32xbf16>
    %19 = arith.maximumf %17, %18 : vector<16x128x32xbf16>
    %c0_10 = arith.constant 0 : index
    %c0_11 = arith.constant 0 : index
    %20 = vector.load %arg10[%c0_10, %c0_11] : memref<1x32xbf16, #tpu.memory_space<vmem>>, vector<1x32xbf16>
    %21 = vector.shape_cast %20 : vector<1x32xbf16> to vector<1x1x32xbf16>
    %22 = vector.broadcast %21 : vector<1x1x32xbf16> to vector<16x128x32xbf16>
    %23 = arith.mulf %19, %22 : vector<16x128x32xbf16>
    %24 = arith.extf %23 : vector<16x128x32xbf16> to vector<16x128x32xf32>
    %cst_12 = arith.constant dense<0.000000e+00> : vector<16x128xf32>
    %25 = vector.multi_reduction <add>, %24, %cst_12 [2] : vector<16x128x32xf32> to vector<16x128xf32>
    %c0_13 = arith.constant 0 : index
    %c0_14 = arith.constant 0 : index
    %c0_15 = arith.constant 0 : index
    %26 = vector.load %arg5[%c0_13, %c0_14, %c0_15] : memref<1x1x128xf32, #tpu.memory_space<vmem>>, vector<1x1x128xf32>
    %27 = vector.shape_cast %26 : vector<1x1x128xf32> to vector<1x128xf32>
    %cst_16 = arith.constant 0.000000e+00 : f32
    %28 = vector.broadcast %cst_16 : f32 to vector<1x128xf32>
    %29 = arith.cmpf ogt, %27, %28 : vector<1x128xf32>
    %cst_17 = arith.constant -1.000000e+04 : f32
    %30 = vector.shape_cast %29 : vector<1x128xi1> to vector<1x128xi1>
    %31 = vector.broadcast %30 : vector<1x128xi1> to vector<16x128xi1>
    %32 = vector.broadcast %cst_17 : f32 to vector<16x128xf32>
    %33 = arith.select %31, %25, %32 : vector<16x128xi1>, vector<16x128xf32>
    %c0_18 = arith.constant 0 : index
    %c0_19 = arith.constant 0 : index
    %c0_20 = arith.constant 0 : index
    %34 = vector.load %arg11[%c0_18, %c0_19, %c0_20] : memref<1x16x128xf32, #tpu.memory_space<vmem>>, vector<1x16x128xf32>
    %35 = vector.shape_cast %34 : vector<1x16x128xf32> to vector<16x128xf32>
    %36 = vector.shape_cast %33 : vector<16x128xf32> to vector<1x16x128xf32>
    tpu.vector_store %arg11[%c0_18, %c0_19, %c0_20], %36 {strides = array<i32>} : memref<1x16x128xf32, #tpu.memory_space<vmem>>, vector<1x16x128xf32>,
    %37 = arith.negf %33 : vector<16x128xf32>
    %38 = math.exp %37 : vector<16x128xf32>
    %cst_21 = arith.constant 1.000000e+00 : f32
    %39 = vector.broadcast %cst_21 : f32 to vector<16x128xf32>
    %40 = arith.addf %39, %38 : vector<16x128xf32>
    %41 = arith.divf %39, %40 : vector<16x128xf32>
    %42 = arith.truncf %41 : vector<16x128xf32> to vector<16x128xbf16>
    %c0_22 = arith.constant 0 : index
    %c0_23 = arith.constant 0 : index
    %c0_24 = arith.constant 0 : index
    %43 = vector.load %arg12[%c0_22, %c0_23, %c0_24] : memref<1x16x128xbf16, #tpu.memory_space<vmem>>, vector<1x16x128xbf16>
    %44 = vector.shape_cast %43 : vector<1x16x128xbf16> to vector<16x128xbf16>
    %45 = vector.shape_cast %42 : vector<16x128xbf16> to vector<1x16x128xbf16>
    tpu.vector_store %arg12[%c0_22, %c0_23, %c0_24], %45 {strides = array<i32>} : memref<1x16x128xbf16, #tpu.memory_space<vmem>>, vector<1x16x128xbf16>,
    return
  }
  func.func @transform_0(%arg0: i32, %arg1: i32, %arg2: i32) -> (i32, i32, i32) {
    %c0_i32 = arith.constant 0 : i32
    %c0_i32_0 = arith.constant 0 : i32
    return %arg0, %arg1, %c0_i32 : i32, i32, i32
  }
  func.func @transform_1(%arg0: i32, %arg1: i32, %arg2: i32) -> (i32, i32, i32) {
    %c0_i32 = arith.constant 0 : i32
    %c0_i32_0 = arith.constant 0 : i32
    return %arg0, %arg2, %c0_i32 : i32, i32, i32
  }
  func.func @transform_2(%arg0: i32, %arg1: i32, %arg2: i32) -> (i32, i32, i32) {
    %c0_i32 = arith.constant 0 : i32
    %c0_i32_0 = arith.constant 0 : i32
    return %arg0, %c0_i32, %arg1 : i32, i32, i32
  }
  func.func @transform_3(%arg0: i32, %arg1: i32, %arg2: i32) -> (i32, i32) {
    %c0_i32 = arith.constant 0 : i32
    %c0_i32_0 = arith.constant 0 : i32
    %c0_i32_1 = arith.constant 0 : i32
    return %c0_i32, %c0_i32_0 : i32, i32
  }
  func.func @transform_4(%arg0: i32, %arg1: i32, %arg2: i32) -> (i32, i32) {
    %c0_i32 = arith.constant 0 : i32
    %c0_i32_0 = arith.constant 0 : i32
    %c0_i32_1 = arith.constant 0 : i32
    return %c0_i32, %c0_i32_0 : i32, i32
  }
  func.func @transform_5(%arg0: i32, %arg1: i32, %arg2: i32) -> (i32, i32) {
    %c0_i32 = arith.constant 0 : i32
    %c0_i32_0 = arith.constant 0 : i32
    %c0_i32_1 = arith.constant 0 : i32
    return %c0_i32, %c0_i32_0 : i32, i32
  }
  func.func @transform_6(%arg0: i32, %arg1: i32, %arg2: i32) -> (i32, i32) {
    %c0_i32 = arith.constant 0 : i32
    %c0_i32_0 = arith.constant 0 : i32
    %c0_i32_1 = arith.constant 0 : i32
    return %c0_i32, %c0_i32_0 : i32, i32
  }
  func.func @transform_7(%arg0: i32, %arg1: i32, %arg2: i32) -> (i32, i32) {
    %c0_i32 = arith.constant 0 : i32
    %c0_i32_0 = arith.constant 0 : i32
    %c0_i32_1 = arith.constant 0 : i32
    return %c0_i32, %c0_i32_0 : i32, i32
  }
  func.func @transform_8(%arg0: i32, %arg1: i32, %arg2: i32) -> (i32, i32, i32) {
    %c0_i32 = arith.constant 0 : i32
    return %arg0, %arg2, %arg1 : i32, i32, i32
  }
  func.func @transform_9(%arg0: i32, %arg1: i32, %arg2: i32) -> (i32, i32, i32) {
    %c0_i32 = arith.constant 0 : i32
    return %arg0, %arg2, %arg1 : i32, i32, i32
  }
}

</mosaic_0001>

<llo_original>
// kernel: tpu_custom_call.1
$region0: #{tpu_custom_call.1}
  #allocation0 [shape = 'u32[]', space=smem, size = 0x4, offset = 0x4, fixed_abs, tag = 'smem constant byte address 0x4 - core index']
  #allocation1 [shape = 'u32[72,128]{1,0:T(1,128)}', space=vmem, size = 0x9000, scoped, tag = 'internal scratch']
  #allocation2 [shape = 'bf16[128,32]{1,0:T(8,128)(2,1)}', space=vmem, size = 0x8000, scoped, tag = 'scratch operand']
  %s0 = inlined_call_operand.vmem [shape: f32[2,256,32], index: 0, kind: input, shape index: {}]
  %s1 = inlined_call_operand.vmem [shape: f32[2,32,32], index: 1, kind: input, shape index: {}]
  %s2 = inlined_call_operand.vmem [shape: f32[2,1,256], index: 2, kind: input, shape index: {}]
  %s3 = inlined_call_operand.vmem [shape: bf16[32,32], index: 3, kind: input, shape index: {}]
  %s4 = inlined_call_operand.vmem [shape: f32[1,32], index: 4, kind: input, shape index: {}]
  %s5 = inlined_call_operand.vmem [shape: bf16[32,32], index: 5, kind: input, shape index: {}]
  %s6 = inlined_call_operand.vmem [shape: f32[1,32], index: 6, kind: input, shape index: {}]
  %s7 = inlined_call_operand.vmem [shape: bf16[1,32], index: 7, kind: input, shape index: {}]
  %s8 = inlined_call_operand.hbm [shape: f32[2,32,256], index: 8, kind: output, shape index: {0}]
  %s9 = inlined_call_operand.hbm [shape: bf16[2,32,256], index: 9, kind: output, shape index: {1}]
  %10 = xla_tuple %s8, %s9
  %s11 = sld [smem:[#allocation0]]
  $region77: #{tpu_custom_call.1} parent=0
    _
  %s13 = ssub.s32 1, %s11
  %s14 = scalar_select 0, %s13, %s11
  $region1: #{tpu_custom_call.1} parent=0
    #allocation3 [shape = 'u8[16384]{0}', space=vmem, size = 0x4000, scoped, tag = 'output window, operand 0']
    #allocation4 [shape = 's32[2]{0}', space=sflag, size = 0x8, scoped, tag = 'scoped memory for tpu_custom_call.1']
    #allocation5 [shape = 'u8[8192]{0}', space=vmem, size = 0x2000, scoped, tag = 'output window, operand 1']
    #allocation6 [shape = 's32[2]{0}', space=sflag, size = 0x8, scoped, tag = 'scoped memory for tpu_custom_call.1']
    %15 = vsyncpa [#allocation4], 0
    %s16 = scalar_lea.sflag [#allocation4], 1
    %17 = vsyncpa %s16, 0
    %18 = vsyncpa [#allocation6], 0
    %s19 = scalar_lea.sflag [#allocation6], 1
    %20 = vsyncpa %s19, 0
    loop: start=0, step=1, limit=10
    $region2: #{tpu_custom_call.1} parent=1 // loop_pre_header
      _
    $region3: #{tpu_custom_call.1} parent=1 // loop_header
      %s22 = sphi 0, %s26
      %p23 = scmp.ge.s32.totalorder %s22, 10
      %s29 = sphi 0, %s48
      %s30 = sphi 0, %s44
      %s31 = sphi 0, %s40
      %s32 = sphi 0, %s29
      %s33 = sphi 0, %s30
      %s34 = sphi 0, %s31
      %s35 = sphi 0, %s32
      %s36 = sphi 0, %s33
      %s37 = sphi 0, %s34
      %s53 = sphi 0, %s55
      %s56 = sphi 0, %s53
      %s57 = sphi 0, %s56
      %s73 = sphi 0, %s57
      %s81 = sphi 0, %s83
      %s84 = sphi 0, %s81
      %s85 = sphi 0, %s84
      %s101 = sphi 0, %s85
      %s109 = sphi 0, %s111
      %s112 = sphi 0, %s109
      %s113 = sphi 0, %s112
      %s129 = sphi 0, %s113
      %s133 = sphi 0, %s133
      %s135 = sphi 0, %s133
      %s136 = sphi 0, %s135
      %s150 = sphi 0, %s136
      %s154 = sphi 0, %s154
      %s156 = sphi 0, %s154
      %s157 = sphi 0, %s156
      %s171 = sphi 0, %s157
      %s175 = sphi 0, %s175
      %s177 = sphi 0, %s175
      %s178 = sphi 0, %s177
      %s192 = sphi 0, %s178
      %s196 = sphi 0, %s196
      %s198 = sphi 0, %s196
      %s199 = sphi 0, %s198
      %s213 = sphi 0, %s199
      %s217 = sphi 0, %s217
      %s219 = sphi 0, %s217
      %s220 = sphi 0, %s219
      %s234 = sphi 0, %s220
      %s244 = sphi 0, %s246
      %s247 = sphi 0, %s244
      %s248 = sphi 0, %s247
      %s264 = sphi 0, %s248
      %s274 = sphi 0, %s276
      %s277 = sphi 0, %s274
      %s278 = sphi 0, %s277
      %s294 = sphi 0, %s278
    $region4: #{tpu_custom_call.1} parent=1 // loop_header_branch
      %25 = sbr.rel (%p23) target = $region8
    $region5: #{tpu_custom_call.1} parent=1 // loop_body
      %s27 = ssub.s32 %s22, 1
      %s28 = ssub.s32 %s22, 2
      %s38 = sadd.s32 1, %s31
      %p39 = scmp.ge.s32.totalorder %s38, 2
      %s40 = scalar_select %p39, 0, %s38
      %s41 = sadd.s32 1, %s30
      %s42 = scalar_select %p39, %s41, %s30
      %p43 = scmp.ge.s32.totalorder %s42, 2
      %s44 = scalar_select %p43, 0, %s42
      %s45 = sadd.s32 1, %s29
      %s46 = scalar_select %p43, %s45, %s29
      %p47 = scmp.ge.s32.totalorder %s46, 2
      %s48 = scalar_select %p47, 0, %s46
      %s49 = ssub.s32 %s29, %s48
      %s50 = ssub.s32 %s30, %s44
      %s51 = sor.u32 %s49, %s50
      %p52 = scmp.eq.s32.totalorder %s51, 0
      %s54 = sadd.s32 %s53, 1
      %s55 = scalar_select %p52, %s53, %s54
      %p58 = pneg %p52
      %p59 = scmp.eq.s32.totalorder %s22, 7
      %p60 = por %p58, %p59
      %p61 = scmp.ne.s32.totalorder %s53, %s56
      %p62 = scmp.eq.s32.totalorder %s22, 0
      %p63 = por %p61, %p62
      %p64 = scmp.ne.s32.totalorder %s53, %s56
      %p65 = scmp.eq.s32.totalorder %s27, 7
      %p66 = por %p64, %p65
      %p67 = scmp.ne.s32.totalorder %s56, %s57
      %p68 = scmp.eq.s32.totalorder %s27, 0
      %p69 = por %p67, %p68
      %p70 = scmp.ne.s32.totalorder %s56, %s57
      %p71 = scmp.eq.s32.totalorder %s28, 7
      %p72 = por %p70, %p71
      %p74 = scmp.ne.s32.totalorder %s57, %s73
      %p75 = scmp.eq.s32.totalorder %s28, 0
      %p76 = por %p74, %p75
      %s77 = ssub.s32 %s29, %s48
      %s78 = ssub.s32 %s31, %s40
      %s79 = sor.u32 %s77, %s78
      %p80 = scmp.eq.s32.totalorder %s79, 0
      %s82 = sadd.s32 %s81, 1
      %s83 = scalar_select %p80, %s81, %s82
      %p86 = pneg %p80
      %p87 = scmp.eq.s32.totalorder %s22, 7
      %p88 = por %p86, %p87
      %p89 = scmp.ne.s32.totalorder %s81, %s84
      %p90 = scmp.eq.s32.totalorder %s22, 0
      %p91 = por %p89, %p90
      %p92 = scmp.ne.s32.totalorder %s81, %s84
      %p93 = scmp.eq.s32.totalorder %s27, 7
      %p94 = por %p92, %p93
      %p95 = scmp.ne.s32.totalorder %s84, %s85
      %p96 = scmp.eq.s32.totalorder %s27, 0
      %p97 = por %p95, %p96
      %p98 = scmp.ne.s32.totalorder %s84, %s85
      %p99 = scmp.eq.s32.totalorder %s28, 7
      %p100 = por %p98, %p99
      %p102 = scmp.ne.s32.totalorder %s85, %s101
      %p103 = scmp.eq.s32.totalorder %s28, 0
      %p104 = por %p102, %p103
      %s105 = ssub.s32 %s29, %s48
      %s106 = ssub.s32 %s30, %s44
      %s107 = sor.u32 %s105, %s106
      %p108 = scmp.eq.s32.totalorder %s107, 0
      %s110 = sadd.s32 %s109, 1
      %s111 = scalar_select %p108, %s109, %s110
      %p114 = pneg %p108
      %p115 = scmp.eq.s32.totalorder %s22, 7
      %p116 = por %p114, %p115
      %p117 = scmp.ne.s32.totalorder %s109, %s112
      %p118 = scmp.eq.s32.totalorder %s22, 0
      %p119 = por %p117, %p118
      %p120 = scmp.ne.s32.totalorder %s109, %s112
      %p121 = scmp.eq.s32.totalorder %s27, 7
      %p122 = por %p120, %p121
      %p123 = scmp.ne.s32.totalorder %s112, %s113
      %p124 = scmp.eq.s32.totalorder %s27, 0
      %p125 = por %p123, %p124
      %p126 = scmp.ne.s32.totalorder %s112, %s113
      %p127 = scmp.eq.s32.totalorder %s28, 7
      %p128 = por %p126, %p127
      %p130 = scmp.ne.s32.totalorder %s113, %s129
      %p131 = scmp.eq.s32.totalorder %s28, 0
      %p132 = por %p130, %p131
      %s134 = sadd.s32 %s133, 1
      %p137 = scmp.eq.s32.totalorder %s22, 7
      %p138 = scmp.ne.s32.totalorder %s133, %s135
      %p139 = scmp.eq.s32.totalorder %s22, 0
      %p140 = por %p138, %p139
      %p141 = scmp.ne.s32.totalorder %s133, %s135
      %p142 = scmp.eq.s32.totalorder %s27, 7
      %p143 = por %p141, %p142
      %p144 = scmp.ne.s32.totalorder %s135, %s136
      %p145 = scmp.eq.s32.totalorder %s27, 0
      %p146 = por %p144, %p145
      %p147 = scmp.ne.s32.totalorder %s135, %s136
      %p148 = scmp.eq.s32.totalorder %s28, 7
      %p149 = por %p147, %p148
      %p151 = scmp.ne.s32.totalorder %s136, %s150
      %p152 = scmp.eq.s32.totalorder %s28, 0
      %p153 = por %p151, %p152
      %s155 = sadd.s32 %s154, 1
      %p158 = scmp.eq.s32.totalorder %s22, 7
      %p159 = scmp.ne.s32.totalorder %s154, %s156
      %p160 = scmp.eq.s32.totalorder %s22, 0
      %p161 = por %p159, %p160
      %p162 = scmp.ne.s32.totalorder %s154, %s156
      %p163 = scmp.eq.s32.totalorder %s27, 7
      %p164 = por %p162, %p163
      %p165 = scmp.ne.s32.totalorder %s156, %s157
      %p166 = scmp.eq.s32.totalorder %s27, 0
      %p167 = por %p165, %p166
      %p168 = scmp.ne.s32.totalorder %s156, %s157
      %p169 = scmp.eq.s32.totalorder %s28, 7
      %p170 = por %p168, %p169
      %p172 = scmp.ne.s32.totalorder %s157, %s171
      %p173 = scmp.eq.s32.totalorder %s28, 0
      %p174 = por %p172, %p173
      %s176 = sadd.s32 %s175, 1
      %p179 = scmp.eq.s32.totalorder %s22, 7
      %p180 = scmp.ne.s32.totalorder %s175, %s177
      %p181 = scmp.eq.s32.totalorder %s22, 0
      %p182 = por %p180, %p181
      %p183 = scmp.ne.s32.totalorder %s175, %s177
      %p184 = scmp.eq.s32.totalorder %s27, 7
      %p185 = por %p183, %p184
      %p186 = scmp.ne.s32.totalorder %s177, %s178
      %p187 = scmp.eq.s32.totalorder %s27, 0
      %p188 = por %p186, %p187
      %p189 = scmp.ne.s32.totalorder %s177, %s178
      %p190 = scmp.eq.s32.totalorder %s28, 7
      %p191 = por %p189, %p190
      %p193 = scmp.ne.s32.totalorder %s178, %s192
      %p194 = scmp.eq.s32.totalorder %s28, 0
      %p195 = por %p193, %p194
      %s197 = sadd.s32 %s196, 1
      %p200 = scmp.eq.s32.totalorder %s22, 7
      %p201 = scmp.ne.s32.totalorder %s196, %s198
      %p202 = scmp.eq.s32.totalorder %s22, 0
      %p203 = por %p201, %p202
      %p204 = scmp.ne.s32.totalorder %s196, %s198
      %p205 = scmp.eq.s32.totalorder %s27, 7
      %p206 = por %p204, %p205
      %p207 = scmp.ne.s32.totalorder %s198, %s199
      %p208 = scmp.eq.s32.totalorder %s27, 0
      %p209 = por %p207, %p208
      %p210 = scmp.ne.s32.totalorder %s198, %s199
      %p211 = scmp.eq.s32.totalorder %s28, 7
      %p212 = por %p210, %p211
      %p214 = scmp.ne.s32.totalorder %s199, %s213
      %p215 = scmp.eq.s32.totalorder %s28, 0
      %p216 = por %p214, %p215
      %s218 = sadd.s32 %s217, 1
      %p221 = scmp.eq.s32.totalorder %s22, 7
      %p222 = scmp.ne.s32.totalorder %s217, %s219
      %p223 = scmp.eq.s32.totalorder %s22, 0
      %p224 = por %p222, %p223
      %p225 = scmp.ne.s32.totalorder %s217, %s219
      %p226 = scmp.eq.s32.totalorder %s27, 7
      %p227 = por %p225, %p226
      %p228 = scmp.ne.s32.totalorder %s219, %s220
      %p229 = scmp.eq.s32.totalorder %s27, 0
      %p230 = por %p228, %p229
      %p231 = scmp.ne.s32.totalorder %s219, %s220
      %p232 = scmp.eq.s32.totalorder %s28, 7
      %p233 = por %p231, %p232
      %p235 = scmp.ne.s32.totalorder %s220, %s234
      %p236 = scmp.eq.s32.totalorder %s28, 0
      %p237 = por %p235, %p236
      %s238 = ssub.s32 %s29, %s48
      %s239 = ssub.s32 %s31, %s40
      %s240 = sor.u32 %s238, %s239
      %s241 = ssub.s32 %s30, %s44
      %s242 = sor.u32 %s240, %s241
      %p243 = scmp.eq.s32.totalorder %s242, 0
      %s245 = sadd.s32 %s244, 1
      %s246 = scalar_select %p243, %s244, %s245
      %p249 = pneg %p243
      %p250 = scmp.eq.s32.totalorder %s22, 7
      %p251 = por %p249, %p250
      %p252 = scmp.ne.s32.totalorder %s244, %s247
      %p253 = scmp.eq.s32.totalorder %s22, 0
      %p254 = por %p252, %p253
      %p255 = scmp.ne.s32.totalorder %s244, %s247
      %p256 = scmp.eq.s32.totalorder %s27, 7
      %p257 = por %p255, %p256
      %p258 = scmp.ne.s32.totalorder %s247, %s248
      %p259 = scmp.eq.s32.totalorder %s27, 0
      %p260 = por %p258, %p259
      %p261 = scmp.ne.s32.totalorder %s247, %s248
      %p262 = scmp.eq.s32.totalorder %s28, 7
      %p263 = por %p261, %p262
      %p265 = scmp.ne.s32.totalorder %s248, %s264
      %p266 = scmp.eq.s32.totalorder %s28, 0
      %p267 = por %p265, %p266
      %s268 = ssub.s32 %s29, %s48
      %s269 = ssub.s32 %s31, %s40
      %s270 = sor.u32 %s268, %s269
      %s271 = ssub.s32 %s30, %s44
      %s272 = sor.u32 %s270, %s271
      %p273 = scmp.eq.s32.totalorder %s272, 0
      %s275 = sadd.s32 %s274, 1
      %s276 = scalar_select %p273, %s274, %s275
      %p279 = pneg %p273
      %p280 = scmp.eq.s32.totalorder %s22, 7
      %p281 = por %p279, %p280
      %p282 = scmp.ne.s32.totalorder %s274, %s277
      %p283 = scmp.eq.s32.totalorder %s22, 0
      %p284 = por %p282, %p283
      %p285 = scmp.ne.s32.totalorder %s274, %s277
      %p286 = scmp.eq.s32.totalorder %s27, 7
      %p287 = por %p285, %p286
      %p288 = scmp.ne.s32.totalorder %s277, %s278
      %p289 = scmp.eq.s32.totalorder %s27, 0
      %p290 = por %p288, %p289
      %p291 = scmp.ne.s32.totalorder %s277, %s278
      %p292 = scmp.eq.s32.totalorder %s28, 7
      %p293 = por %p291, %p292
      %p295 = scmp.ne.s32.totalorder %s278, %s294
      %p296 = scmp.eq.s32.totalorder %s28, 0
      %p297 = por %p295, %p296
      %p298 = scmp.le.s32.totalorder 1, %s22
      %p299 = scmp.lt.s32.totalorder %s22, 9
      %p300 = pnand %p298, %p299
      %p301 = pneg %p300
      // Predicated region
      $region9: #{tpu_custom_call.1} parent=5 // pred_check
        _
      $region10: #{tpu_custom_call.1} parent=5 // pred_check_branch
        %303 = sbr.rel (%p300) target = $region12
      $region11: #{tpu_custom_call.1} parent=5 // pred_region
        %s304 = ssub.s32 %s22, 1
        // Predicated region
        $region13: #{tpu_custom_call.1} parent=11 // pred_check
          %p305 = pneg %p146
        $region14: #{tpu_custom_call.1} parent=11 // pred_check_branch
          %307 = sbr.rel (%p305) target = $region16
        $region15: #{tpu_custom_call.1} parent=11 // pred_region
          _
        $region16: #{tpu_custom_call.1} parent=11 // pred_fallthru
          _
        // Predicated region
        $region17: #{tpu_custom_call.1} parent=11 // pred_check
          %p308 = pneg %p167
        $region18: #{tpu_custom_call.1} parent=11 // pred_check_branch
          %310 = sbr.rel (%p308) target = $region20
        $region19: #{tpu_custom_call.1} parent=11 // pred_region
          _
        $region20: #{tpu_custom_call.1} parent=11 // pred_fallthru
          _
        // Predicated region
        $region21: #{tpu_custom_call.1} parent=11 // pred_check
          %p311 = pneg %p188
        $region22: #{tpu_custom_call.1} parent=11 // pred_check_branch
          %313 = sbr.rel (%p311) target = $region24
        $region23: #{tpu_custom_call.1} parent=11 // pred_region
          _
        $region24: #{tpu_custom_call.1} parent=11 // pred_fallthru
          _
        // Predicated region
        $region25: #{tpu_custom_call.1} parent=11 // pred_check
          %p314 = pneg %p209
        $region26: #{tpu_custom_call.1} parent=11 // pred_check_branch
          %316 = sbr.rel (%p314) target = $region28
        $region27: #{tpu_custom_call.1} parent=11 // pred_region
          _
        $region28: #{tpu_custom_call.1} parent=11 // pred_fallthru
          _
        // Predicated region
        $region29: #{tpu_custom_call.1} parent=11 // pred_check
          %p317 = pneg %p230
        $region30: #{tpu_custom_call.1} parent=11 // pred_check_branch
          %319 = sbr.rel (%p317) target = $region32
        $region31: #{tpu_custom_call.1} parent=11 // pred_region
          _
        $region32: #{tpu_custom_call.1} parent=11 // pred_fallthru
          _
      $region12: #{tpu_custom_call.1} parent=5 // pred_fallthru
        _
      %p320 = scmp.lt.s32.totalorder %s22, 8
      // Predicated region
      $region33: #{tpu_custom_call.1} parent=5 // pred_check
        %p321 = pneg %p320
      $region34: #{tpu_custom_call.1} parent=5 // pred_check_branch
        %323 = sbr.rel (%p321) target = $region36
      $region35: #{tpu_custom_call.1} parent=5 // pred_region
        // Predicated region
        $region37: #{tpu_custom_call.1} parent=35 // pred_check
          %p324 = pneg %p63
        $region38: #{tpu_custom_call.1} parent=35 // pred_check_branch
          %326 = sbr.rel (%p324) target = $region40
        $region39: #{tpu_custom_call.1} parent=35 // pred_region
          %s327 = smul.u32 16, %s30
          %p328 = scmp.lt.s32.totalorder %s29, 1
          %s329 = scalar_select %p328, %s29, 1
          %p330 = scmp.lt.s32.totalorder %s327, 31
          %s331 = scalar_select %p330, %s327, 31
          %s332 = smul.addr %s329, 32
          %s333 = sadd.s32 %s331, %s332
          %s334 = smul.addr %s333, 8
          %s335 = scalar_lea.vmem %s0, %s334
          %s336 = smul.u32 16, %s30
        $region40: #{tpu_custom_call.1} parent=35 // pred_fallthru
          _
        // Predicated region
        $region41: #{tpu_custom_call.1} parent=35 // pred_check
          %p337 = pneg %p91
        $region42: #{tpu_custom_call.1} parent=35 // pred_check_branch
          %339 = sbr.rel (%p337) target = $region44
        $region43: #{tpu_custom_call.1} parent=35 // pred_region
          %s340 = smul.u32 2, %s31
          %p341 = scmp.lt.s32.totalorder %s29, 1
          %s342 = scalar_select %p341, %s29, 1
          %p343 = scmp.lt.s32.totalorder %s340, 3
          %s344 = scalar_select %p343, %s340, 3
          %s345 = smul.addr %s342, 4
          %s346 = sadd.s32 %s344, %s345
          %s347 = smul.addr %s346, 8
          %s348 = scalar_lea.vmem %s1, %s347
          %s349 = smul.u32 2, %s31
        $region44: #{tpu_custom_call.1} parent=35 // pred_fallthru
          _
        // Predicated region
        $region45: #{tpu_custom_call.1} parent=35 // pred_check
          %p350 = pneg %p119
        $region46: #{tpu_custom_call.1} parent=35 // pred_check_branch
          %352 = sbr.rel (%p350) target = $region48
        $region47: #{tpu_custom_call.1} parent=35 // pred_region
          %p353 = scmp.lt.s32.totalorder %s29, 1
          %s354 = scalar_select %p353, %s29, 1
          %p355 = scmp.lt.s32.totalorder %s30, 1
          %s356 = scalar_select %p355, %s30, 1
          %s357 = smul.addr %s354, 2
          %s358 = sadd.s32 %s356, %s357
          %s359 = scalar_lea.vmem %s2, %s358
        $region48: #{tpu_custom_call.1} parent=35 // pred_fallthru
          _
      $region36: #{tpu_custom_call.1} parent=5 // pred_fallthru
        _
      %p360 = scmp.le.s32.totalorder 1, %s22
      %p361 = scmp.lt.s32.totalorder %s22, 9
      %p362 = pnand %p360, %p361
      %p363 = pneg %p362
      // Predicated region
      $region49: #{tpu_custom_call.1} parent=5 // pred_check
        _
      $region50: #{tpu_custom_call.1} parent=5 // pred_check_branch
        %365 = sbr.rel (%p362) target = $region52
      $region51: #{tpu_custom_call.1} parent=5 // pred_region
        %s366 = ssub.s32 %s22, 1
        %s367 = smul.u32 16, %s33
        %p368 = scmp.lt.s32.totalorder %s32, 1
        %s369 = scalar_select %p368, %s32, 1
        %p370 = scmp.lt.s32.totalorder %s367, 31
        %s371 = scalar_select %p370, %s367, 31
        %s372 = smul.addr %s369, 32
        %s373 = sadd.s32 %s371, %s372
        %s374 = smul.addr %s373, 8
        %s375 = scalar_lea.vmem %s0, %s374
        %p376 = pneg %p69
        %p377 = pneg %p66
        %s378 = smul.u32 2, %s34
        %p379 = scmp.lt.s32.totalorder %s32, 1
        %s380 = scalar_select %p379, %s32, 1
        %p381 = scmp.lt.s32.totalorder %s378, 3
        %s382 = scalar_select %p381, %s378, 3
        %s383 = smul.addr %s380, 4
        %s384 = sadd.s32 %s382, %s383
        %s385 = smul.addr %s384, 8
        %s386 = scalar_lea.vmem %s1, %s385
        %p387 = pneg %p97
        %p388 = pneg %p94
        %p389 = scmp.lt.s32.totalorder %s32, 1
        %s390 = scalar_select %p389, %s32, 1
        %p391 = scmp.lt.s32.totalorder %s33, 1
        %s392 = scalar_select %p391, %s33, 1
        %s393 = smul.addr %s390, 2
        %s394 = sadd.s32 %s392, %s393
        %s395 = scalar_lea.vmem %s2, %s394
        %p396 = pneg %p125
        %p397 = pneg %p122
        %p398 = pneg %p146
        %p399 = pneg %p143
        %p400 = pneg %p167
        %p401 = pneg %p164
        %p402 = pneg %p188
        %p403 = pneg %p185
        %p404 = pneg %p209
        %p405 = pneg %p206
        %p406 = pneg %p230
        %p407 = pneg %p227
        %p408 = pneg %p260
        %p409 = pneg %p257
        %s410 = sand.u32 %s247, 1
        %s411 = scalar_lea.sflag [#allocation4], %s410
        %s412 = sand.u32 %s247, 1
        %s413 = smul.addr %s412, 16
        %s414 = scalar_lea.vmem [#allocation3], %s413
        %p415 = pneg %p290
        %p416 = pneg %p287
        %s417 = sand.u32 %s277, 1
        %s418 = scalar_lea.sflag [#allocation6], %s417
        %s419 = sand.u32 %s277, 1
        %s420 = smul.addr %s419, 8
        %s421 = scalar_lea.vmem [#allocation5], %s420
        %s422 = smul.u32 16, %s33
        %p423 = scmp.lt.s32.totalorder %s32, 1
        %s424 = scalar_select %p423, %s32, 1
        %p425 = scmp.lt.s32.totalorder %s422, 31
        %s426 = scalar_select %p425, %s422, 31
        %s427 = smul.addr %s424, 32
        %s428 = sadd.s32 %s426, %s427
        %s429 = smul.addr %s428, 8
        %s430 = scalar_lea.vmem %s0, %s429
        %s431 = smul.u32 16, %s33
        %s432 = smul.u32 2, %s34
        %p433 = scmp.lt.s32.totalorder %s32, 1
        %s434 = scalar_select %p433, %s32, 1
        %p435 = scmp.lt.s32.totalorder %s432, 3
        %s436 = scalar_select %p435, %s432, 3
        %s437 = smul.addr %s434, 4
        %s438 = sadd.s32 %s436, %s437
        %s439 = smul.addr %s438, 8
        %s440 = scalar_lea.vmem %s1, %s439
        %s441 = smul.u32 2, %s34
        %p442 = scmp.lt.s32.totalorder %s32, 1
        %s443 = scalar_select %p442, %s32, 1
        %p444 = scmp.lt.s32.totalorder %s33, 1
        %s445 = scalar_select %p444, %s33, 1
        %s446 = smul.addr %s443, 2
        %s447 = sadd.s32 %s445, %s446
        %s448 = scalar_lea.vmem %s2, %s447
        %s449 = smul.u32 2, %s34
        %s450 = smul.u32 2, %s34
        %p452 = scmp.eq.s32.totalorder %s34, 0
        // Predicated region
        $region53: #{tpu_custom_call.1} parent=51 // pred_check
          %p453 = pneg %p452
        $region54: #{tpu_custom_call.1} parent=51 // pred_check_branch
          %455 = sbr.rel (%p453) target = $region56
        $region55: #{tpu_custom_call.1} parent=51 // pred_region
          %v456 = vld [vmem:[%s430] sm:$0xff]
          %v457 = vld [vmem:[%s430 + $0x8] sm:$0xff]
          %v458 = vld [vmem:[%s430 + $0x10] sm:$0xff]
          %v459 = vld [vmem:[%s430 + $0x18] sm:$0xff]
          %v460 = vld [vmem:[%s430 + $0x20] sm:$0xff]
          %v461 = vld [vmem:[%s430 + $0x28] sm:$0xff]
          %v462 = vld [vmem:[%s430 + $0x30] sm:$0xff]
          %v463 = vld [vmem:[%s430 + $0x38] sm:$0xff]
          %v464 = vld [vmem:[%s430 + $0x40] sm:$0xff]
          %v465 = vld [vmem:[%s430 + $0x48] sm:$0xff]
          %v466 = vld [vmem:[%s430 + $0x50] sm:$0xff]
          %v467 = vld [vmem:[%s430 + $0x58] sm:$0xff]
          %v468 = vld [vmem:[%s430 + $0x60] sm:$0xff]
          %v469 = vld [vmem:[%s430 + $0x68] sm:$0xff]
          %v470 = vld [vmem:[%s430 + $0x70] sm:$0xff]
          %v471 = vld [vmem:[%s430 + $0x78] sm:$0xff]
          %v472 = vpack.c.bf16 %v457, %v456
          %v473 = vpack.c.bf16 %v459, %v458
          %v474 = vpack.c.bf16 %v461, %v460
          %v475 = vpack.c.bf16 %v463, %v462
          %v476 = vpack.c.bf16 %v465, %v464
          %v477 = vpack.c.bf16 %v467, %v466
          %v478 = vpack.c.bf16 %v469, %v468
          %v479 = vpack.c.bf16 %v471, %v470
          %v480 = vld [vmem:[%s3] sm:$0xf]
          %v481 = vld [vmem:[%s3 + $0x4] sm:$0xf]
          %v482 = vld [vmem:[%s3 + $0x8] sm:$0xf]
          %v483 = vld [vmem:[%s3 + $0xc] sm:$0xf]
          %v484 = vld [vmem:[%s4] sm:$0x1]
          %v486 = vperm.slane %v484, 0
          %v492 = vunpack.c.l.b16 %v480
          %v493 = vunpack.c.l.b16 %v481
          %v494 = vunpack.c.l.b16 %v482
          %v495 = vunpack.c.l.b16 %v483
          %v496 = vpack.c.b16 %v493, %v492
          %v497 = vpack.c.b16 %v495, %v494
          %vm500 = vcmask 261120
          %v502 = vsel %vm500, %v472, 0
          %v505 = vsel %vm500, %v473, 0
          %v508 = vsel %vm500, %v474, 0
          %v511 = vsel %vm500, %v475, 0
          %v514 = vsel %vm500, %v476, 0
          %v517 = vsel %vm500, %v477, 0
          %v520 = vsel %vm500, %v478, 0
          %v523 = vsel %vm500, %v479, 0
          %525 = vmatpush.bf16.msra.mxu0 0
          %526 = vmatpush.bf16.msra.mxu0 0
          %527 = vmatpush.bf16.msra.mxu0 0
          %528 = vmatpush.bf16.msra.mxu0 0
          %529 = vmatpush.bf16.msra.mxu0 0
          %530 = vmatpush.bf16.msra.mxu0 0
          %531 = vmatpush.bf16.msra.mxu0 %v497
          %532 = vmatpush.bf16.msra.mxu0 %v496
          %533 = vmatmul.bf16.gmra.mxu0 %v502
          %v534 = vpop.f32.mrf.mxu0
          %v535 = vadd.f32 %v486, %v534
          %v536 = vpop.f32.mrf.mxu0
          %v537 = vadd.f32 %v486, %v536
          %538 = vmatmul.bf16.gmra.mxu0 %v505
          %v539 = vpop.f32.mrf.mxu0
          %v540 = vadd.f32 %v486, %v539
          %v541 = vpop.f32.mrf.mxu0
          %v542 = vadd.f32 %v486, %v541
          %543 = vmatmul.bf16.gmra.mxu0 %v508
          %v544 = vpop.f32.mrf.mxu0
          %v545 = vadd.f32 %v486, %v544
          %v546 = vpop.f32.mrf.mxu0
          %v547 = vadd.f32 %v486, %v546
          %548 = vmatmul.bf16.gmra.mxu0 %v511
          %v549 = vpop.f32.mrf.mxu0
          %v550 = vadd.f32 %v486, %v549
          %v551 = vpop.f32.mrf.mxu0
          %v552 = vadd.f32 %v486, %v551
          %553 = vmatmul.bf16.gmra.mxu0 %v514
          %v554 = vpop.f32.mrf.mxu0
          %v555 = vadd.f32 %v486, %v554
          %v556 = vpop.f32.mrf.mxu0
          %v557 = vadd.f32 %v486, %v556
          %558 = vmatmul.bf16.gmra.mxu0 %v517
          %v559 = vpop.f32.mrf.mxu0
          %v560 = vadd.f32 %v486, %v559
          %v561 = vpop.f32.mrf.mxu0
          %v562 = vadd.f32 %v486, %v561
          %563 = vmatmul.bf16.gmra.mxu0 %v520
          %v564 = vpop.f32.mrf.mxu0
          %v565 = vadd.f32 %v486, %v564
          %v566 = vpop.f32.mrf.mxu0
          %v567 = vadd.f32 %v486, %v566
          %568 = vmatmul.bf16.gmra.mxu0 %v523
          %v569 = vpop.f32.mrf.mxu0
          %v570 = vadd.f32 %v486, %v569
          %v571 = vpop.f32.mrf.mxu0
          %v572 = vadd.f32 %v486, %v571
          %573 = vdwg.mxu0
          %v574 = vpack.c.bf16 %v535, %v535
          %v575 = vpack.c.bf16 %v537, %v537
          %v576 = vpack.c.bf16 %v540, %v540
          %v577 = vpack.c.bf16 %v542, %v542
          %v578 = vpack.c.bf16 %v545, %v545
          %v579 = vpack.c.bf16 %v547, %v547
          %v580 = vpack.c.bf16 %v550, %v550
          %v581 = vpack.c.bf16 %v552, %v552
          %v582 = vpack.c.bf16 %v555, %v555
          %v583 = vpack.c.bf16 %v557, %v557
          %v584 = vpack.c.bf16 %v560, %v560
          %v585 = vpack.c.bf16 %v562, %v562
          %v586 = vpack.c.bf16 %v565, %v565
          %v587 = vpack.c.bf16 %v567, %v567
          %v588 = vpack.c.bf16 %v570, %v570
          %v589 = vpack.c.bf16 %v572, %v572
          %vm590 = vcmask 257024
          %591 = vst.msk [vmem:[#allocation2] sm:$0xf] %vm590, %v574
          %592 = vst.msk [vmem:[#allocation2 + $0x4] sm:$0xf] %vm590, %v575
          %593 = vst.msk [vmem:[#allocation2 + $0x8] sm:$0xf] %vm590, %v576
          %594 = vst.msk [vmem:[#allocation2 + $0xc] sm:$0xf] %vm590, %v577
          %595 = vst.msk [vmem:[#allocation2 + $0x10] sm:$0xf] %vm590, %v578
          %596 = vst.msk [vmem:[#allocation2 + $0x14] sm:$0xf] %vm590, %v579
          %597 = vst.msk [vmem:[#allocation2 + $0x18] sm:$0xf] %vm590, %v580
          %598 = vst.msk [vmem:[#allocation2 + $0x1c] sm:$0xf] %vm590, %v581
          %599 = vst.msk [vmem:[#allocation2 + $0x20] sm:$0xf] %vm590, %v582
          %600 = vst.msk [vmem:[#allocation2 + $0x24] sm:$0xf] %vm590, %v583
          %601 = vst.msk [vmem:[#allocation2 + $0x28] sm:$0xf] %vm590, %v584
          %602 = vst.msk [vmem:[#allocation2 + $0x2c] sm:$0xf] %vm590, %v585
          %603 = vst.msk [vmem:[#allocation2 + $0x30] sm:$0xf] %vm590, %v586
          %604 = vst.msk [vmem:[#allocation2 + $0x34] sm:$0xf] %vm590, %v587
          %605 = vst.msk [vmem:[#allocation2 + $0x38] sm:$0xf] %vm590, %v588
          %606 = vst.msk [vmem:[#allocation2 + $0x3c] sm:$0xf] %vm590, %v589
        $region56: #{tpu_custom_call.1} parent=51 // pred_fallthru
          _
        %v607 = vld [vmem:[%s440] sm:$0xff]
        %v608 = vld [vmem:[%s440 + $0x8] sm:$0xff]
        %v609 = vpack.c.bf16 %v608, %v607
        %v610 = vld [vmem:[%s5] sm:$0xf]
        %v611 = vld [vmem:[%s5 + $0x4] sm:$0xf]
        %v612 = vld [vmem:[%s5 + $0x8] sm:$0xf]
        %v613 = vld [vmem:[%s5 + $0xc] sm:$0xf]
        %v614 = vld [vmem:[%s6] sm:$0x1]
        %v616 = vperm.slane %v614, 0
        %v622 = vunpack.c.l.b16 %v610
        %v623 = vunpack.c.l.b16 %v611
        %v624 = vunpack.c.l.b16 %v612
        %v625 = vunpack.c.l.b16 %v613
        %v626 = vpack.c.b16 %v623, %v622
        %v627 = vpack.c.b16 %v625, %v624
        %vm630 = vcmask 261120
        %v632 = vsel %vm630, %v609, 0
        %634 = vmatpush.bf16.msra.mxu0 0
        %635 = vmatpush.bf16.msra.mxu0 0
        %636 = vmatpush.bf16.msra.mxu0 0
        %637 = vmatpush.bf16.msra.mxu0 0
        %638 = vmatpush.bf16.msra.mxu0 0
        %639 = vmatpush.bf16.msra.mxu0 0
        %640 = vmatpush.bf16.msra.mxu0 %v627
        %641 = vmatpush.bf16.msra.mxu0 %v626
        %642 = vmatmul.bf16.gmra.mxu0 %v632
        %v643 = vpop.f32.mrf.mxu0
        %v644 = vadd.f32 %v616, %v643
        %v645 = vpop.f32.mrf.mxu0
        %v646 = vadd.f32 %v616, %v645
        %647 = vdwg.mxu0
        %v648 = vpack.c.bf16 %v644, %v644
        %v649 = vpack.c.bf16 %v646, %v646
        %v652 = vrot.slane %v648, 3
        %v653 = vrot.slane %v649, 3
        %vm654 = vcmask 1040384
        %v657 = vsel %vm654, %v648, %v652
        %vm659 = vcmask 1041409
        %v660 = vsel %vm659, %v648, %v652
        %v662 = vrot.slane %v660, 1
        %vm663 = vcmask 1042434
        %v664 = vsel %vm663, %v648, %v652
        %v666 = vrot.slane %v664, 2
        %vm667 = vcmask 1043459
        %v668 = vsel %vm667, %v648, %v652
        %v670 = vrot.slane %v668, 3
        %v673 = vsel %vm654, %v649, %v653
        %v675 = vsel %vm659, %v649, %v653
        %v677 = vrot.slane %v675, 1
        %v678 = vsel %vm663, %v649, %v653
        %v680 = vrot.slane %v678, 2
        %v681 = vsel %vm667, %v649, %v653
        %v683 = vrot.slane %v681, 3
        %v684 = vunpack.i.l.s16 %v657
        %v685 = vunpack.i.h.s16 %v657
        %v686 = vunpack.i.l.s16 %v662
        %v687 = vunpack.i.h.s16 %v662
        %v688 = vunpack.i.l.s16 %v666
        %v689 = vunpack.i.h.s16 %v666
        %v690 = vunpack.i.l.s16 %v670
        %v691 = vunpack.i.h.s16 %v670
        %v692 = vunpack.i.l.s16 %v673
        %v693 = vunpack.i.h.s16 %v673
        %v694 = vunpack.i.l.s16 %v677
        %v695 = vunpack.i.h.s16 %v677
        %v696 = vunpack.i.l.s16 %v680
        %v697 = vunpack.i.h.s16 %v680
        %v698 = vunpack.i.l.s16 %v683
        %v699 = vunpack.i.h.s16 %v683
        %v700 = vld [vmem:[#allocation2] sm:$0xf]
        %v701 = vld [vmem:[#allocation2 + $0x4] sm:$0xf]
        %v702 = vld [vmem:[#allocation2 + $0x8] sm:$0xf]
        %v703 = vld [vmem:[#allocation2 + $0xc] sm:$0xf]
        %v704 = vld [vmem:[#allocation2 + $0x10] sm:$0xf]
        %v705 = vld [vmem:[#allocation2 + $0x14] sm:$0xf]
        %v706 = vld [vmem:[#allocation2 + $0x18] sm:$0xf]
        %v707 = vld [vmem:[#allocation2 + $0x1c] sm:$0xf]
        %v708 = vld [vmem:[#allocation2 + $0x20] sm:$0xf]
        %v709 = vld [vmem:[#allocation2 + $0x24] sm:$0xf]
        %v710 = vld [vmem:[#allocation2 + $0x28] sm:$0xf]
        %v711 = vld [vmem:[#allocation2 + $0x2c] sm:$0xf]
        %v712 = vld [vmem:[#allocation2 + $0x30] sm:$0xf]
        %v713 = vld [vmem:[#allocation2 + $0x34] sm:$0xf]
        %v714 = vld [vmem:[#allocation2 + $0x38] sm:$0xf]
        %v715 = vld [vmem:[#allocation2 + $0x3c] sm:$0xf]
        %v716 = vpack.i.b16 %v684, %v684
        %v717 = vpack.i.b16 %v685, %v685
        %v718 = vpack.i.b16 %v686, %v686
        %v719 = vpack.i.b16 %v687, %v687
        %v720 = vpack.i.b16 %v688, %v688
        %v721 = vpack.i.b16 %v689, %v689
        %v722 = vpack.i.b16 %v690, %v690
        %v723 = vpack.i.b16 %v691, %v691
        %v724 = vpack.i.b16 %v692, %v692
        %v725 = vpack.i.b16 %v693, %v693
        %v726 = vpack.i.b16 %v694, %v694
        %v727 = vpack.i.b16 %v695, %v695
        %v728 = vpack.i.b16 %v696, %v696
        %v729 = vpack.i.b16 %v697, %v697
        %v730 = vpack.i.b16 %v698, %v698
        %v731 = vpack.i.b16 %v699, %v699
        %v732 = vperm.slane %v716, 0
        %v733 = vperm.slane %v717, 0
        %v734 = vperm.slane %v718, 0
        %v735 = vperm.slane %v719, 0
        %v736 = vperm.slane %v720, 0
        %v737 = vperm.slane %v721, 0
        %v738 = vperm.slane %v722, 0
        %v739 = vperm.slane %v723, 0
        %v740 = vperm.slane %v724, 0
        %v741 = vperm.slane %v725, 0
        %v742 = vperm.slane %v726, 0
        %v743 = vperm.slane %v727, 0
        %v744 = vperm.slane %v728, 0
        %v745 = vperm.slane %v729, 0
        %v746 = vperm.slane %v730, 0
        %v747 = vperm.slane %v731, 0
        %v749 = vpack.i.b16 %v732, %v732
        %v751 = vperm.slane %v749, 0
        %v753 = vpack.i.b16 %v733, %v733
        %v755 = vperm.slane %v753, 0
        %v757 = vpack.i.b16 %v734, %v734
        %v759 = vperm.slane %v757, 0
        %v761 = vpack.i.b16 %v735, %v735
        %v763 = vperm.slane %v761, 0
        %v765 = vpack.i.b16 %v736, %v736
        %v767 = vperm.slane %v765, 0
        %v769 = vpack.i.b16 %v737, %v737
        %v771 = vperm.slane %v769, 0
        %v773 = vpack.i.b16 %v738, %v738
        %v775 = vperm.slane %v773, 0
        %v777 = vpack.i.b16 %v739, %v739
        %v779 = vperm.slane %v777, 0
        %v781 = vpack.i.b16 %v740, %v740
        %v783 = vperm.slane %v781, 0
        %v785 = vpack.i.b16 %v741, %v741
        %v787 = vperm.slane %v785, 0
        %v789 = vpack.i.b16 %v742, %v742
        %v791 = vperm.slane %v789, 0
        %v793 = vpack.i.b16 %v743, %v743
        %v795 = vperm.slane %v793, 0
        %v797 = vpack.i.b16 %v744, %v744
        %v799 = vperm.slane %v797, 0
        %v801 = vpack.i.b16 %v745, %v745
        %v803 = vperm.slane %v801, 0
        %v805 = vpack.i.b16 %v746, %v746
        %v807 = vperm.slane %v805, 0
        %v809 = vpack.i.b16 %v747, %v747
        %v811 = vperm.slane %v809, 0
        %v812 = vunpack.c.l.bf16 %v751
        %v813 = vunpack.c.l.bf16 %v755
        %v814 = vunpack.c.l.bf16 %v759
        %v815 = vunpack.c.l.bf16 %v763
        %v816 = vunpack.c.l.bf16 %v767
        %v817 = vunpack.c.l.bf16 %v771
        %v818 = vunpack.c.l.bf16 %v775
        %v819 = vunpack.c.l.bf16 %v779
        %v820 = vunpack.c.l.bf16 %v783
        %v821 = vunpack.c.l.bf16 %v787
        %v822 = vunpack.c.l.bf16 %v791
        %v823 = vunpack.c.l.bf16 %v795
        %v824 = vunpack.c.l.bf16 %v799
        %v825 = vunpack.c.l.bf16 %v803
        %v826 = vunpack.c.l.bf16 %v807
        %v827 = vunpack.c.l.bf16 %v811
        %v828 = vunpack.c.l.bf16 %v700
        %v829 = vunpack.c.l.bf16 %v701
        %v830 = vunpack.c.l.bf16 %v702
        %v831 = vunpack.c.l.bf16 %v703
        %v832 = vunpack.c.l.bf16 %v704
        %v833 = vunpack.c.l.bf16 %v705
        %v834 = vunpack.c.l.bf16 %v706
        %v835 = vunpack.c.l.bf16 %v707
        %v836 = vunpack.c.l.bf16 %v708
        %v837 = vunpack.c.l.bf16 %v709
        %v838 = vunpack.c.l.bf16 %v710
        %v839 = vunpack.c.l.bf16 %v711
        %v840 = vunpack.c.l.bf16 %v712
        %v841 = vunpack.c.l.bf16 %v713
        %v842 = vunpack.c.l.bf16 %v714
        %v843 = vunpack.c.l.bf16 %v715
        %v844 = vadd.f32 %v812, %v828
        %v845 = vadd.f32 %v812, %v829
        %v846 = vadd.f32 %v812, %v830
        %v847 = vadd.f32 %v812, %v831
        %v848 = vadd.f32 %v812, %v832
        %v849 = vadd.f32 %v812, %v833
        %v850 = vadd.f32 %v812, %v834
        %v851 = vadd.f32 %v812, %v835
        %v852 = vadd.f32 %v812, %v836
        %v853 = vadd.f32 %v812, %v837
        %v854 = vadd.f32 %v812, %v838
        %v855 = vadd.f32 %v812, %v839
        %v856 = vadd.f32 %v812, %v840
        %v857 = vadd.f32 %v812, %v841
        %v858 = vadd.f32 %v812, %v842
        %v859 = vadd.f32 %v812, %v843
        %v860 = vadd.f32 %v813, %v828
        %v861 = vadd.f32 %v813, %v829
        %v862 = vadd.f32 %v813, %v830
        %v863 = vadd.f32 %v813, %v831
        %v864 = vadd.f32 %v813, %v832
        %v865 = vadd.f32 %v813, %v833
        %v866 = vadd.f32 %v813, %v834
        %v867 = vadd.f32 %v813, %v835
        %v868 = vadd.f32 %v813, %v836
        %v869 = vadd.f32 %v813, %v837
        %v870 = vadd.f32 %v813, %v838
        %v871 = vadd.f32 %v813, %v839
        %v872 = vadd.f32 %v813, %v840
        %v873 = vadd.f32 %v813, %v841
        %v874 = vadd.f32 %v813, %v842
        %v875 = vadd.f32 %v813, %v843
        %v876 = vadd.f32 %v814, %v828
        %v877 = vadd.f32 %v814, %v829
        %v878 = vadd.f32 %v814, %v830
        %v879 = vadd.f32 %v814, %v831
        %v880 = vadd.f32 %v814, %v832
        %v881 = vadd.f32 %v814, %v833
        %v882 = vadd.f32 %v814, %v834
        %v883 = vadd.f32 %v814, %v835
        %v884 = vadd.f32 %v814, %v836
        %v885 = vadd.f32 %v814, %v837
        %v886 = vadd.f32 %v814, %v838
        %v887 = vadd.f32 %v814, %v839
        %v888 = vadd.f32 %v814, %v840
        %v889 = vadd.f32 %v814, %v841
        %v890 = vadd.f32 %v814, %v842
        %v891 = vadd.f32 %v814, %v843
        %v892 = vadd.f32 %v815, %v828
        %v893 = vadd.f32 %v815, %v829
        %v894 = vadd.f32 %v815, %v830
        %v895 = vadd.f32 %v815, %v831
        %v896 = vadd.f32 %v815, %v832
        %v897 = vadd.f32 %v815, %v833
        %v898 = vadd.f32 %v815, %v834
        %v899 = vadd.f32 %v815, %v835
        %v900 = vadd.f32 %v815, %v836
        %v901 = vadd.f32 %v815, %v837
        %v902 = vadd.f32 %v815, %v838
        %v903 = vadd.f32 %v815, %v839
        %v904 = vadd.f32 %v815, %v840
        %v905 = vadd.f32 %v815, %v841
        %v906 = vadd.f32 %v815, %v842
        %v907 = vadd.f32 %v815, %v843
        %v908 = vadd.f32 %v816, %v828
        %v909 = vadd.f32 %v816, %v829
        %v910 = vadd.f32 %v816, %v830
        %v911 = vadd.f32 %v816, %v831
        %v912 = vadd.f32 %v816, %v832
        %v913 = vadd.f32 %v816, %v833
        %v914 = vadd.f32 %v816, %v834
        %v915 = vadd.f32 %v816, %v835
        %v916 = vadd.f32 %v816, %v836
        %v917 = vadd.f32 %v816, %v837
        %v918 = vadd.f32 %v816, %v838
        %v919 = vadd.f32 %v816, %v839
        %v920 = vadd.f32 %v816, %v840
        %v921 = vadd.f32 %v816, %v841
        %v922 = vadd.f32 %v816, %v842
        %v923 = vadd.f32 %v816, %v843
        %v924 = vadd.f32 %v817, %v828
        %v925 = vadd.f32 %v817, %v829
        %v926 = vadd.f32 %v817, %v830
        %v927 = vadd.f32 %v817, %v831
        %v928 = vadd.f32 %v817, %v832
        %v929 = vadd.f32 %v817, %v833
        %v930 = vadd.f32 %v817, %v834
        %v931 = vadd.f32 %v817, %v835
        %v932 = vadd.f32 %v817, %v836
        %v933 = vadd.f32 %v817, %v837
        %v934 = vadd.f32 %v817, %v838
        %v935 = vadd.f32 %v817, %v839
        %v936 = vadd.f32 %v817, %v840
        %v937 = vadd.f32 %v817, %v841
        %v938 = vadd.f32 %v817, %v842
        %v939 = vadd.f32 %v817, %v843
        %v940 = vadd.f32 %v818, %v828
        %v941 = vadd.f32 %v818, %v829
        %v942 = vadd.f32 %v818, %v830
        %v943 = vadd.f32 %v818, %v831
        %v944 = vadd.f32 %v818, %v832
        %v945 = vadd.f32 %v818, %v833
        %v946 = vadd.f32 %v818, %v834
        %v947 = vadd.f32 %v818, %v835
        %v948 = vadd.f32 %v818, %v836
        %v949 = vadd.f32 %v818, %v837
        %v950 = vadd.f32 %v818, %v838
        %v951 = vadd.f32 %v818, %v839
        %v952 = vadd.f32 %v818, %v840
        %v953 = vadd.f32 %v818, %v841
        %v954 = vadd.f32 %v818, %v842
        %v955 = vadd.f32 %v818, %v843
        %v956 = vadd.f32 %v819, %v828
        %v957 = vadd.f32 %v819, %v829
        %v958 = vadd.f32 %v819, %v830
        %v959 = vadd.f32 %v819, %v831
        %v960 = vadd.f32 %v819, %v832
        %v961 = vadd.f32 %v819, %v833
        %v962 = vadd.f32 %v819, %v834
        %v963 = vadd.f32 %v819, %v835
        %v964 = vadd.f32 %v819, %v836
        %v965 = vadd.f32 %v819, %v837
        %v966 = vadd.f32 %v819, %v838
        %v967 = vadd.f32 %v819, %v839
        %v968 = vadd.f32 %v819, %v840
        %v969 = vadd.f32 %v819, %v841
        %v970 = vadd.f32 %v819, %v842
        %v971 = vadd.f32 %v819, %v843
        %v972 = vadd.f32 %v820, %v828
        %v973 = vadd.f32 %v820, %v829
        %v974 = vadd.f32 %v820, %v830
        %v975 = vadd.f32 %v820, %v831
        %v976 = vadd.f32 %v820, %v832
        %v977 = vadd.f32 %v820, %v833
        %v978 = vadd.f32 %v820, %v834
        %v979 = vadd.f32 %v820, %v835
        %v980 = vadd.f32 %v820, %v836
        %v981 = vadd.f32 %v820, %v837
        %v982 = vadd.f32 %v820, %v838
        %v983 = vadd.f32 %v820, %v839
        %v984 = vadd.f32 %v820, %v840
        %v985 = vadd.f32 %v820, %v841
        %v986 = vadd.f32 %v820, %v842
        %v987 = vadd.f32 %v820, %v843
        %v988 = vadd.f32 %v821, %v828
        %v989 = vadd.f32 %v821, %v829
        %v990 = vadd.f32 %v821, %v830
        %v991 = vadd.f32 %v821, %v831
        %v992 = vadd.f32 %v821, %v832
        %v993 = vadd.f32 %v821, %v833
        %v994 = vadd.f32 %v821, %v834
        %v995 = vadd.f32 %v821, %v835
        %v996 = vadd.f32 %v821, %v836
        %v997 = vadd.f32 %v821, %v837
        %v998 = vadd.f32 %v821, %v838
        %v999 = vadd.f32 %v821, %v839
        %v1000 = vadd.f32 %v821, %v840
        %v1001 = vadd.f32 %v821, %v841
        %v1002 = vadd.f32 %v821, %v842
        %v1003 = vadd.f32 %v821, %v843
        %v1004 = vadd.f32 %v822, %v828
        %v1005 = vadd.f32 %v822, %v829
        %v1006 = vadd.f32 %v822, %v830
        %v1007 = vadd.f32 %v822, %v831
        %v1008 = vadd.f32 %v822, %v832
        %v1009 = vadd.f32 %v822, %v833
        %v1010 = vadd.f32 %v822, %v834
        %v1011 = vadd.f32 %v822, %v835
        %v1012 = vadd.f32 %v822, %v836
        %v1013 = vadd.f32 %v822, %v837
        %v1014 = vadd.f32 %v822, %v838
        %v1015 = vadd.f32 %v822, %v839
        %v1016 = vadd.f32 %v822, %v840
        %v1017 = vadd.f32 %v822, %v841
        %v1018 = vadd.f32 %v822, %v842
        %v1019 = vadd.f32 %v822, %v843
        %v1020 = vadd.f32 %v823, %v828
        %v1021 = vadd.f32 %v823, %v829
        %v1022 = vadd.f32 %v823, %v830
        %v1023 = vadd.f32 %v823, %v831
        %v1024 = vadd.f32 %v823, %v832
        %v1025 = vadd.f32 %v823, %v833
        %v1026 = vadd.f32 %v823, %v834
        %v1027 = vadd.f32 %v823, %v835
        %v1028 = vadd.f32 %v823, %v836
        %v1029 = vadd.f32 %v823, %v837
        %v1030 = vadd.f32 %v823, %v838
        %v1031 = vadd.f32 %v823, %v839
        %v1032 = vadd.f32 %v823, %v840
        %v1033 = vadd.f32 %v823, %v841
        %v1034 = vadd.f32 %v823, %v842
        %v1035 = vadd.f32 %v823, %v843
        %v1036 = vadd.f32 %v824, %v828
        %v1037 = vadd.f32 %v824, %v829
        %v1038 = vadd.f32 %v824, %v830
        %v1039 = vadd.f32 %v824, %v831
        %v1040 = vadd.f32 %v824, %v832
        %v1041 = vadd.f32 %v824, %v833
        %v1042 = vadd.f32 %v824, %v834
        %v1043 = vadd.f32 %v824, %v835
        %v1044 = vadd.f32 %v824, %v836
        %v1045 = vadd.f32 %v824, %v837
        %v1046 = vadd.f32 %v824, %v838
        %v1047 = vadd.f32 %v824, %v839
        %v1048 = vadd.f32 %v824, %v840
        %v1049 = vadd.f32 %v824, %v841
        %v1050 = vadd.f32 %v824, %v842
        %v1051 = vadd.f32 %v824, %v843
        %v1052 = vadd.f32 %v825, %v828
        %v1053 = vadd.f32 %v825, %v829
        %v1054 = vadd.f32 %v825, %v830
        %v1055 = vadd.f32 %v825, %v831
        %v1056 = vadd.f32 %v825, %v832
        %v1057 = vadd.f32 %v825, %v833
        %v1058 = vadd.f32 %v825, %v834
        %v1059 = vadd.f32 %v825, %v835
        %v1060 = vadd.f32 %v825, %v836
        %v1061 = vadd.f32 %v825, %v837
        %v1062 = vadd.f32 %v825, %v838
        %v1063 = vadd.f32 %v825, %v839
        %v1064 = vadd.f32 %v825, %v840
        %v1065 = vadd.f32 %v825, %v841
        %v1066 = vadd.f32 %v825, %v842
        %v1067 = vadd.f32 %v825, %v843
        %v1068 = vadd.f32 %v826, %v828
        %v1069 = vadd.f32 %v826, %v829
        %v1070 = vadd.f32 %v826, %v830
        %v1071 = vadd.f32 %v826, %v831
        %v1072 = vadd.f32 %v826, %v832
        %v1073 = vadd.f32 %v826, %v833
        %v1074 = vadd.f32 %v826, %v834
        %v1075 = vadd.f32 %v826, %v835
        %v1076 = vadd.f32 %v826, %v836
        %v1077 = vadd.f32 %v826, %v837
        %v1078 = vadd.f32 %v826, %v838
        %v1079 = vadd.f32 %v826, %v839
        %v1080 = vadd.f32 %v826, %v840
        %v1081 = vadd.f32 %v826, %v841
        %v1082 = vadd.f32 %v826, %v842
        %v1083 = vadd.f32 %v826, %v843
        %v1084 = vadd.f32 %v827, %v828
        %v1085 = vadd.f32 %v827, %v829
        %v1086 = vadd.f32 %v827, %v830
        %v1087 = vadd.f32 %v827, %v831
        %v1088 = vadd.f32 %v827, %v832
        %v1089 = vadd.f32 %v827, %v833
        %v1090 = vadd.f32 %v827, %v834
        %v1091 = vadd.f32 %v827, %v835
        %v1092 = vadd.f32 %v827, %v836
        %v1093 = vadd.f32 %v827, %v837
        %v1094 = vadd.f32 %v827, %v838
        %v1095 = vadd.f32 %v827, %v839
        %v1096 = vadd.f32 %v827, %v840
        %v1097 = vadd.f32 %v827, %v841
        %v1098 = vadd.f32 %v827, %v842
        %v1099 = vadd.f32 %v827, %v843
        %v1100 = vpack.c.bf16 %v844, %v844
        %v1101 = vpack.c.bf16 %v845, %v845
        %v1102 = vpack.c.bf16 %v846, %v846
        %v1103 = vpack.c.bf16 %v847, %v847
        %v1104 = vpack.c.bf16 %v848, %v848
        %v1105 = vpack.c.bf16 %v849, %v849
        %v1106 = vpack.c.bf16 %v850, %v850
        %v1107 = vpack.c.bf16 %v851, %v851
        %v1108 = vpack.c.bf16 %v852, %v852
        %v1109 = vpack.c.bf16 %v853, %v853
        %v1110 = vpack.c.bf16 %v854, %v854
        %v1111 = vpack.c.bf16 %v855, %v855
        %v1112 = vpack.c.bf16 %v856, %v856
        %v1113 = vpack.c.bf16 %v857, %v857
        %v1114 = vpack.c.bf16 %v858, %v858
        %v1115 = vpack.c.bf16 %v859, %v859
        %v1116 = vpack.c.bf16 %v860, %v860
        %v1117 = vpack.c.bf16 %v861, %v861
        %v1118 = vpack.c.bf16 %v862, %v862
        %v1119 = vpack.c.bf16 %v863, %v863
        %v1120 = vpack.c.bf16 %v864, %v864
        %v1121 = vpack.c.bf16 %v865, %v865
        %v1122 = vpack.c.bf16 %v866, %v866
        %v1123 = vpack.c.bf16 %v867, %v867
        %v1124 = vpack.c.bf16 %v868, %v868
        %v1125 = vpack.c.bf16 %v869, %v869
        %v1126 = vpack.c.bf16 %v870, %v870
        %v1127 = vpack.c.bf16 %v871, %v871
        %v1128 = vpack.c.bf16 %v872, %v872
        %v1129 = vpack.c.bf16 %v873, %v873
        %v1130 = vpack.c.bf16 %v874, %v874
        %v1131 = vpack.c.bf16 %v875, %v875
        %v1132 = vpack.c.bf16 %v876, %v876
        %v1133 = vpack.c.bf16 %v877, %v877
        %v1134 = vpack.c.bf16 %v878, %v878
        %v1135 = vpack.c.bf16 %v879, %v879
        %v1136 = vpack.c.bf16 %v880, %v880
        %v1137 = vpack.c.bf16 %v881, %v881
        %v1138 = vpack.c.bf16 %v882, %v882
        %v1139 = vpack.c.bf16 %v883, %v883
        %v1140 = vpack.c.bf16 %v884, %v884
        %v1141 = vpack.c.bf16 %v885, %v885
        %v1142 = vpack.c.bf16 %v886, %v886
        %v1143 = vpack.c.bf16 %v887, %v887
        %v1144 = vpack.c.bf16 %v888, %v888
        %v1145 = vpack.c.bf16 %v889, %v889
        %v1146 = vpack.c.bf16 %v890, %v890
        %v1147 = vpack.c.bf16 %v891, %v891
        %v1148 = vpack.c.bf16 %v892, %v892
        %v1149 = vpack.c.bf16 %v893, %v893
        %v1150 = vpack.c.bf16 %v894, %v894
        %v1151 = vpack.c.bf16 %v895, %v895
        %v1152 = vpack.c.bf16 %v896, %v896
        %v1153 = vpack.c.bf16 %v897, %v897
        %v1154 = vpack.c.bf16 %v898, %v898
        %v1155 = vpack.c.bf16 %v899, %v899
        %v1156 = vpack.c.bf16 %v900, %v900
        %v1157 = vpack.c.bf16 %v901, %v901
        %v1158 = vpack.c.bf16 %v902, %v902
        %v1159 = vpack.c.bf16 %v903, %v903
        %v1160 = vpack.c.bf16 %v904, %v904
        %v1161 = vpack.c.bf16 %v905, %v905
        %v1162 = vpack.c.bf16 %v906, %v906
        %v1163 = vpack.c.bf16 %v907, %v907
        %v1164 = vpack.c.bf16 %v908, %v908
        %v1165 = vpack.c.bf16 %v909, %v909
        %v1166 = vpack.c.bf16 %v910, %v910
        %v1167 = vpack.c.bf16 %v911, %v911
        %v1168 = vpack.c.bf16 %v912, %v912
        %v1169 = vpack.c.bf16 %v913, %v913
        %v1170 = vpack.c.bf16 %v914, %v914
        %v1171 = vpack.c.bf16 %v915, %v915
        %v1172 = vpack.c.bf16 %v916, %v916
        %v1173 = vpack.c.bf16 %v917, %v917
        %v1174 = vpack.c.bf16 %v918, %v918
        %v1175 = vpack.c.bf16 %v919, %v919
        %v1176 = vpack.c.bf16 %v920, %v920
        %v1177 = vpack.c.bf16 %v921, %v921
        %v1178 = vpack.c.bf16 %v922, %v922
        %v1179 = vpack.c.bf16 %v923, %v923
        %v1180 = vpack.c.bf16 %v924, %v924
        %v1181 = vpack.c.bf16 %v925, %v925
        %v1182 = vpack.c.bf16 %v926, %v926
        %v1183 = vpack.c.bf16 %v927, %v927
        %v1184 = vpack.c.bf16 %v928, %v928
        %v1185 = vpack.c.bf16 %v929, %v929
        %v1186 = vpack.c.bf16 %v930, %v930
        %v1187 = vpack.c.bf16 %v931, %v931
        %v1188 = vpack.c.bf16 %v932, %v932
        %v1189 = vpack.c.bf16 %v933, %v933
        %v1190 = vpack.c.bf16 %v934, %v934
        %v1191 = vpack.c.bf16 %v935, %v935
        %v1192 = vpack.c.bf16 %v936, %v936
        %v1193 = vpack.c.bf16 %v937, %v937
        %v1194 = vpack.c.bf16 %v938, %v938
        %v1195 = vpack.c.bf16 %v939, %v939
        %v1196 = vpack.c.bf16 %v940, %v940
        %v1197 = vpack.c.bf16 %v941, %v941
        %v1198 = vpack.c.bf16 %v942, %v942
        %v1199 = vpack.c.bf16 %v943, %v943
        %v1200 = vpack.c.bf16 %v944, %v944
        %v1201 = vpack.c.bf16 %v945, %v945
        %v1202 = vpack.c.bf16 %v946, %v946
        %v1203 = vpack.c.bf16 %v947, %v947
        %v1204 = vpack.c.bf16 %v948, %v948
        %v1205 = vpack.c.bf16 %v949, %v949
        %v1206 = vpack.c.bf16 %v950, %v950
        %v1207 = vpack.c.bf16 %v951, %v951
        %v1208 = vpack.c.bf16 %v952, %v952
        %v1209 = vpack.c.bf16 %v953, %v953
        %v1210 = vpack.c.bf16 %v954, %v954
        %v1211 = vpack.c.bf16 %v955, %v955
        %v1212 = vpack.c.bf16 %v956, %v956
        %v1213 = vpack.c.bf16 %v957, %v957
        %v1214 = vpack.c.bf16 %v958, %v958
        %v1215 = vpack.c.bf16 %v959, %v959
        %v1216 = vpack.c.bf16 %v960, %v960
        %v1217 = vpack.c.bf16 %v961, %v961
        %v1218 = vpack.c.bf16 %v962, %v962
        %v1219 = vpack.c.bf16 %v963, %v963
        %v1220 = vpack.c.bf16 %v964, %v964
        %v1221 = vpack.c.bf16 %v965, %v965
        %v1222 = vpack.c.bf16 %v966, %v966
        %v1223 = vpack.c.bf16 %v967, %v967
        %v1224 = vpack.c.bf16 %v968, %v968
        %v1225 = vpack.c.bf16 %v969, %v969
        %v1226 = vpack.c.bf16 %v970, %v970
        %v1227 = vpack.c.bf16 %v971, %v971
        %v1228 = vpack.c.bf16 %v972, %v972
        %v1229 = vpack.c.bf16 %v973, %v973
        %v1230 = vpack.c.bf16 %v974, %v974
        %v1231 = vpack.c.bf16 %v975, %v975
        %v1232 = vpack.c.bf16 %v976, %v976
        %v1233 = vpack.c.bf16 %v977, %v977
        %v1234 = vpack.c.bf16 %v978, %v978
        %v1235 = vpack.c.bf16 %v979, %v979
        %v1236 = vpack.c.bf16 %v980, %v980
        %v1237 = vpack.c.bf16 %v981, %v981
        %v1238 = vpack.c.bf16 %v982, %v982
        %v1239 = vpack.c.bf16 %v983, %v983
        %v1240 = vpack.c.bf16 %v984, %v984
        %v1241 = vpack.c.bf16 %v985, %v985
        %v1242 = vpack.c.bf16 %v986, %v986
        %v1243 = vpack.c.bf16 %v987, %v987
        %v1244 = vpack.c.bf16 %v988, %v988
        %v1245 = vpack.c.bf16 %v989, %v989
        %v1246 = vpack.c.bf16 %v990, %v990
        %v1247 = vpack.c.bf16 %v991, %v991
        %v1248 = vpack.c.bf16 %v992, %v992
        %v1249 = vpack.c.bf16 %v993, %v993
        %v1250 = vpack.c.bf16 %v994, %v994
        %v1251 = vpack.c.bf16 %v995, %v995
        %v1252 = vpack.c.bf16 %v996, %v996
        %v1253 = vpack.c.bf16 %v997, %v997
        %v1254 = vpack.c.bf16 %v998, %v998
        %v1255 = vpack.c.bf16 %v999, %v999
        %v1256 = vpack.c.bf16 %v1000, %v1000
        %v1257 = vpack.c.bf16 %v1001, %v1001
        %v1258 = vpack.c.bf16 %v1002, %v1002
        %v1259 = vpack.c.bf16 %v1003, %v1003
        %v1260 = vpack.c.bf16 %v1004, %v1004
        %v1261 = vpack.c.bf16 %v1005, %v1005
        %v1262 = vpack.c.bf16 %v1006, %v1006
        %v1263 = vpack.c.bf16 %v1007, %v1007
        %v1264 = vpack.c.bf16 %v1008, %v1008
        %v1265 = vpack.c.bf16 %v1009, %v1009
        %v1266 = vpack.c.bf16 %v1010, %v1010
        %v1267 = vpack.c.bf16 %v1011, %v1011
        %v1268 = vpack.c.bf16 %v1012, %v1012
        %v1269 = vpack.c.bf16 %v1013, %v1013
        %v1270 = vpack.c.bf16 %v1014, %v1014
        %v1271 = vpack.c.bf16 %v1015, %v1015
        %v1272 = vpack.c.bf16 %v1016, %v1016
        %v1273 = vpack.c.bf16 %v1017, %v1017
        %v1274 = vpack.c.bf16 %v1018, %v1018
        %v1275 = vpack.c.bf16 %v1019, %v1019
        %v1276 = vpack.c.bf16 %v1020, %v1020
        %v1277 = vpack.c.bf16 %v1021, %v1021
        %v1278 = vpack.c.bf16 %v1022, %v1022
        %v1279 = vpack.c.bf16 %v1023, %v1023
        %v1280 = vpack.c.bf16 %v1024, %v1024
        %v1281 = vpack.c.bf16 %v1025, %v1025
        %v1282 = vpack.c.bf16 %v1026, %v1026
        %v1283 = vpack.c.bf16 %v1027, %v1027
        %v1284 = vpack.c.bf16 %v1028, %v1028
        %v1285 = vpack.c.bf16 %v1029, %v1029
        %v1286 = vpack.c.bf16 %v1030, %v1030
        %v1287 = vpack.c.bf16 %v1031, %v1031
        %v1288 = vpack.c.bf16 %v1032, %v1032
        %v1289 = vpack.c.bf16 %v1033, %v1033
        %v1290 = vpack.c.bf16 %v1034, %v1034
        %v1291 = vpack.c.bf16 %v1035, %v1035
        %v1292 = vpack.c.bf16 %v1036, %v1036
        %v1293 = vpack.c.bf16 %v1037, %v1037
        %v1294 = vpack.c.bf16 %v1038, %v1038
        %v1295 = vpack.c.bf16 %v1039, %v1039
        %v1296 = vpack.c.bf16 %v1040, %v1040
        %v1297 = vpack.c.bf16 %v1041, %v1041
        %v1298 = vpack.c.bf16 %v1042, %v1042
        %v1299 = vpack.c.bf16 %v1043, %v1043
        %v1300 = vpack.c.bf16 %v1044, %v1044
        %v1301 = vpack.c.bf16 %v1045, %v1045
        %v1302 = vpack.c.bf16 %v1046, %v1046
        %v1303 = vpack.c.bf16 %v1047, %v1047
        %v1304 = vpack.c.bf16 %v1048, %v1048
        %v1305 = vpack.c.bf16 %v1049, %v1049
        %v1306 = vpack.c.bf16 %v1050, %v1050
        %v1307 = vpack.c.bf16 %v1051, %v1051
        %v1308 = vpack.c.bf16 %v1052, %v1052
        %v1309 = vpack.c.bf16 %v1053, %v1053
        %v1310 = vpack.c.bf16 %v1054, %v1054
        %v1311 = vpack.c.bf16 %v1055, %v1055
        %v1312 = vpack.c.bf16 %v1056, %v1056
        %v1313 = vpack.c.bf16 %v1057, %v1057
        %v1314 = vpack.c.bf16 %v1058, %v1058
        %v1315 = vpack.c.bf16 %v1059, %v1059
        %v1316 = vpack.c.bf16 %v1060, %v1060
        %v1317 = vpack.c.bf16 %v1061, %v1061
        %v1318 = vpack.c.bf16 %v1062, %v1062
        %v1319 = vpack.c.bf16 %v1063, %v1063
        %v1320 = vpack.c.bf16 %v1064, %v1064
        %v1321 = vpack.c.bf16 %v1065, %v1065
        %v1322 = vpack.c.bf16 %v1066, %v1066
        %v1323 = vpack.c.bf16 %v1067, %v1067
        %v1324 = vpack.c.bf16 %v1068, %v1068
        %v1325 = vpack.c.bf16 %v1069, %v1069
        %v1326 = vpack.c.bf16 %v1070, %v1070
        %v1327 = vpack.c.bf16 %v1071, %v1071
        %v1328 = vpack.c.bf16 %v1072, %v1072
        %v1329 = vpack.c.bf16 %v1073, %v1073
        %v1330 = vpack.c.bf16 %v1074, %v1074
        %v1331 = vpack.c.bf16 %v1075, %v1075
        %v1332 = vpack.c.bf16 %v1076, %v1076
        %v1333 = vpack.c.bf16 %v1077, %v1077
        %v1334 = vpack.c.bf16 %v1078, %v1078
        %v1335 = vpack.c.bf16 %v1079, %v1079
        %v1336 = vpack.c.bf16 %v1080, %v1080
        %v1337 = vpack.c.bf16 %v1081, %v1081
        %v1338 = vpack.c.bf16 %v1082, %v1082
        %v1339 = vpack.c.bf16 %v1083, %v1083
        %v1340 = vpack.c.bf16 %v1084, %v1084
        %v1341 = vpack.c.bf16 %v1085, %v1085
        %v1342 = vpack.c.bf16 %v1086, %v1086
        %v1343 = vpack.c.bf16 %v1087, %v1087
        %v1344 = vpack.c.bf16 %v1088, %v1088
        %v1345 = vpack.c.bf16 %v1089, %v1089
        %v1346 = vpack.c.bf16 %v1090, %v1090
        %v1347 = vpack.c.bf16 %v1091, %v1091
        %v1348 = vpack.c.bf16 %v1092, %v1092
        %v1349 = vpack.c.bf16 %v1093, %v1093
        %v1350 = vpack.c.bf16 %v1094, %v1094
        %v1351 = vpack.c.bf16 %v1095, %v1095
        %v1352 = vpack.c.bf16 %v1096, %v1096
        %v1353 = vpack.c.bf16 %v1097, %v1097
        %v1354 = vpack.c.bf16 %v1098, %v1098
        %v1355 = vpack.c.bf16 %v1099, %v1099
        %v1356 = vunpack.c.l.bf16 %v1100
        %v1357 = vunpack.c.l.bf16 %v1101
        %v1358 = vunpack.c.l.bf16 %v1102
        %v1359 = vunpack.c.l.bf16 %v1103
        %v1360 = vunpack.c.l.bf16 %v1104
        %v1361 = vunpack.c.l.bf16 %v1105
        %v1362 = vunpack.c.l.bf16 %v1106
        %v1363 = vunpack.c.l.bf16 %v1107
        %v1364 = vunpack.c.l.bf16 %v1108
        %v1365 = vunpack.c.l.bf16 %v1109
        %v1366 = vunpack.c.l.bf16 %v1110
        %v1367 = vunpack.c.l.bf16 %v1111
        %v1368 = vunpack.c.l.bf16 %v1112
        %v1369 = vunpack.c.l.bf16 %v1113
        %v1370 = vunpack.c.l.bf16 %v1114
        %v1371 = vunpack.c.l.bf16 %v1115
        %v1372 = vunpack.c.l.bf16 %v1116
        %v1373 = vunpack.c.l.bf16 %v1117
        %v1374 = vunpack.c.l.bf16 %v1118
        %v1375 = vunpack.c.l.bf16 %v1119
        %v1376 = vunpack.c.l.bf16 %v1120
        %v1377 = vunpack.c.l.bf16 %v1121
        %v1378 = vunpack.c.l.bf16 %v1122
        %v1379 = vunpack.c.l.bf16 %v1123
        %v1380 = vunpack.c.l.bf16 %v1124
        %v1381 = vunpack.c.l.bf16 %v1125
        %v1382 = vunpack.c.l.bf16 %v1126
        %v1383 = vunpack.c.l.bf16 %v1127
        %v1384 = vunpack.c.l.bf16 %v1128
        %v1385 = vunpack.c.l.bf16 %v1129
        %v1386 = vunpack.c.l.bf16 %v1130
        %v1387 = vunpack.c.l.bf16 %v1131
        %v1388 = vunpack.c.l.bf16 %v1132
        %v1389 = vunpack.c.l.bf16 %v1133
        %v1390 = vunpack.c.l.bf16 %v1134
        %v1391 = vunpack.c.l.bf16 %v1135
        %v1392 = vunpack.c.l.bf16 %v1136
        %v1393 = vunpack.c.l.bf16 %v1137
        %v1394 = vunpack.c.l.bf16 %v1138
        %v1395 = vunpack.c.l.bf16 %v1139
        %v1396 = vunpack.c.l.bf16 %v1140
        %v1397 = vunpack.c.l.bf16 %v1141
        %v1398 = vunpack.c.l.bf16 %v1142
        %v1399 = vunpack.c.l.bf16 %v1143
        %v1400 = vunpack.c.l.bf16 %v1144
        %v1401 = vunpack.c.l.bf16 %v1145
        %v1402 = vunpack.c.l.bf16 %v1146
        %v1403 = vunpack.c.l.bf16 %v1147
        %v1404 = vunpack.c.l.bf16 %v1148
        %v1405 = vunpack.c.l.bf16 %v1149
        %v1406 = vunpack.c.l.bf16 %v1150
        %v1407 = vunpack.c.l.bf16 %v1151
        %v1408 = vunpack.c.l.bf16 %v1152
        %v1409 = vunpack.c.l.bf16 %v1153
        %v1410 = vunpack.c.l.bf16 %v1154
        %v1411 = vunpack.c.l.bf16 %v1155
        %v1412 = vunpack.c.l.bf16 %v1156
        %v1413 = vunpack.c.l.bf16 %v1157
        %v1414 = vunpack.c.l.bf16 %v1158
        %v1415 = vunpack.c.l.bf16 %v1159
        %v1416 = vunpack.c.l.bf16 %v1160
        %v1417 = vunpack.c.l.bf16 %v1161
        %v1418 = vunpack.c.l.bf16 %v1162
        %v1419 = vunpack.c.l.bf16 %v1163
        %v1420 = vunpack.c.l.bf16 %v1164
        %v1421 = vunpack.c.l.bf16 %v1165
        %v1422 = vunpack.c.l.bf16 %v1166
        %v1423 = vunpack.c.l.bf16 %v1167
        %v1424 = vunpack.c.l.bf16 %v1168
        %v1425 = vunpack.c.l.bf16 %v1169
        %v1426 = vunpack.c.l.bf16 %v1170
        %v1427 = vunpack.c.l.bf16 %v1171
        %v1428 = vunpack.c.l.bf16 %v1172
        %v1429 = vunpack.c.l.bf16 %v1173
        %v1430 = vunpack.c.l.bf16 %v1174
        %v1431 = vunpack.c.l.bf16 %v1175
        %v1432 = vunpack.c.l.bf16 %v1176
        %v1433 = vunpack.c.l.bf16 %v1177
        %v1434 = vunpack.c.l.bf16 %v1178
        %v1435 = vunpack.c.l.bf16 %v1179
        %v1436 = vunpack.c.l.bf16 %v1180
        %v1437 = vunpack.c.l.bf16 %v1181
        %v1438 = vunpack.c.l.bf16 %v1182
        %v1439 = vunpack.c.l.bf16 %v1183
        %v1440 = vunpack.c.l.bf16 %v1184
        %v1441 = vunpack.c.l.bf16 %v1185
        %v1442 = vunpack.c.l.bf16 %v1186
        %v1443 = vunpack.c.l.bf16 %v1187
        %v1444 = vunpack.c.l.bf16 %v1188
        %v1445 = vunpack.c.l.bf16 %v1189
        %v1446 = vunpack.c.l.bf16 %v1190
        %v1447 = vunpack.c.l.bf16 %v1191
        %v1448 = vunpack.c.l.bf16 %v1192
        %v1449 = vunpack.c.l.bf16 %v1193
        %v1450 = vunpack.c.l.bf16 %v1194
        %v1451 = vunpack.c.l.bf16 %v1195
        %v1452 = vunpack.c.l.bf16 %v1196
        %v1453 = vunpack.c.l.bf16 %v1197
        %v1454 = vunpack.c.l.bf16 %v1198
        %v1455 = vunpack.c.l.bf16 %v1199
        %v1456 = vunpack.c.l.bf16 %v1200
        %v1457 = vunpack.c.l.bf16 %v1201
        %v1458 = vunpack.c.l.bf16 %v1202
        %v1459 = vunpack.c.l.bf16 %v1203
        %v1460 = vunpack.c.l.bf16 %v1204
        %v1461 = vunpack.c.l.bf16 %v1205
        %v1462 = vunpack.c.l.bf16 %v1206
        %v1463 = vunpack.c.l.bf16 %v1207
        %v1464 = vunpack.c.l.bf16 %v1208
        %v1465 = vunpack.c.l.bf16 %v1209
        %v1466 = vunpack.c.l.bf16 %v1210
        %v1467 = vunpack.c.l.bf16 %v1211
        %v1468 = vunpack.c.l.bf16 %v1212
        %v1469 = vunpack.c.l.bf16 %v1213
        %v1470 = vunpack.c.l.bf16 %v1214
        %v1471 = vunpack.c.l.bf16 %v1215
        %v1472 = vunpack.c.l.bf16 %v1216
        %v1473 = vunpack.c.l.bf16 %v1217
        %v1474 = vunpack.c.l.bf16 %v1218
        %v1475 = vunpack.c.l.bf16 %v1219
        %v1476 = vunpack.c.l.bf16 %v1220
        %v1477 = vunpack.c.l.bf16 %v1221
        %v1478 = vunpack.c.l.bf16 %v1222
        %v1479 = vunpack.c.l.bf16 %v1223
        %v1480 = vunpack.c.l.bf16 %v1224
        %v1481 = vunpack.c.l.bf16 %v1225
        %v1482 = vunpack.c.l.bf16 %v1226
        %v1483 = vunpack.c.l.bf16 %v1227
        %v1484 = vunpack.c.l.bf16 %v1228
        %v1485 = vunpack.c.l.bf16 %v1229
        %v1486 = vunpack.c.l.bf16 %v1230
        %v1487 = vunpack.c.l.bf16 %v1231
        %v1488 = vunpack.c.l.bf16 %v1232
        %v1489 = vunpack.c.l.bf16 %v1233
        %v1490 = vunpack.c.l.bf16 %v1234
        %v1491 = vunpack.c.l.bf16 %v1235
        %v1492 = vunpack.c.l.bf16 %v1236
        %v1493 = vunpack.c.l.bf16 %v1237
        %v1494 = vunpack.c.l.bf16 %v1238
        %v1495 = vunpack.c.l.bf16 %v1239
        %v1496 = vunpack.c.l.bf16 %v1240
        %v1497 = vunpack.c.l.bf16 %v1241
        %v1498 = vunpack.c.l.bf16 %v1242
        %v1499 = vunpack.c.l.bf16 %v1243
        %v1500 = vunpack.c.l.bf16 %v1244
        %v1501 = vunpack.c.l.bf16 %v1245
        %v1502 = vunpack.c.l.bf16 %v1246
        %v1503 = vunpack.c.l.bf16 %v1247
        %v1504 = vunpack.c.l.bf16 %v1248
        %v1505 = vunpack.c.l.bf16 %v1249
        %v1506 = vunpack.c.l.bf16 %v1250
        %v1507 = vunpack.c.l.bf16 %v1251
        %v1508 = vunpack.c.l.bf16 %v1252
        %v1509 = vunpack.c.l.bf16 %v1253
        %v1510 = vunpack.c.l.bf16 %v1254
        %v1511 = vunpack.c.l.bf16 %v1255
        %v1512 = vunpack.c.l.bf16 %v1256
        %v1513 = vunpack.c.l.bf16 %v1257
        %v1514 = vunpack.c.l.bf16 %v1258
        %v1515 = vunpack.c.l.bf16 %v1259
        %v1516 = vunpack.c.l.bf16 %v1260
        %v1517 = vunpack.c.l.bf16 %v1261
        %v1518 = vunpack.c.l.bf16 %v1262
        %v1519 = vunpack.c.l.bf16 %v1263
        %v1520 = vunpack.c.l.bf16 %v1264
        %v1521 = vunpack.c.l.bf16 %v1265
        %v1522 = vunpack.c.l.bf16 %v1266
        %v1523 = vunpack.c.l.bf16 %v1267
        %v1524 = vunpack.c.l.bf16 %v1268
        %v1525 = vunpack.c.l.bf16 %v1269
        %v1526 = vunpack.c.l.bf16 %v1270
        %v1527 = vunpack.c.l.bf16 %v1271
        %v1528 = vunpack.c.l.bf16 %v1272
        %v1529 = vunpack.c.l.bf16 %v1273
        %v1530 = vunpack.c.l.bf16 %v1274
        %v1531 = vunpack.c.l.bf16 %v1275
        %v1532 = vunpack.c.l.bf16 %v1276
        %v1533 = vunpack.c.l.bf16 %v1277
        %v1534 = vunpack.c.l.bf16 %v1278
        %v1535 = vunpack.c.l.bf16 %v1279
        %v1536 = vunpack.c.l.bf16 %v1280
        %v1537 = vunpack.c.l.bf16 %v1281
        %v1538 = vunpack.c.l.bf16 %v1282
        %v1539 = vunpack.c.l.bf16 %v1283
        %v1540 = vunpack.c.l.bf16 %v1284
        %v1541 = vunpack.c.l.bf16 %v1285
        %v1542 = vunpack.c.l.bf16 %v1286
        %v1543 = vunpack.c.l.bf16 %v1287
        %v1544 = vunpack.c.l.bf16 %v1288
        %v1545 = vunpack.c.l.bf16 %v1289
        %v1546 = vunpack.c.l.bf16 %v1290
        %v1547 = vunpack.c.l.bf16 %v1291
        %v1548 = vunpack.c.l.bf16 %v1292
        %v1549 = vunpack.c.l.bf16 %v1293
        %v1550 = vunpack.c.l.bf16 %v1294
        %v1551 = vunpack.c.l.bf16 %v1295
        %v1552 = vunpack.c.l.bf16 %v1296
        %v1553 = vunpack.c.l.bf16 %v1297
        %v1554 = vunpack.c.l.bf16 %v1298
        %v1555 = vunpack.c.l.bf16 %v1299
        %v1556 = vunpack.c.l.bf16 %v1300
        %v1557 = vunpack.c.l.bf16 %v1301
        %v1558 = vunpack.c.l.bf16 %v1302
        %v1559 = vunpack.c.l.bf16 %v1303
        %v1560 = vunpack.c.l.bf16 %v1304
        %v1561 = vunpack.c.l.bf16 %v1305
        %v1562 = vunpack.c.l.bf16 %v1306
        %v1563 = vunpack.c.l.bf16 %v1307
        %v1564 = vunpack.c.l.bf16 %v1308
        %v1565 = vunpack.c.l.bf16 %v1309
        %v1566 = vunpack.c.l.bf16 %v1310
        %v1567 = vunpack.c.l.bf16 %v1311
        %v1568 = vunpack.c.l.bf16 %v1312
        %v1569 = vunpack.c.l.bf16 %v1313
        %v1570 = vunpack.c.l.bf16 %v1314
        %v1571 = vunpack.c.l.bf16 %v1315
        %v1572 = vunpack.c.l.bf16 %v1316
        %v1573 = vunpack.c.l.bf16 %v1317
        %v1574 = vunpack.c.l.bf16 %v1318
        %v1575 = vunpack.c.l.bf16 %v1319
        %v1576 = vunpack.c.l.bf16 %v1320
        %v1577 = vunpack.c.l.bf16 %v1321
        %v1578 = vunpack.c.l.bf16 %v1322
        %v1579 = vunpack.c.l.bf16 %v1323
        %v1580 = vunpack.c.l.bf16 %v1324
        %v1581 = vunpack.c.l.bf16 %v1325
        %v1582 = vunpack.c.l.bf16 %v1326
        %v1583 = vunpack.c.l.bf16 %v1327
        %v1584 = vunpack.c.l.bf16 %v1328
        %v1585 = vunpack.c.l.bf16 %v1329
        %v1586 = vunpack.c.l.bf16 %v1330
        %v1587 = vunpack.c.l.bf16 %v1331
        %v1588 = vunpack.c.l.bf16 %v1332
        %v1589 = vunpack.c.l.bf16 %v1333
        %v1590 = vunpack.c.l.bf16 %v1334
        %v1591 = vunpack.c.l.bf16 %v1335
        %v1592 = vunpack.c.l.bf16 %v1336
        %v1593 = vunpack.c.l.bf16 %v1337
        %v1594 = vunpack.c.l.bf16 %v1338
        %v1595 = vunpack.c.l.bf16 %v1339
        %v1596 = vunpack.c.l.bf16 %v1340
        %v1597 = vunpack.c.l.bf16 %v1341
        %v1598 = vunpack.c.l.bf16 %v1342
        %v1599 = vunpack.c.l.bf16 %v1343
        %v1600 = vunpack.c.l.bf16 %v1344
        %v1601 = vunpack.c.l.bf16 %v1345
        %v1602 = vunpack.c.l.bf16 %v1346
        %v1603 = vunpack.c.l.bf16 %v1347
        %v1604 = vunpack.c.l.bf16 %v1348
        %v1605 = vunpack.c.l.bf16 %v1349
        %v1606 = vunpack.c.l.bf16 %v1350
        %v1607 = vunpack.c.l.bf16 %v1351
        %v1608 = vunpack.c.l.bf16 %v1352
        %v1609 = vunpack.c.l.bf16 %v1353
        %v1610 = vunpack.c.l.bf16 %v1354
        %v1611 = vunpack.c.l.bf16 %v1355
        %v1612 = vmax.f32 %v1356, 0.0
        %v1613 = vmax.f32 %v1357, 0.0
        %v1614 = vmax.f32 %v1358, 0.0
        %v1615 = vmax.f32 %v1359, 0.0
        %v1616 = vmax.f32 %v1360, 0.0
        %v1617 = vmax.f32 %v1361, 0.0
        %v1618 = vmax.f32 %v1362, 0.0
        %v1619 = vmax.f32 %v1363, 0.0
        %v1620 = vmax.f32 %v1364, 0.0
        %v1621 = vmax.f32 %v1365, 0.0
        %v1622 = vmax.f32 %v1366, 0.0
        %v1623 = vmax.f32 %v1367, 0.0
        %v1624 = vmax.f32 %v1368, 0.0
        %v1625 = vmax.f32 %v1369, 0.0
        %v1626 = vmax.f32 %v1370, 0.0
        %v1627 = vmax.f32 %v1371, 0.0
        %v1628 = vmax.f32 %v1372, 0.0
        %v1629 = vmax.f32 %v1373, 0.0
        %v1630 = vmax.f32 %v1374, 0.0
        %v1631 = vmax.f32 %v1375, 0.0
        %v1632 = vmax.f32 %v1376, 0.0
        %v1633 = vmax.f32 %v1377, 0.0
        %v1634 = vmax.f32 %v1378, 0.0
        %v1635 = vmax.f32 %v1379, 0.0
        %v1636 = vmax.f32 %v1380, 0.0
        %v1637 = vmax.f32 %v1381, 0.0
        %v1638 = vmax.f32 %v1382, 0.0
        %v1639 = vmax.f32 %v1383, 0.0
        %v1640 = vmax.f32 %v1384, 0.0
        %v1641 = vmax.f32 %v1385, 0.0
        %v1642 = vmax.f32 %v1386, 0.0
        %v1643 = vmax.f32 %v1387, 0.0
        %v1644 = vmax.f32 %v1388, 0.0
        %v1645 = vmax.f32 %v1389, 0.0
        %v1646 = vmax.f32 %v1390, 0.0
        %v1647 = vmax.f32 %v1391, 0.0
        %v1648 = vmax.f32 %v1392, 0.0
        %v1649 = vmax.f32 %v1393, 0.0
        %v1650 = vmax.f32 %v1394, 0.0
        %v1651 = vmax.f32 %v1395, 0.0
        %v1652 = vmax.f32 %v1396, 0.0
        %v1653 = vmax.f32 %v1397, 0.0
        %v1654 = vmax.f32 %v1398, 0.0
        %v1655 = vmax.f32 %v1399, 0.0
        %v1656 = vmax.f32 %v1400, 0.0
        %v1657 = vmax.f32 %v1401, 0.0
        %v1658 = vmax.f32 %v1402, 0.0
        %v1659 = vmax.f32 %v1403, 0.0
        %v1660 = vmax.f32 %v1404, 0.0
        %v1661 = vmax.f32 %v1405, 0.0
        %v1662 = vmax.f32 %v1406, 0.0
        %v1663 = vmax.f32 %v1407, 0.0
        %v1664 = vmax.f32 %v1408, 0.0
        %v1665 = vmax.f32 %v1409, 0.0
        %v1666 = vmax.f32 %v1410, 0.0
        %v1667 = vmax.f32 %v1411, 0.0
        %v1668 = vmax.f32 %v1412, 0.0
        %v1669 = vmax.f32 %v1413, 0.0
        %v1670 = vmax.f32 %v1414, 0.0
        %v1671 = vmax.f32 %v1415, 0.0
        %v1672 = vmax.f32 %v1416, 0.0
        %v1673 = vmax.f32 %v1417, 0.0
        %v1674 = vmax.f32 %v1418, 0.0
        %v1675 = vmax.f32 %v1419, 0.0
        %v1676 = vmax.f32 %v1420, 0.0
        %v1677 = vmax.f32 %v1421, 0.0
        %v1678 = vmax.f32 %v1422, 0.0
        %v1679 = vmax.f32 %v1423, 0.0
        %v1680 = vmax.f32 %v1424, 0.0
        %v1681 = vmax.f32 %v1425, 0.0
        %v1682 = vmax.f32 %v1426, 0.0
        %v1683 = vmax.f32 %v1427, 0.0
        %v1684 = vmax.f32 %v1428, 0.0
        %v1685 = vmax.f32 %v1429, 0.0
        %v1686 = vmax.f32 %v1430, 0.0
        %v1687 = vmax.f32 %v1431, 0.0
        %v1688 = vmax.f32 %v1432, 0.0
        %v1689 = vmax.f32 %v1433, 0.0
        %v1690 = vmax.f32 %v1434, 0.0
        %v1691 = vmax.f32 %v1435, 0.0
        %v1692 = vmax.f32 %v1436, 0.0
        %v1693 = vmax.f32 %v1437, 0.0
        %v1694 = vmax.f32 %v1438, 0.0
        %v1695 = vmax.f32 %v1439, 0.0
        %v1696 = vmax.f32 %v1440, 0.0
        %v1697 = vmax.f32 %v1441, 0.0
        %v1698 = vmax.f32 %v1442, 0.0
        %v1699 = vmax.f32 %v1443, 0.0
        %v1700 = vmax.f32 %v1444, 0.0
        %v1701 = vmax.f32 %v1445, 0.0
        %v1702 = vmax.f32 %v1446, 0.0
        %v1703 = vmax.f32 %v1447, 0.0
        %v1704 = vmax.f32 %v1448, 0.0
        %v1705 = vmax.f32 %v1449, 0.0
        %v1706 = vmax.f32 %v1450, 0.0
        %v1707 = vmax.f32 %v1451, 0.0
        %v1708 = vmax.f32 %v1452, 0.0
        %v1709 = vmax.f32 %v1453, 0.0
        %v1710 = vmax.f32 %v1454, 0.0
        %v1711 = vmax.f32 %v1455, 0.0
        %v1712 = vmax.f32 %v1456, 0.0
        %v1713 = vmax.f32 %v1457, 0.0
        %v1714 = vmax.f32 %v1458, 0.0
        %v1715 = vmax.f32 %v1459, 0.0
        %v1716 = vmax.f32 %v1460, 0.0
        %v1717 = vmax.f32 %v1461, 0.0
        %v1718 = vmax.f32 %v1462, 0.0
        %v1719 = vmax.f32 %v1463, 0.0
        %v1720 = vmax.f32 %v1464, 0.0
        %v1721 = vmax.f32 %v1465, 0.0
        %v1722 = vmax.f32 %v1466, 0.0
        %v1723 = vmax.f32 %v1467, 0.0
        %v1724 = vmax.f32 %v1468, 0.0
        %v1725 = vmax.f32 %v1469, 0.0
        %v1726 = vmax.f32 %v1470, 0.0
        %v1727 = vmax.f32 %v1471, 0.0
        %v1728 = vmax.f32 %v1472, 0.0
        %v1729 = vmax.f32 %v1473, 0.0
        %v1730 = vmax.f32 %v1474, 0.0
        %v1731 = vmax.f32 %v1475, 0.0
        %v1732 = vmax.f32 %v1476, 0.0
        %v1733 = vmax.f32 %v1477, 0.0
        %v1734 = vmax.f32 %v1478, 0.0
        %v1735 = vmax.f32 %v1479, 0.0
        %v1736 = vmax.f32 %v1480, 0.0
        %v1737 = vmax.f32 %v1481, 0.0
        %v1738 = vmax.f32 %v1482, 0.0
        %v1739 = vmax.f32 %v1483, 0.0
        %v1740 = vmax.f32 %v1484, 0.0
        %v1741 = vmax.f32 %v1485, 0.0
        %v1742 = vmax.f32 %v1486, 0.0
        %v1743 = vmax.f32 %v1487, 0.0
        %v1744 = vmax.f32 %v1488, 0.0
        %v1745 = vmax.f32 %v1489, 0.0
        %v1746 = vmax.f32 %v1490, 0.0
        %v1747 = vmax.f32 %v1491, 0.0
        %v1748 = vmax.f32 %v1492, 0.0
        %v1749 = vmax.f32 %v1493, 0.0
        %v1750 = vmax.f32 %v1494, 0.0
        %v1751 = vmax.f32 %v1495, 0.0
        %v1752 = vmax.f32 %v1496, 0.0
        %v1753 = vmax.f32 %v1497, 0.0
        %v1754 = vmax.f32 %v1498, 0.0
        %v1755 = vmax.f32 %v1499, 0.0
        %v1756 = vmax.f32 %v1500, 0.0
        %v1757 = vmax.f32 %v1501, 0.0
        %v1758 = vmax.f32 %v1502, 0.0
        %v1759 = vmax.f32 %v1503, 0.0
        %v1760 = vmax.f32 %v1504, 0.0
        %v1761 = vmax.f32 %v1505, 0.0
        %v1762 = vmax.f32 %v1506, 0.0
        %v1763 = vmax.f32 %v1507, 0.0
        %v1764 = vmax.f32 %v1508, 0.0
        %v1765 = vmax.f32 %v1509, 0.0
        %v1766 = vmax.f32 %v1510, 0.0
        %v1767 = vmax.f32 %v1511, 0.0
        %v1768 = vmax.f32 %v1512, 0.0
        %v1769 = vmax.f32 %v1513, 0.0
        %v1770 = vmax.f32 %v1514, 0.0
        %v1771 = vmax.f32 %v1515, 0.0
        %v1772 = vmax.f32 %v1516, 0.0
        %v1773 = vmax.f32 %v1517, 0.0
        %v1774 = vmax.f32 %v1518, 0.0
        %v1775 = vmax.f32 %v1519, 0.0
        %v1776 = vmax.f32 %v1520, 0.0
        %v1777 = vmax.f32 %v1521, 0.0
        %v1778 = vmax.f32 %v1522, 0.0
        %v1779 = vmax.f32 %v1523, 0.0
        %v1780 = vmax.f32 %v1524, 0.0
        %v1781 = vmax.f32 %v1525, 0.0
        %v1782 = vmax.f32 %v1526, 0.0
        %v1783 = vmax.f32 %v1527, 0.0
        %v1784 = vmax.f32 %v1528, 0.0
        %v1785 = vmax.f32 %v1529, 0.0
        %v1786 = vmax.f32 %v1530, 0.0
        %v1787 = vmax.f32 %v1531, 0.0
        %v1788 = vmax.f32 %v1532, 0.0
        %v1789 = vmax.f32 %v1533, 0.0
        %v1790 = vmax.f32 %v1534, 0.0
        %v1791 = vmax.f32 %v1535, 0.0
        %v1792 = vmax.f32 %v1536, 0.0
        %v1793 = vmax.f32 %v1537, 0.0
        %v1794 = vmax.f32 %v1538, 0.0
        %v1795 = vmax.f32 %v1539, 0.0
        %v1796 = vmax.f32 %v1540, 0.0
        %v1797 = vmax.f32 %v1541, 0.0
        %v1798 = vmax.f32 %v1542, 0.0
        %v1799 = vmax.f32 %v1543, 0.0
        %v1800 = vmax.f32 %v1544, 0.0
        %v1801 = vmax.f32 %v1545, 0.0
        %v1802 = vmax.f32 %v1546, 0.0
        %v1803 = vmax.f32 %v1547, 0.0
        %v1804 = vmax.f32 %v1548, 0.0
        %v1805 = vmax.f32 %v1549, 0.0
        %v1806 = vmax.f32 %v1550, 0.0
        %v1807 = vmax.f32 %v1551, 0.0
        %v1808 = vmax.f32 %v1552, 0.0
        %v1809 = vmax.f32 %v1553, 0.0
        %v1810 = vmax.f32 %v1554, 0.0
        %v1811 = vmax.f32 %v1555, 0.0
        %v1812 = vmax.f32 %v1556, 0.0
        %v1813 = vmax.f32 %v1557, 0.0
        %v1814 = vmax.f32 %v1558, 0.0
        %v1815 = vmax.f32 %v1559, 0.0
        %v1816 = vmax.f32 %v1560, 0.0
        %v1817 = vmax.f32 %v1561, 0.0
        %v1818 = vmax.f32 %v1562, 0.0
        %v1819 = vmax.f32 %v1563, 0.0
        %v1820 = vmax.f32 %v1564, 0.0
        %v1821 = vmax.f32 %v1565, 0.0
        %v1822 = vmax.f32 %v1566, 0.0
        %v1823 = vmax.f32 %v1567, 0.0
        %v1824 = vmax.f32 %v1568, 0.0
        %v1825 = vmax.f32 %v1569, 0.0
        %v1826 = vmax.f32 %v1570, 0.0
        %v1827 = vmax.f32 %v1571, 0.0
        %v1828 = vmax.f32 %v1572, 0.0
        %v1829 = vmax.f32 %v1573, 0.0
        %v1830 = vmax.f32 %v1574, 0.0
        %v1831 = vmax.f32 %v1575, 0.0
        %v1832 = vmax.f32 %v1576, 0.0
        %v1833 = vmax.f32 %v1577, 0.0
        %v1834 = vmax.f32 %v1578, 0.0
        %v1835 = vmax.f32 %v1579, 0.0
        %v1836 = vmax.f32 %v1580, 0.0
        %v1837 = vmax.f32 %v1581, 0.0
        %v1838 = vmax.f32 %v1582, 0.0
        %v1839 = vmax.f32 %v1583, 0.0
        %v1840 = vmax.f32 %v1584, 0.0
        %v1841 = vmax.f32 %v1585, 0.0
        %v1842 = vmax.f32 %v1586, 0.0
        %v1843 = vmax.f32 %v1587, 0.0
        %v1844 = vmax.f32 %v1588, 0.0
        %v1845 = vmax.f32 %v1589, 0.0
        %v1846 = vmax.f32 %v1590, 0.0
        %v1847 = vmax.f32 %v1591, 0.0
        %v1848 = vmax.f32 %v1592, 0.0
        %v1849 = vmax.f32 %v1593, 0.0
        %v1850 = vmax.f32 %v1594, 0.0
        %v1851 = vmax.f32 %v1595, 0.0
        %v1852 = vmax.f32 %v1596, 0.0
        %v1853 = vmax.f32 %v1597, 0.0
        %v1854 = vmax.f32 %v1598, 0.0
        %v1855 = vmax.f32 %v1599, 0.0
        %v1856 = vmax.f32 %v1600, 0.0
        %v1857 = vmax.f32 %v1601, 0.0
        %v1858 = vmax.f32 %v1602, 0.0
        %v1859 = vmax.f32 %v1603, 0.0
        %v1860 = vmax.f32 %v1604, 0.0
        %v1861 = vmax.f32 %v1605, 0.0
        %v1862 = vmax.f32 %v1606, 0.0
        %v1863 = vmax.f32 %v1607, 0.0
        %v1864 = vmax.f32 %v1608, 0.0
        %v1865 = vmax.f32 %v1609, 0.0
        %v1866 = vmax.f32 %v1610, 0.0
        %v1867 = vmax.f32 %v1611, 0.0
        %v1868 = vpack.c.bf16 %v1612, %v1612
        %v1869 = vpack.c.bf16 %v1613, %v1613
        %v1870 = vpack.c.bf16 %v1614, %v1614
        %v1871 = vpack.c.bf16 %v1615, %v1615
        %v1872 = vpack.c.bf16 %v1616, %v1616
        %v1873 = vpack.c.bf16 %v1617, %v1617
        %v1874 = vpack.c.bf16 %v1618, %v1618
        %v1875 = vpack.c.bf16 %v1619, %v1619
        %v1876 = vpack.c.bf16 %v1620, %v1620
        %v1877 = vpack.c.bf16 %v1621, %v1621
        %v1878 = vpack.c.bf16 %v1622, %v1622
        %v1879 = vpack.c.bf16 %v1623, %v1623
        %v1880 = vpack.c.bf16 %v1624, %v1624
        %v1881 = vpack.c.bf16 %v1625, %v1625
        %v1882 = vpack.c.bf16 %v1626, %v1626
        %v1883 = vpack.c.bf16 %v1627, %v1627
        %v1884 = vpack.c.bf16 %v1628, %v1628
        %v1885 = vpack.c.bf16 %v1629, %v1629
        %v1886 = vpack.c.bf16 %v1630, %v1630
        %v1887 = vpack.c.bf16 %v1631, %v1631
        %v1888 = vpack.c.bf16 %v1632, %v1632
        %v1889 = vpack.c.bf16 %v1633, %v1633
        %v1890 = vpack.c.bf16 %v1634, %v1634
        %v1891 = vpack.c.bf16 %v1635, %v1635
        %v1892 = vpack.c.bf16 %v1636, %v1636
        %v1893 = vpack.c.bf16 %v1637, %v1637
        %v1894 = vpack.c.bf16 %v1638, %v1638
        %v1895 = vpack.c.bf16 %v1639, %v1639
        %v1896 = vpack.c.bf16 %v1640, %v1640
        %v1897 = vpack.c.bf16 %v1641, %v1641
        %v1898 = vpack.c.bf16 %v1642, %v1642
        %v1899 = vpack.c.bf16 %v1643, %v1643
        %v1900 = vpack.c.bf16 %v1644, %v1644
        %v1901 = vpack.c.bf16 %v1645, %v1645
        %v1902 = vpack.c.bf16 %v1646, %v1646
        %v1903 = vpack.c.bf16 %v1647, %v1647
        %v1904 = vpack.c.bf16 %v1648, %v1648
        %v1905 = vpack.c.bf16 %v1649, %v1649
        %v1906 = vpack.c.bf16 %v1650, %v1650
        %v1907 = vpack.c.bf16 %v1651, %v1651
        %v1908 = vpack.c.bf16 %v1652, %v1652
        %v1909 = vpack.c.bf16 %v1653, %v1653
        %v1910 = vpack.c.bf16 %v1654, %v1654
        %v1911 = vpack.c.bf16 %v1655, %v1655
        %v1912 = vpack.c.bf16 %v1656, %v1656
        %v1913 = vpack.c.bf16 %v1657, %v1657
        %v1914 = vpack.c.bf16 %v1658, %v1658
        %v1915 = vpack.c.bf16 %v1659, %v1659
        %v1916 = vpack.c.bf16 %v1660, %v1660
        %v1917 = vpack.c.bf16 %v1661, %v1661
        %v1918 = vpack.c.bf16 %v1662, %v1662
        %v1919 = vpack.c.bf16 %v1663, %v1663
        %v1920 = vpack.c.bf16 %v1664, %v1664
        %v1921 = vpack.c.bf16 %v1665, %v1665
        %v1922 = vpack.c.bf16 %v1666, %v1666
        %v1923 = vpack.c.bf16 %v1667, %v1667
        %v1924 = vpack.c.bf16 %v1668, %v1668
        %v1925 = vpack.c.bf16 %v1669, %v1669
        %v1926 = vpack.c.bf16 %v1670, %v1670
        %v1927 = vpack.c.bf16 %v1671, %v1671
        %v1928 = vpack.c.bf16 %v1672, %v1672
        %v1929 = vpack.c.bf16 %v1673, %v1673
        %v1930 = vpack.c.bf16 %v1674, %v1674
        %v1931 = vpack.c.bf16 %v1675, %v1675
        %v1932 = vpack.c.bf16 %v1676, %v1676
        %v1933 = vpack.c.bf16 %v1677, %v1677
        %v1934 = vpack.c.bf16 %v1678, %v1678
        %v1935 = vpack.c.bf16 %v1679, %v1679
        %v1936 = vpack.c.bf16 %v1680, %v1680
        %v1937 = vpack.c.bf16 %v1681, %v1681
        %v1938 = vpack.c.bf16 %v1682, %v1682
        %v1939 = vpack.c.bf16 %v1683, %v1683
        %v1940 = vpack.c.bf16 %v1684, %v1684
        %v1941 = vpack.c.bf16 %v1685, %v1685
        %v1942 = vpack.c.bf16 %v1686, %v1686
        %v1943 = vpack.c.bf16 %v1687, %v1687
        %v1944 = vpack.c.bf16 %v1688, %v1688
        %v1945 = vpack.c.bf16 %v1689, %v1689
        %v1946 = vpack.c.bf16 %v1690, %v1690
        %v1947 = vpack.c.bf16 %v1691, %v1691
        %v1948 = vpack.c.bf16 %v1692, %v1692
        %v1949 = vpack.c.bf16 %v1693, %v1693
        %v1950 = vpack.c.bf16 %v1694, %v1694
        %v1951 = vpack.c.bf16 %v1695, %v1695
        %v1952 = vpack.c.bf16 %v1696, %v1696
        %v1953 = vpack.c.bf16 %v1697, %v1697
        %v1954 = vpack.c.bf16 %v1698, %v1698
        %v1955 = vpack.c.bf16 %v1699, %v1699
        %v1956 = vpack.c.bf16 %v1700, %v1700
        %v1957 = vpack.c.bf16 %v1701, %v1701
        %v1958 = vpack.c.bf16 %v1702, %v1702
        %v1959 = vpack.c.bf16 %v1703, %v1703
        %v1960 = vpack.c.bf16 %v1704, %v1704
        %v1961 = vpack.c.bf16 %v1705, %v1705
        %v1962 = vpack.c.bf16 %v1706, %v1706
        %v1963 = vpack.c.bf16 %v1707, %v1707
        %v1964 = vpack.c.bf16 %v1708, %v1708
        %v1965 = vpack.c.bf16 %v1709, %v1709
        %v1966 = vpack.c.bf16 %v1710, %v1710
        %v1967 = vpack.c.bf16 %v1711, %v1711
        %v1968 = vpack.c.bf16 %v1712, %v1712
        %v1969 = vpack.c.bf16 %v1713, %v1713
        %v1970 = vpack.c.bf16 %v1714, %v1714
        %v1971 = vpack.c.bf16 %v1715, %v1715
        %v1972 = vpack.c.bf16 %v1716, %v1716
        %v1973 = vpack.c.bf16 %v1717, %v1717
        %v1974 = vpack.c.bf16 %v1718, %v1718
        %v1975 = vpack.c.bf16 %v1719, %v1719
        %v1976 = vpack.c.bf16 %v1720, %v1720
        %v1977 = vpack.c.bf16 %v1721, %v1721
        %v1978 = vpack.c.bf16 %v1722, %v1722
        %v1979 = vpack.c.bf16 %v1723, %v1723
        %v1980 = vpack.c.bf16 %v1724, %v1724
        %v1981 = vpack.c.bf16 %v1725, %v1725
        %v1982 = vpack.c.bf16 %v1726, %v1726
        %v1983 = vpack.c.bf16 %v1727, %v1727
        %v1984 = vpack.c.bf16 %v1728, %v1728
        %v1985 = vpack.c.bf16 %v1729, %v1729
        %v1986 = vpack.c.bf16 %v1730, %v1730
        %v1987 = vpack.c.bf16 %v1731, %v1731
        %v1988 = vpack.c.bf16 %v1732, %v1732
        %v1989 = vpack.c.bf16 %v1733, %v1733
        %v1990 = vpack.c.bf16 %v1734, %v1734
        %v1991 = vpack.c.bf16 %v1735, %v1735
        %v1992 = vpack.c.bf16 %v1736, %v1736
        %v1993 = vpack.c.bf16 %v1737, %v1737
        %v1994 = vpack.c.bf16 %v1738, %v1738
        %v1995 = vpack.c.bf16 %v1739, %v1739
        %v1996 = vpack.c.bf16 %v1740, %v1740
        %v1997 = vpack.c.bf16 %v1741, %v1741
        %v1998 = vpack.c.bf16 %v1742, %v1742
        %v1999 = vpack.c.bf16 %v1743, %v1743
        %v2000 = vpack.c.bf16 %v1744, %v1744
        %v2001 = vpack.c.bf16 %v1745, %v1745
        %v2002 = vpack.c.bf16 %v1746, %v1746
        %v2003 = vpack.c.bf16 %v1747, %v1747
        %v2004 = vpack.c.bf16 %v1748, %v1748
        %v2005 = vpack.c.bf16 %v1749, %v1749
        %v2006 = vpack.c.bf16 %v1750, %v1750
        %v2007 = vpack.c.bf16 %v1751, %v1751
        %v2008 = vpack.c.bf16 %v1752, %v1752
        %v2009 = vpack.c.bf16 %v1753, %v1753
        %v2010 = vpack.c.bf16 %v1754, %v1754
        %v2011 = vpack.c.bf16 %v1755, %v1755
        %v2012 = vpack.c.bf16 %v1756, %v1756
        %v2013 = vpack.c.bf16 %v1757, %v1757
        %v2014 = vpack.c.bf16 %v1758, %v1758
        %v2015 = vpack.c.bf16 %v1759, %v1759
        %v2016 = vpack.c.bf16 %v1760, %v1760
        %v2017 = vpack.c.bf16 %v1761, %v1761
        %v2018 = vpack.c.bf16 %v1762, %v1762
        %v2019 = vpack.c.bf16 %v1763, %v1763
        %v2020 = vpack.c.bf16 %v1764, %v1764
        %v2021 = vpack.c.bf16 %v1765, %v1765
        %v2022 = vpack.c.bf16 %v1766, %v1766
        %v2023 = vpack.c.bf16 %v1767, %v1767
        %v2024 = vpack.c.bf16 %v1768, %v1768
        %v2025 = vpack.c.bf16 %v1769, %v1769
        %v2026 = vpack.c.bf16 %v1770, %v1770
        %v2027 = vpack.c.bf16 %v1771, %v1771
        %v2028 = vpack.c.bf16 %v1772, %v1772
        %v2029 = vpack.c.bf16 %v1773, %v1773
        %v2030 = vpack.c.bf16 %v1774, %v1774
        %v2031 = vpack.c.bf16 %v1775, %v1775
        %v2032 = vpack.c.bf16 %v1776, %v1776
        %v2033 = vpack.c.bf16 %v1777, %v1777
        %v2034 = vpack.c.bf16 %v1778, %v1778
        %v2035 = vpack.c.bf16 %v1779, %v1779
        %v2036 = vpack.c.bf16 %v1780, %v1780
        %v2037 = vpack.c.bf16 %v1781, %v1781
        %v2038 = vpack.c.bf16 %v1782, %v1782
        %v2039 = vpack.c.bf16 %v1783, %v1783
        %v2040 = vpack.c.bf16 %v1784, %v1784
        %v2041 = vpack.c.bf16 %v1785, %v1785
        %v2042 = vpack.c.bf16 %v1786, %v1786
        %v2043 = vpack.c.bf16 %v1787, %v1787
        %v2044 = vpack.c.bf16 %v1788, %v1788
        %v2045 = vpack.c.bf16 %v1789, %v1789
        %v2046 = vpack.c.bf16 %v1790, %v1790
        %v2047 = vpack.c.bf16 %v1791, %v1791
        %v2048 = vpack.c.bf16 %v1792, %v1792
        %v2049 = vpack.c.bf16 %v1793, %v1793
        %v2050 = vpack.c.bf16 %v1794, %v1794
        %v2051 = vpack.c.bf16 %v1795, %v1795
        %v2052 = vpack.c.bf16 %v1796, %v1796
        %v2053 = vpack.c.bf16 %v1797, %v1797
        %v2054 = vpack.c.bf16 %v1798, %v1798
        %v2055 = vpack.c.bf16 %v1799, %v1799
        %v2056 = vpack.c.bf16 %v1800, %v1800
        %v2057 = vpack.c.bf16 %v1801, %v1801
        %v2058 = vpack.c.bf16 %v1802, %v1802
        %v2059 = vpack.c.bf16 %v1803, %v1803
        %v2060 = vpack.c.bf16 %v1804, %v1804
        %v2061 = vpack.c.bf16 %v1805, %v1805
        %v2062 = vpack.c.bf16 %v1806, %v1806
        %v2063 = vpack.c.bf16 %v1807, %v1807
        %v2064 = vpack.c.bf16 %v1808, %v1808
        %v2065 = vpack.c.bf16 %v1809, %v1809
        %v2066 = vpack.c.bf16 %v1810, %v1810
        %v2067 = vpack.c.bf16 %v1811, %v1811
        %v2068 = vpack.c.bf16 %v1812, %v1812
        %v2069 = vpack.c.bf16 %v1813, %v1813
        %v2070 = vpack.c.bf16 %v1814, %v1814
        %v2071 = vpack.c.bf16 %v1815, %v1815
        %v2072 = vpack.c.bf16 %v1816, %v1816
        %v2073 = vpack.c.bf16 %v1817, %v1817
        %v2074 = vpack.c.bf16 %v1818, %v1818
        %v2075 = vpack.c.bf16 %v1819, %v1819
        %v2076 = vpack.c.bf16 %v1820, %v1820
        %v2077 = vpack.c.bf16 %v1821, %v1821
        %v2078 = vpack.c.bf16 %v1822, %v1822
        %v2079 = vpack.c.bf16 %v1823, %v1823
        %v2080 = vpack.c.bf16 %v1824, %v1824
        %v2081 = vpack.c.bf16 %v1825, %v1825
        %v2082 = vpack.c.bf16 %v1826, %v1826
        %v2083 = vpack.c.bf16 %v1827, %v1827
        %v2084 = vpack.c.bf16 %v1828, %v1828
        %v2085 = vpack.c.bf16 %v1829, %v1829
        %v2086 = vpack.c.bf16 %v1830, %v1830
        %v2087 = vpack.c.bf16 %v1831, %v1831
        %v2088 = vpack.c.bf16 %v1832, %v1832
        %v2089 = vpack.c.bf16 %v1833, %v1833
        %v2090 = vpack.c.bf16 %v1834, %v1834
        %v2091 = vpack.c.bf16 %v1835, %v1835
        %v2092 = vpack.c.bf16 %v1836, %v1836
        %v2093 = vpack.c.bf16 %v1837, %v1837
        %v2094 = vpack.c.bf16 %v1838, %v1838
        %v2095 = vpack.c.bf16 %v1839, %v1839
        %v2096 = vpack.c.bf16 %v1840, %v1840
        %v2097 = vpack.c.bf16 %v1841, %v1841
        %v2098 = vpack.c.bf16 %v1842, %v1842
        %v2099 = vpack.c.bf16 %v1843, %v1843
        %v2100 = vpack.c.bf16 %v1844, %v1844
        %v2101 = vpack.c.bf16 %v1845, %v1845
        %v2102 = vpack.c.bf16 %v1846, %v1846
        %v2103 = vpack.c.bf16 %v1847, %v1847
        %v2104 = vpack.c.bf16 %v1848, %v1848
        %v2105 = vpack.c.bf16 %v1849, %v1849
        %v2106 = vpack.c.bf16 %v1850, %v1850
        %v2107 = vpack.c.bf16 %v1851, %v1851
        %v2108 = vpack.c.bf16 %v1852, %v1852
        %v2109 = vpack.c.bf16 %v1853, %v1853
        %v2110 = vpack.c.bf16 %v1854, %v1854
        %v2111 = vpack.c.bf16 %v1855, %v1855
        %v2112 = vpack.c.bf16 %v1856, %v1856
        %v2113 = vpack.c.bf16 %v1857, %v1857
        %v2114 = vpack.c.bf16 %v1858, %v1858
        %v2115 = vpack.c.bf16 %v1859, %v1859
        %v2116 = vpack.c.bf16 %v1860, %v1860
        %v2117 = vpack.c.bf16 %v1861, %v1861
        %v2118 = vpack.c.bf16 %v1862, %v1862
        %v2119 = vpack.c.bf16 %v1863, %v1863
        %v2120 = vpack.c.bf16 %v1864, %v1864
        %v2121 = vpack.c.bf16 %v1865, %v1865
        %v2122 = vpack.c.bf16 %v1866, %v1866
        %v2123 = vpack.c.bf16 %v1867, %v1867
        %v2124 = vld [vmem:[%s7] sm:$0x1]
        %v2126 = vpack.i.b16 %v2124, %v2124
        %v2128 = vperm.slane %v2126, 0
        %v2129 = vunpack.c.l.bf16 %v1868
        %v2130 = vunpack.c.l.bf16 %v1869
        %v2131 = vunpack.c.l.bf16 %v1870
        %v2132 = vunpack.c.l.bf16 %v1871
        %v2133 = vunpack.c.l.bf16 %v1872
        %v2134 = vunpack.c.l.bf16 %v1873
        %v2135 = vunpack.c.l.bf16 %v1874
        %v2136 = vunpack.c.l.bf16 %v1875
        %v2137 = vunpack.c.l.bf16 %v1876
        %v2138 = vunpack.c.l.bf16 %v1877
        %v2139 = vunpack.c.l.bf16 %v1878
        %v2140 = vunpack.c.l.bf16 %v1879
        %v2141 = vunpack.c.l.bf16 %v1880
        %v2142 = vunpack.c.l.bf16 %v1881
        %v2143 = vunpack.c.l.bf16 %v1882
        %v2144 = vunpack.c.l.bf16 %v1883
        %v2145 = vunpack.c.l.bf16 %v1884
        %v2146 = vunpack.c.l.bf16 %v1885
        %v2147 = vunpack.c.l.bf16 %v1886
        %v2148 = vunpack.c.l.bf16 %v1887
        %v2149 = vunpack.c.l.bf16 %v1888
        %v2150 = vunpack.c.l.bf16 %v1889
        %v2151 = vunpack.c.l.bf16 %v1890
        %v2152 = vunpack.c.l.bf16 %v1891
        %v2153 = vunpack.c.l.bf16 %v1892
        %v2154 = vunpack.c.l.bf16 %v1893
        %v2155 = vunpack.c.l.bf16 %v1894
        %v2156 = vunpack.c.l.bf16 %v1895
        %v2157 = vunpack.c.l.bf16 %v1896
        %v2158 = vunpack.c.l.bf16 %v1897
        %v2159 = vunpack.c.l.bf16 %v1898
        %v2160 = vunpack.c.l.bf16 %v1899
        %v2161 = vunpack.c.l.bf16 %v1900
        %v2162 = vunpack.c.l.bf16 %v1901
        %v2163 = vunpack.c.l.bf16 %v1902
        %v2164 = vunpack.c.l.bf16 %v1903
        %v2165 = vunpack.c.l.bf16 %v1904
        %v2166 = vunpack.c.l.bf16 %v1905
        %v2167 = vunpack.c.l.bf16 %v1906
        %v2168 = vunpack.c.l.bf16 %v1907
        %v2169 = vunpack.c.l.bf16 %v1908
        %v2170 = vunpack.c.l.bf16 %v1909
        %v2171 = vunpack.c.l.bf16 %v1910
        %v2172 = vunpack.c.l.bf16 %v1911
        %v2173 = vunpack.c.l.bf16 %v1912
        %v2174 = vunpack.c.l.bf16 %v1913
        %v2175 = vunpack.c.l.bf16 %v1914
        %v2176 = vunpack.c.l.bf16 %v1915
        %v2177 = vunpack.c.l.bf16 %v1916
        %v2178 = vunpack.c.l.bf16 %v1917
        %v2179 = vunpack.c.l.bf16 %v1918
        %v2180 = vunpack.c.l.bf16 %v1919
        %v2181 = vunpack.c.l.bf16 %v1920
        %v2182 = vunpack.c.l.bf16 %v1921
        %v2183 = vunpack.c.l.bf16 %v1922
        %v2184 = vunpack.c.l.bf16 %v1923
        %v2185 = vunpack.c.l.bf16 %v1924
        %v2186 = vunpack.c.l.bf16 %v1925
        %v2187 = vunpack.c.l.bf16 %v1926
        %v2188 = vunpack.c.l.bf16 %v1927
        %v2189 = vunpack.c.l.bf16 %v1928
        %v2190 = vunpack.c.l.bf16 %v1929
        %v2191 = vunpack.c.l.bf16 %v1930
        %v2192 = vunpack.c.l.bf16 %v1931
        %v2193 = vunpack.c.l.bf16 %v1932
        %v2194 = vunpack.c.l.bf16 %v1933
        %v2195 = vunpack.c.l.bf16 %v1934
        %v2196 = vunpack.c.l.bf16 %v1935
        %v2197 = vunpack.c.l.bf16 %v1936
        %v2198 = vunpack.c.l.bf16 %v1937
        %v2199 = vunpack.c.l.bf16 %v1938
        %v2200 = vunpack.c.l.bf16 %v1939
        %v2201 = vunpack.c.l.bf16 %v1940
        %v2202 = vunpack.c.l.bf16 %v1941
        %v2203 = vunpack.c.l.bf16 %v1942
        %v2204 = vunpack.c.l.bf16 %v1943
        %v2205 = vunpack.c.l.bf16 %v1944
        %v2206 = vunpack.c.l.bf16 %v1945
        %v2207 = vunpack.c.l.bf16 %v1946
        %v2208 = vunpack.c.l.bf16 %v1947
        %v2209 = vunpack.c.l.bf16 %v1948
        %v2210 = vunpack.c.l.bf16 %v1949
        %v2211 = vunpack.c.l.bf16 %v1950
        %v2212 = vunpack.c.l.bf16 %v1951
        %v2213 = vunpack.c.l.bf16 %v1952
        %v2214 = vunpack.c.l.bf16 %v1953
        %v2215 = vunpack.c.l.bf16 %v1954
        %v2216 = vunpack.c.l.bf16 %v1955
        %v2217 = vunpack.c.l.bf16 %v1956
        %v2218 = vunpack.c.l.bf16 %v1957
        %v2219 = vunpack.c.l.bf16 %v1958
        %v2220 = vunpack.c.l.bf16 %v1959
        %v2221 = vunpack.c.l.bf16 %v1960
        %v2222 = vunpack.c.l.bf16 %v1961
        %v2223 = vunpack.c.l.bf16 %v1962
        %v2224 = vunpack.c.l.bf16 %v1963
        %v2225 = vunpack.c.l.bf16 %v1964
        %v2226 = vunpack.c.l.bf16 %v1965
        %v2227 = vunpack.c.l.bf16 %v1966
        %v2228 = vunpack.c.l.bf16 %v1967
        %v2229 = vunpack.c.l.bf16 %v1968
        %v2230 = vunpack.c.l.bf16 %v1969
        %v2231 = vunpack.c.l.bf16 %v1970
        %v2232 = vunpack.c.l.bf16 %v1971
        %v2233 = vunpack.c.l.bf16 %v1972
        %v2234 = vunpack.c.l.bf16 %v1973
        %v2235 = vunpack.c.l.bf16 %v1974
        %v2236 = vunpack.c.l.bf16 %v1975
        %v2237 = vunpack.c.l.bf16 %v1976
        %v2238 = vunpack.c.l.bf16 %v1977
        %v2239 = vunpack.c.l.bf16 %v1978
        %v2240 = vunpack.c.l.bf16 %v1979
        %v2241 = vunpack.c.l.bf16 %v1980
        %v2242 = vunpack.c.l.bf16 %v1981
        %v2243 = vunpack.c.l.bf16 %v1982
        %v2244 = vunpack.c.l.bf16 %v1983
        %v2245 = vunpack.c.l.bf16 %v1984
        %v2246 = vunpack.c.l.bf16 %v1985
        %v2247 = vunpack.c.l.bf16 %v1986
        %v2248 = vunpack.c.l.bf16 %v1987
        %v2249 = vunpack.c.l.bf16 %v1988
        %v2250 = vunpack.c.l.bf16 %v1989
        %v2251 = vunpack.c.l.bf16 %v1990
        %v2252 = vunpack.c.l.bf16 %v1991
        %v2253 = vunpack.c.l.bf16 %v1992
        %v2254 = vunpack.c.l.bf16 %v1993
        %v2255 = vunpack.c.l.bf16 %v1994
        %v2256 = vunpack.c.l.bf16 %v1995
        %v2257 = vunpack.c.l.bf16 %v1996
        %v2258 = vunpack.c.l.bf16 %v1997
        %v2259 = vunpack.c.l.bf16 %v1998
        %v2260 = vunpack.c.l.bf16 %v1999
        %v2261 = vunpack.c.l.bf16 %v2000
        %v2262 = vunpack.c.l.bf16 %v2001
        %v2263 = vunpack.c.l.bf16 %v2002
        %v2264 = vunpack.c.l.bf16 %v2003
        %v2265 = vunpack.c.l.bf16 %v2004
        %v2266 = vunpack.c.l.bf16 %v2005
        %v2267 = vunpack.c.l.bf16 %v2006
        %v2268 = vunpack.c.l.bf16 %v2007
        %v2269 = vunpack.c.l.bf16 %v2008
        %v2270 = vunpack.c.l.bf16 %v2009
        %v2271 = vunpack.c.l.bf16 %v2010
        %v2272 = vunpack.c.l.bf16 %v2011
        %v2273 = vunpack.c.l.bf16 %v2012
        %v2274 = vunpack.c.l.bf16 %v2013
        %v2275 = vunpack.c.l.bf16 %v2014
        %v2276 = vunpack.c.l.bf16 %v2015
        %v2277 = vunpack.c.l.bf16 %v2016
        %v2278 = vunpack.c.l.bf16 %v2017
        %v2279 = vunpack.c.l.bf16 %v2018
        %v2280 = vunpack.c.l.bf16 %v2019
        %v2281 = vunpack.c.l.bf16 %v2020
        %v2282 = vunpack.c.l.bf16 %v2021
        %v2283 = vunpack.c.l.bf16 %v2022
        %v2284 = vunpack.c.l.bf16 %v2023
        %v2285 = vunpack.c.l.bf16 %v2024
        %v2286 = vunpack.c.l.bf16 %v2025
        %v2287 = vunpack.c.l.bf16 %v2026
        %v2288 = vunpack.c.l.bf16 %v2027
        %v2289 = vunpack.c.l.bf16 %v2028
        %v2290 = vunpack.c.l.bf16 %v2029
        %v2291 = vunpack.c.l.bf16 %v2030
        %v2292 = vunpack.c.l.bf16 %v2031
        %v2293 = vunpack.c.l.bf16 %v2032
        %v2294 = vunpack.c.l.bf16 %v2033
        %v2295 = vunpack.c.l.bf16 %v2034
        %v2296 = vunpack.c.l.bf16 %v2035
        %v2297 = vunpack.c.l.bf16 %v2036
        %v2298 = vunpack.c.l.bf16 %v2037
        %v2299 = vunpack.c.l.bf16 %v2038
        %v2300 = vunpack.c.l.bf16 %v2039
        %v2301 = vunpack.c.l.bf16 %v2040
        %v2302 = vunpack.c.l.bf16 %v2041
        %v2303 = vunpack.c.l.bf16 %v2042
        %v2304 = vunpack.c.l.bf16 %v2043
        %v2305 = vunpack.c.l.bf16 %v2044
        %v2306 = vunpack.c.l.bf16 %v2045
        %v2307 = vunpack.c.l.bf16 %v2046
        %v2308 = vunpack.c.l.bf16 %v2047
        %v2309 = vunpack.c.l.bf16 %v2048
        %v2310 = vunpack.c.l.bf16 %v2049
        %v2311 = vunpack.c.l.bf16 %v2050
        %v2312 = vunpack.c.l.bf16 %v2051
        %v2313 = vunpack.c.l.bf16 %v2052
        %v2314 = vunpack.c.l.bf16 %v2053
        %v2315 = vunpack.c.l.bf16 %v2054
        %v2316 = vunpack.c.l.bf16 %v2055
        %v2317 = vunpack.c.l.bf16 %v2056
        %v2318 = vunpack.c.l.bf16 %v2057
        %v2319 = vunpack.c.l.bf16 %v2058
        %v2320 = vunpack.c.l.bf16 %v2059
        %v2321 = vunpack.c.l.bf16 %v2060
        %v2322 = vunpack.c.l.bf16 %v2061
        %v2323 = vunpack.c.l.bf16 %v2062
        %v2324 = vunpack.c.l.bf16 %v2063
        %v2325 = vunpack.c.l.bf16 %v2064
        %v2326 = vunpack.c.l.bf16 %v2065
        %v2327 = vunpack.c.l.bf16 %v2066
        %v2328 = vunpack.c.l.bf16 %v2067
        %v2329 = vunpack.c.l.bf16 %v2068
        %v2330 = vunpack.c.l.bf16 %v2069
        %v2331 = vunpack.c.l.bf16 %v2070
        %v2332 = vunpack.c.l.bf16 %v2071
        %v2333 = vunpack.c.l.bf16 %v2072
        %v2334 = vunpack.c.l.bf16 %v2073
        %v2335 = vunpack.c.l.bf16 %v2074
        %v2336 = vunpack.c.l.bf16 %v2075
        %v2337 = vunpack.c.l.bf16 %v2076
        %v2338 = vunpack.c.l.bf16 %v2077
        %v2339 = vunpack.c.l.bf16 %v2078
        %v2340 = vunpack.c.l.bf16 %v2079
        %v2341 = vunpack.c.l.bf16 %v2080
        %v2342 = vunpack.c.l.bf16 %v2081
        %v2343 = vunpack.c.l.bf16 %v2082
        %v2344 = vunpack.c.l.bf16 %v2083
        %v2345 = vunpack.c.l.bf16 %v2084
        %v2346 = vunpack.c.l.bf16 %v2085
        %v2347 = vunpack.c.l.bf16 %v2086
        %v2348 = vunpack.c.l.bf16 %v2087
        %v2349 = vunpack.c.l.bf16 %v2088
        %v2350 = vunpack.c.l.bf16 %v2089
        %v2351 = vunpack.c.l.bf16 %v2090
        %v2352 = vunpack.c.l.bf16 %v2091
        %v2353 = vunpack.c.l.bf16 %v2092
        %v2354 = vunpack.c.l.bf16 %v2093
        %v2355 = vunpack.c.l.bf16 %v2094
        %v2356 = vunpack.c.l.bf16 %v2095
        %v2357 = vunpack.c.l.bf16 %v2096
        %v2358 = vunpack.c.l.bf16 %v2097
        %v2359 = vunpack.c.l.bf16 %v2098
        %v2360 = vunpack.c.l.bf16 %v2099
        %v2361 = vunpack.c.l.bf16 %v2100
        %v2362 = vunpack.c.l.bf16 %v2101
        %v2363 = vunpack.c.l.bf16 %v2102
        %v2364 = vunpack.c.l.bf16 %v2103
        %v2365 = vunpack.c.l.bf16 %v2104
        %v2366 = vunpack.c.l.bf16 %v2105
        %v2367 = vunpack.c.l.bf16 %v2106
        %v2368 = vunpack.c.l.bf16 %v2107
        %v2369 = vunpack.c.l.bf16 %v2108
        %v2370 = vunpack.c.l.bf16 %v2109
        %v2371 = vunpack.c.l.bf16 %v2110
        %v2372 = vunpack.c.l.bf16 %v2111
        %v2373 = vunpack.c.l.bf16 %v2112
        %v2374 = vunpack.c.l.bf16 %v2113
        %v2375 = vunpack.c.l.bf16 %v2114
        %v2376 = vunpack.c.l.bf16 %v2115
        %v2377 = vunpack.c.l.bf16 %v2116
        %v2378 = vunpack.c.l.bf16 %v2117
        %v2379 = vunpack.c.l.bf16 %v2118
        %v2380 = vunpack.c.l.bf16 %v2119
        %v2381 = vunpack.c.l.bf16 %v2120
        %v2382 = vunpack.c.l.bf16 %v2121
        %v2383 = vunpack.c.l.bf16 %v2122
        %v2384 = vunpack.c.l.bf16 %v2123
        %v2385 = vunpack.c.l.bf16 %v2128
        %v2386 = vmul.f32 %v2129, %v2385
        %v2387 = vmul.f32 %v2130, %v2385
        %v2388 = vmul.f32 %v2131, %v2385
        %v2389 = vmul.f32 %v2132, %v2385
        %v2390 = vmul.f32 %v2133, %v2385
        %v2391 = vmul.f32 %v2134, %v2385
        %v2392 = vmul.f32 %v2135, %v2385
        %v2393 = vmul.f32 %v2136, %v2385
        %v2394 = vmul.f32 %v2137, %v2385
        %v2395 = vmul.f32 %v2138, %v2385
        %v2396 = vmul.f32 %v2139, %v2385
        %v2397 = vmul.f32 %v2140, %v2385
        %v2398 = vmul.f32 %v2141, %v2385
        %v2399 = vmul.f32 %v2142, %v2385
        %v2400 = vmul.f32 %v2143, %v2385
        %v2401 = vmul.f32 %v2144, %v2385
        %v2402 = vmul.f32 %v2145, %v2385
        %v2403 = vmul.f32 %v2146, %v2385
        %v2404 = vmul.f32 %v2147, %v2385
        %v2405 = vmul.f32 %v2148, %v2385
        %v2406 = vmul.f32 %v2149, %v2385
        %v2407 = vmul.f32 %v2150, %v2385
        %v2408 = vmul.f32 %v2151, %v2385
        %v2409 = vmul.f32 %v2152, %v2385
        %v2410 = vmul.f32 %v2153, %v2385
        %v2411 = vmul.f32 %v2154, %v2385
        %v2412 = vmul.f32 %v2155, %v2385
        %v2413 = vmul.f32 %v2156, %v2385
        %v2414 = vmul.f32 %v2157, %v2385
        %v2415 = vmul.f32 %v2158, %v2385
        %v2416 = vmul.f32 %v2159, %v2385
        %v2417 = vmul.f32 %v2160, %v2385
        %v2418 = vmul.f32 %v2161, %v2385
        %v2419 = vmul.f32 %v2162, %v2385
        %v2420 = vmul.f32 %v2163, %v2385
        %v2421 = vmul.f32 %v2164, %v2385
        %v2422 = vmul.f32 %v2165, %v2385
        %v2423 = vmul.f32 %v2166, %v2385
        %v2424 = vmul.f32 %v2167, %v2385
        %v2425 = vmul.f32 %v2168, %v2385
        %v2426 = vmul.f32 %v2169, %v2385
        %v2427 = vmul.f32 %v2170, %v2385
        %v2428 = vmul.f32 %v2171, %v2385
        %v2429 = vmul.f32 %v2172, %v2385
        %v2430 = vmul.f32 %v2173, %v2385
        %v2431 = vmul.f32 %v2174, %v2385
        %v2432 = vmul.f32 %v2175, %v2385
        %v2433 = vmul.f32 %v2176, %v2385
        %v2434 = vmul.f32 %v2177, %v2385
        %v2435 = vmul.f32 %v2178, %v2385
        %v2436 = vmul.f32 %v2179, %v2385
        %v2437 = vmul.f32 %v2180, %v2385
        %v2438 = vmul.f32 %v2181, %v2385
        %v2439 = vmul.f32 %v2182, %v2385
        %v2440 = vmul.f32 %v2183, %v2385
        %v2441 = vmul.f32 %v2184, %v2385
        %v2442 = vmul.f32 %v2185, %v2385
        %v2443 = vmul.f32 %v2186, %v2385
        %v2444 = vmul.f32 %v2187, %v2385
        %v2445 = vmul.f32 %v2188, %v2385
        %v2446 = vmul.f32 %v2189, %v2385
        %v2447 = vmul.f32 %v2190, %v2385
        %v2448 = vmul.f32 %v2191, %v2385
        %v2449 = vmul.f32 %v2192, %v2385
        %v2450 = vmul.f32 %v2193, %v2385
        %v2451 = vmul.f32 %v2194, %v2385
        %v2452 = vmul.f32 %v2195, %v2385
        %v2453 = vmul.f32 %v2196, %v2385
        %v2454 = vmul.f32 %v2197, %v2385
        %v2455 = vmul.f32 %v2198, %v2385
        %v2456 = vmul.f32 %v2199, %v2385
        %v2457 = vmul.f32 %v2200, %v2385
        %v2458 = vmul.f32 %v2201, %v2385
        %v2459 = vmul.f32 %v2202, %v2385
        %v2460 = vmul.f32 %v2203, %v2385
        %v2461 = vmul.f32 %v2204, %v2385
        %v2462 = vmul.f32 %v2205, %v2385
        %v2463 = vmul.f32 %v2206, %v2385
        %v2464 = vmul.f32 %v2207, %v2385
        %v2465 = vmul.f32 %v2208, %v2385
        %v2466 = vmul.f32 %v2209, %v2385
        %v2467 = vmul.f32 %v2210, %v2385
        %v2468 = vmul.f32 %v2211, %v2385
        %v2469 = vmul.f32 %v2212, %v2385
        %v2470 = vmul.f32 %v2213, %v2385
        %v2471 = vmul.f32 %v2214, %v2385
        %v2472 = vmul.f32 %v2215, %v2385
        %v2473 = vmul.f32 %v2216, %v2385
        %v2474 = vmul.f32 %v2217, %v2385
        %v2475 = vmul.f32 %v2218, %v2385
        %v2476 = vmul.f32 %v2219, %v2385
        %v2477 = vmul.f32 %v2220, %v2385
        %v2478 = vmul.f32 %v2221, %v2385
        %v2479 = vmul.f32 %v2222, %v2385
        %v2480 = vmul.f32 %v2223, %v2385
        %v2481 = vmul.f32 %v2224, %v2385
        %v2482 = vmul.f32 %v2225, %v2385
        %v2483 = vmul.f32 %v2226, %v2385
        %v2484 = vmul.f32 %v2227, %v2385
        %v2485 = vmul.f32 %v2228, %v2385
        %v2486 = vmul.f32 %v2229, %v2385
        %v2487 = vmul.f32 %v2230, %v2385
        %v2488 = vmul.f32 %v2231, %v2385
        %v2489 = vmul.f32 %v2232, %v2385
        %v2490 = vmul.f32 %v2233, %v2385
        %v2491 = vmul.f32 %v2234, %v2385
        %v2492 = vmul.f32 %v2235, %v2385
        %v2493 = vmul.f32 %v2236, %v2385
        %v2494 = vmul.f32 %v2237, %v2385
        %v2495 = vmul.f32 %v2238, %v2385
        %v2496 = vmul.f32 %v2239, %v2385
        %v2497 = vmul.f32 %v2240, %v2385
        %v2498 = vmul.f32 %v2241, %v2385
        %v2499 = vmul.f32 %v2242, %v2385
        %v2500 = vmul.f32 %v2243, %v2385
        %v2501 = vmul.f32 %v2244, %v2385
        %v2502 = vmul.f32 %v2245, %v2385
        %v2503 = vmul.f32 %v2246, %v2385
        %v2504 = vmul.f32 %v2247, %v2385
        %v2505 = vmul.f32 %v2248, %v2385
        %v2506 = vmul.f32 %v2249, %v2385
        %v2507 = vmul.f32 %v2250, %v2385
        %v2508 = vmul.f32 %v2251, %v2385
        %v2509 = vmul.f32 %v2252, %v2385
        %v2510 = vmul.f32 %v2253, %v2385
        %v2511 = vmul.f32 %v2254, %v2385
        %v2512 = vmul.f32 %v2255, %v2385
        %v2513 = vmul.f32 %v2256, %v2385
        %v2514 = vmul.f32 %v2257, %v2385
        %v2515 = vmul.f32 %v2258, %v2385
        %v2516 = vmul.f32 %v2259, %v2385
        %v2517 = vmul.f32 %v2260, %v2385
        %v2518 = vmul.f32 %v2261, %v2385
        %v2519 = vmul.f32 %v2262, %v2385
        %v2520 = vmul.f32 %v2263, %v2385
        %v2521 = vmul.f32 %v2264, %v2385
        %v2522 = vmul.f32 %v2265, %v2385
        %v2523 = vmul.f32 %v2266, %v2385
        %v2524 = vmul.f32 %v2267, %v2385
        %v2525 = vmul.f32 %v2268, %v2385
        %v2526 = vmul.f32 %v2269, %v2385
        %v2527 = vmul.f32 %v2270, %v2385
        %v2528 = vmul.f32 %v2271, %v2385
        %v2529 = vmul.f32 %v2272, %v2385
        %v2530 = vmul.f32 %v2273, %v2385
        %v2531 = vmul.f32 %v2274, %v2385
        %v2532 = vmul.f32 %v2275, %v2385
        %v2533 = vmul.f32 %v2276, %v2385
        %v2534 = vmul.f32 %v2277, %v2385
        %v2535 = vmul.f32 %v2278, %v2385
        %v2536 = vmul.f32 %v2279, %v2385
        %v2537 = vmul.f32 %v2280, %v2385
        %v2538 = vmul.f32 %v2281, %v2385
        %v2539 = vmul.f32 %v2282, %v2385
        %v2540 = vmul.f32 %v2283, %v2385
        %v2541 = vmul.f32 %v2284, %v2385
        %v2542 = vmul.f32 %v2285, %v2385
        %v2543 = vmul.f32 %v2286, %v2385
        %v2544 = vmul.f32 %v2287, %v2385
        %v2545 = vmul.f32 %v2288, %v2385
        %v2546 = vmul.f32 %v2289, %v2385
        %v2547 = vmul.f32 %v2290, %v2385
        %v2548 = vmul.f32 %v2291, %v2385
        %v2549 = vmul.f32 %v2292, %v2385
        %v2550 = vmul.f32 %v2293, %v2385
        %v2551 = vmul.f32 %v2294, %v2385
        %v2552 = vmul.f32 %v2295, %v2385
        %v2553 = vmul.f32 %v2296, %v2385
        %v2554 = vmul.f32 %v2297, %v2385
        %v2555 = vmul.f32 %v2298, %v2385
        %v2556 = vmul.f32 %v2299, %v2385
        %v2557 = vmul.f32 %v2300, %v2385
        %v2558 = vmul.f32 %v2301, %v2385
        %v2559 = vmul.f32 %v2302, %v2385
        %v2560 = vmul.f32 %v2303, %v2385
        %v2561 = vmul.f32 %v2304, %v2385
        %v2562 = vmul.f32 %v2305, %v2385
        %v2563 = vmul.f32 %v2306, %v2385
        %v2564 = vmul.f32 %v2307, %v2385
        %v2565 = vmul.f32 %v2308, %v2385
        %v2566 = vmul.f32 %v2309, %v2385
        %v2567 = vmul.f32 %v2310, %v2385
        %v2568 = vmul.f32 %v2311, %v2385
        %v2569 = vmul.f32 %v2312, %v2385
        %v2570 = vmul.f32 %v2313, %v2385
        %v2571 = vmul.f32 %v2314, %v2385
        %v2572 = vmul.f32 %v2315, %v2385
        %v2573 = vmul.f32 %v2316, %v2385
        %v2574 = vmul.f32 %v2317, %v2385
        %v2575 = vmul.f32 %v2318, %v2385
        %v2576 = vmul.f32 %v2319, %v2385
        %v2577 = vmul.f32 %v2320, %v2385
        %v2578 = vmul.f32 %v2321, %v2385
        %v2579 = vmul.f32 %v2322, %v2385
        %v2580 = vmul.f32 %v2323, %v2385
        %v2581 = vmul.f32 %v2324, %v2385
        %v2582 = vmul.f32 %v2325, %v2385
        %v2583 = vmul.f32 %v2326, %v2385
        %v2584 = vmul.f32 %v2327, %v2385
        %v2585 = vmul.f32 %v2328, %v2385
        %v2586 = vmul.f32 %v2329, %v2385
        %v2587 = vmul.f32 %v2330, %v2385
        %v2588 = vmul.f32 %v2331, %v2385
        %v2589 = vmul.f32 %v2332, %v2385
        %v2590 = vmul.f32 %v2333, %v2385
        %v2591 = vmul.f32 %v2334, %v2385
        %v2592 = vmul.f32 %v2335, %v2385
        %v2593 = vmul.f32 %v2336, %v2385
        %v2594 = vmul.f32 %v2337, %v2385
        %v2595 = vmul.f32 %v2338, %v2385
        %v2596 = vmul.f32 %v2339, %v2385
        %v2597 = vmul.f32 %v2340, %v2385
        %v2598 = vmul.f32 %v2341, %v2385
        %v2599 = vmul.f32 %v2342, %v2385
        %v2600 = vmul.f32 %v2343, %v2385
        %v2601 = vmul.f32 %v2344, %v2385
        %v2602 = vmul.f32 %v2345, %v2385
        %v2603 = vmul.f32 %v2346, %v2385
        %v2604 = vmul.f32 %v2347, %v2385
        %v2605 = vmul.f32 %v2348, %v2385
        %v2606 = vmul.f32 %v2349, %v2385
        %v2607 = vmul.f32 %v2350, %v2385
        %v2608 = vmul.f32 %v2351, %v2385
        %v2609 = vmul.f32 %v2352, %v2385
        %v2610 = vmul.f32 %v2353, %v2385
        %v2611 = vmul.f32 %v2354, %v2385
        %v2612 = vmul.f32 %v2355, %v2385
        %v2613 = vmul.f32 %v2356, %v2385
        %v2614 = vmul.f32 %v2357, %v2385
        %v2615 = vmul.f32 %v2358, %v2385
        %v2616 = vmul.f32 %v2359, %v2385
        %v2617 = vmul.f32 %v2360, %v2385
        %v2618 = vmul.f32 %v2361, %v2385
        %v2619 = vmul.f32 %v2362, %v2385
        %v2620 = vmul.f32 %v2363, %v2385
        %v2621 = vmul.f32 %v2364, %v2385
        %v2622 = vmul.f32 %v2365, %v2385
        %v2623 = vmul.f32 %v2366, %v2385
        %v2624 = vmul.f32 %v2367, %v2385
        %v2625 = vmul.f32 %v2368, %v2385
        %v2626 = vmul.f32 %v2369, %v2385
        %v2627 = vmul.f32 %v2370, %v2385
        %v2628 = vmul.f32 %v2371, %v2385
        %v2629 = vmul.f32 %v2372, %v2385
        %v2630 = vmul.f32 %v2373, %v2385
        %v2631 = vmul.f32 %v2374, %v2385
        %v2632 = vmul.f32 %v2375, %v2385
        %v2633 = vmul.f32 %v2376, %v2385
        %v2634 = vmul.f32 %v2377, %v2385
        %v2635 = vmul.f32 %v2378, %v2385
        %v2636 = vmul.f32 %v2379, %v2385
        %v2637 = vmul.f32 %v2380, %v2385
        %v2638 = vmul.f32 %v2381, %v2385
        %v2639 = vmul.f32 %v2382, %v2385
        %v2640 = vmul.f32 %v2383, %v2385
        %v2641 = vmul.f32 %v2384, %v2385
        %v2642 = vpack.c.bf16 %v2387, %v2386
        %v2643 = vpack.c.bf16 %v2389, %v2388
        %v2644 = vpack.c.bf16 %v2391, %v2390
        %v2645 = vpack.c.bf16 %v2393, %v2392
        %v2646 = vpack.c.bf16 %v2395, %v2394
        %v2647 = vpack.c.bf16 %v2397, %v2396
        %v2648 = vpack.c.bf16 %v2399, %v2398
        %v2649 = vpack.c.bf16 %v2401, %v2400
        %v2650 = vpack.c.bf16 %v2403, %v2402
        %v2651 = vpack.c.bf16 %v2405, %v2404
        %v2652 = vpack.c.bf16 %v2407, %v2406
        %v2653 = vpack.c.bf16 %v2409, %v2408
        %v2654 = vpack.c.bf16 %v2411, %v2410
        %v2655 = vpack.c.bf16 %v2413, %v2412
        %v2656 = vpack.c.bf16 %v2415, %v2414
        %v2657 = vpack.c.bf16 %v2417, %v2416
        %v2658 = vpack.c.bf16 %v2419, %v2418
        %v2659 = vpack.c.bf16 %v2421, %v2420
        %v2660 = vpack.c.bf16 %v2423, %v2422
        %v2661 = vpack.c.bf16 %v2425, %v2424
        %v2662 = vpack.c.bf16 %v2427, %v2426
        %v2663 = vpack.c.bf16 %v2429, %v2428
        %v2664 = vpack.c.bf16 %v2431, %v2430
        %v2665 = vpack.c.bf16 %v2433, %v2432
        %v2666 = vpack.c.bf16 %v2435, %v2434
        %v2667 = vpack.c.bf16 %v2437, %v2436
        %v2668 = vpack.c.bf16 %v2439, %v2438
        %v2669 = vpack.c.bf16 %v2441, %v2440
        %v2670 = vpack.c.bf16 %v2443, %v2442
        %v2671 = vpack.c.bf16 %v2445, %v2444
        %v2672 = vpack.c.bf16 %v2447, %v2446
        %v2673 = vpack.c.bf16 %v2449, %v2448
        %v2674 = vpack.c.bf16 %v2451, %v2450
        %v2675 = vpack.c.bf16 %v2453, %v2452
        %v2676 = vpack.c.bf16 %v2455, %v2454
        %v2677 = vpack.c.bf16 %v2457, %v2456
        %v2678 = vpack.c.bf16 %v2459, %v2458
        %v2679 = vpack.c.bf16 %v2461, %v2460
        %v2680 = vpack.c.bf16 %v2463, %v2462
        %v2681 = vpack.c.bf16 %v2465, %v2464
        %v2682 = vpack.c.bf16 %v2467, %v2466
        %v2683 = vpack.c.bf16 %v2469, %v2468
        %v2684 = vpack.c.bf16 %v2471, %v2470
        %v2685 = vpack.c.bf16 %v2473, %v2472
        %v2686 = vpack.c.bf16 %v2475, %v2474
        %v2687 = vpack.c.bf16 %v2477, %v2476
        %v2688 = vpack.c.bf16 %v2479, %v2478
        %v2689 = vpack.c.bf16 %v2481, %v2480
        %v2690 = vpack.c.bf16 %v2483, %v2482
        %v2691 = vpack.c.bf16 %v2485, %v2484
        %v2692 = vpack.c.bf16 %v2487, %v2486
        %v2693 = vpack.c.bf16 %v2489, %v2488
        %v2694 = vpack.c.bf16 %v2491, %v2490
        %v2695 = vpack.c.bf16 %v2493, %v2492
        %v2696 = vpack.c.bf16 %v2495, %v2494
        %v2697 = vpack.c.bf16 %v2497, %v2496
        %v2698 = vpack.c.bf16 %v2499, %v2498
        %v2699 = vpack.c.bf16 %v2501, %v2500
        %v2700 = vpack.c.bf16 %v2503, %v2502
        %v2701 = vpack.c.bf16 %v2505, %v2504
        %v2702 = vpack.c.bf16 %v2507, %v2506
        %v2703 = vpack.c.bf16 %v2509, %v2508
        %v2704 = vpack.c.bf16 %v2511, %v2510
        %v2705 = vpack.c.bf16 %v2513, %v2512
        %v2706 = vpack.c.bf16 %v2515, %v2514
        %v2707 = vpack.c.bf16 %v2517, %v2516
        %v2708 = vpack.c.bf16 %v2519, %v2518
        %v2709 = vpack.c.bf16 %v2521, %v2520
        %v2710 = vpack.c.bf16 %v2523, %v2522
        %v2711 = vpack.c.bf16 %v2525, %v2524
        %v2712 = vpack.c.bf16 %v2527, %v2526
        %v2713 = vpack.c.bf16 %v2529, %v2528
        %v2714 = vpack.c.bf16 %v2531, %v2530
        %v2715 = vpack.c.bf16 %v2533, %v2532
        %v2716 = vpack.c.bf16 %v2535, %v2534
        %v2717 = vpack.c.bf16 %v2537, %v2536
        %v2718 = vpack.c.bf16 %v2539, %v2538
        %v2719 = vpack.c.bf16 %v2541, %v2540
        %v2720 = vpack.c.bf16 %v2543, %v2542
        %v2721 = vpack.c.bf16 %v2545, %v2544
        %v2722 = vpack.c.bf16 %v2547, %v2546
        %v2723 = vpack.c.bf16 %v2549, %v2548
        %v2724 = vpack.c.bf16 %v2551, %v2550
        %v2725 = vpack.c.bf16 %v2553, %v2552
        %v2726 = vpack.c.bf16 %v2555, %v2554
        %v2727 = vpack.c.bf16 %v2557, %v2556
        %v2728 = vpack.c.bf16 %v2559, %v2558
        %v2729 = vpack.c.bf16 %v2561, %v2560
        %v2730 = vpack.c.bf16 %v2563, %v2562
        %v2731 = vpack.c.bf16 %v2565, %v2564
        %v2732 = vpack.c.bf16 %v2567, %v2566
        %v2733 = vpack.c.bf16 %v2569, %v2568
        %v2734 = vpack.c.bf16 %v2571, %v2570
        %v2735 = vpack.c.bf16 %v2573, %v2572
        %v2736 = vpack.c.bf16 %v2575, %v2574
        %v2737 = vpack.c.bf16 %v2577, %v2576
        %v2738 = vpack.c.bf16 %v2579, %v2578
        %v2739 = vpack.c.bf16 %v2581, %v2580
        %v2740 = vpack.c.bf16 %v2583, %v2582
        %v2741 = vpack.c.bf16 %v2585, %v2584
        %v2742 = vpack.c.bf16 %v2587, %v2586
        %v2743 = vpack.c.bf16 %v2589, %v2588
        %v2744 = vpack.c.bf16 %v2591, %v2590
        %v2745 = vpack.c.bf16 %v2593, %v2592
        %v2746 = vpack.c.bf16 %v2595, %v2594
        %v2747 = vpack.c.bf16 %v2597, %v2596
        %v2748 = vpack.c.bf16 %v2599, %v2598
        %v2749 = vpack.c.bf16 %v2601, %v2600
        %v2750 = vpack.c.bf16 %v2603, %v2602
        %v2751 = vpack.c.bf16 %v2605, %v2604
        %v2752 = vpack.c.bf16 %v2607, %v2606
        %v2753 = vpack.c.bf16 %v2609, %v2608
        %v2754 = vpack.c.bf16 %v2611, %v2610
        %v2755 = vpack.c.bf16 %v2613, %v2612
        %v2756 = vpack.c.bf16 %v2615, %v2614
        %v2757 = vpack.c.bf16 %v2617, %v2616
        %v2758 = vpack.c.bf16 %v2619, %v2618
        %v2759 = vpack.c.bf16 %v2621, %v2620
        %v2760 = vpack.c.bf16 %v2623, %v2622
        %v2761 = vpack.c.bf16 %v2625, %v2624
        %v2762 = vpack.c.bf16 %v2627, %v2626
        %v2763 = vpack.c.bf16 %v2629, %v2628
        %v2764 = vpack.c.bf16 %v2631, %v2630
        %v2765 = vpack.c.bf16 %v2633, %v2632
        %v2766 = vpack.c.bf16 %v2635, %v2634
        %v2767 = vpack.c.bf16 %v2637, %v2636
        %v2768 = vpack.c.bf16 %v2639, %v2638
        %v2769 = vpack.c.bf16 %v2641, %v2640
        %v2770 = vunpack.c.l.bf16 %v2642
        %v2771 = vunpack.c.h.bf16 %v2642
        %v2772 = vunpack.c.l.bf16 %v2643
        %v2773 = vunpack.c.h.bf16 %v2643
        %v2774 = vunpack.c.l.bf16 %v2644
        %v2775 = vunpack.c.h.bf16 %v2644
        %v2776 = vunpack.c.l.bf16 %v2645
        %v2777 = vunpack.c.h.bf16 %v2645
        %v2778 = vunpack.c.l.bf16 %v2646
        %v2779 = vunpack.c.h.bf16 %v2646
        %v2780 = vunpack.c.l.bf16 %v2647
        %v2781 = vunpack.c.h.bf16 %v2647
        %v2782 = vunpack.c.l.bf16 %v2648
        %v2783 = vunpack.c.h.bf16 %v2648
        %v2784 = vunpack.c.l.bf16 %v2649
        %v2785 = vunpack.c.h.bf16 %v2649
        %v2786 = vunpack.c.l.bf16 %v2650
        %v2787 = vunpack.c.h.bf16 %v2650
        %v2788 = vunpack.c.l.bf16 %v2651
        %v2789 = vunpack.c.h.bf16 %v2651
        %v2790 = vunpack.c.l.bf16 %v2652
        %v2791 = vunpack.c.h.bf16 %v2652
        %v2792 = vunpack.c.l.bf16 %v2653
        %v2793 = vunpack.c.h.bf16 %v2653
        %v2794 = vunpack.c.l.bf16 %v2654
        %v2795 = vunpack.c.h.bf16 %v2654
        %v2796 = vunpack.c.l.bf16 %v2655
        %v2797 = vunpack.c.h.bf16 %v2655
        %v2798 = vunpack.c.l.bf16 %v2656
        %v2799 = vunpack.c.h.bf16 %v2656
        %v2800 = vunpack.c.l.bf16 %v2657
        %v2801 = vunpack.c.h.bf16 %v2657
        %v2802 = vunpack.c.l.bf16 %v2658
        %v2803 = vunpack.c.h.bf16 %v2658
        %v2804 = vunpack.c.l.bf16 %v2659
        %v2805 = vunpack.c.h.bf16 %v2659
        %v2806 = vunpack.c.l.bf16 %v2660
        %v2807 = vunpack.c.h.bf16 %v2660
        %v2808 = vunpack.c.l.bf16 %v2661
        %v2809 = vunpack.c.h.bf16 %v2661
        %v2810 = vunpack.c.l.bf16 %v2662
        %v2811 = vunpack.c.h.bf16 %v2662
        %v2812 = vunpack.c.l.bf16 %v2663
        %v2813 = vunpack.c.h.bf16 %v2663
        %v2814 = vunpack.c.l.bf16 %v2664
        %v2815 = vunpack.c.h.bf16 %v2664
        %v2816 = vunpack.c.l.bf16 %v2665
        %v2817 = vunpack.c.h.bf16 %v2665
        %v2818 = vunpack.c.l.bf16 %v2666
        %v2819 = vunpack.c.h.bf16 %v2666
        %v2820 = vunpack.c.l.bf16 %v2667
        %v2821 = vunpack.c.h.bf16 %v2667
        %v2822 = vunpack.c.l.bf16 %v2668
        %v2823 = vunpack.c.h.bf16 %v2668
        %v2824 = vunpack.c.l.bf16 %v2669
        %v2825 = vunpack.c.h.bf16 %v2669
        %v2826 = vunpack.c.l.bf16 %v2670
        %v2827 = vunpack.c.h.bf16 %v2670
        %v2828 = vunpack.c.l.bf16 %v2671
        %v2829 = vunpack.c.h.bf16 %v2671
        %v2830 = vunpack.c.l.bf16 %v2672
        %v2831 = vunpack.c.h.bf16 %v2672
        %v2832 = vunpack.c.l.bf16 %v2673
        %v2833 = vunpack.c.h.bf16 %v2673
        %v2834 = vunpack.c.l.bf16 %v2674
        %v2835 = vunpack.c.h.bf16 %v2674
        %v2836 = vunpack.c.l.bf16 %v2675
        %v2837 = vunpack.c.h.bf16 %v2675
        %v2838 = vunpack.c.l.bf16 %v2676
        %v2839 = vunpack.c.h.bf16 %v2676
        %v2840 = vunpack.c.l.bf16 %v2677
        %v2841 = vunpack.c.h.bf16 %v2677
        %v2842 = vunpack.c.l.bf16 %v2678
        %v2843 = vunpack.c.h.bf16 %v2678
        %v2844 = vunpack.c.l.bf16 %v2679
        %v2845 = vunpack.c.h.bf16 %v2679
        %v2846 = vunpack.c.l.bf16 %v2680
        %v2847 = vunpack.c.h.bf16 %v2680
        %v2848 = vunpack.c.l.bf16 %v2681
        %v2849 = vunpack.c.h.bf16 %v2681
        %v2850 = vunpack.c.l.bf16 %v2682
        %v2851 = vunpack.c.h.bf16 %v2682
        %v2852 = vunpack.c.l.bf16 %v2683
        %v2853 = vunpack.c.h.bf16 %v2683
        %v2854 = vunpack.c.l.bf16 %v2684
        %v2855 = vunpack.c.h.bf16 %v2684
        %v2856 = vunpack.c.l.bf16 %v2685
        %v2857 = vunpack.c.h.bf16 %v2685
        %v2858 = vunpack.c.l.bf16 %v2686
        %v2859 = vunpack.c.h.bf16 %v2686
        %v2860 = vunpack.c.l.bf16 %v2687
        %v2861 = vunpack.c.h.bf16 %v2687
        %v2862 = vunpack.c.l.bf16 %v2688
        %v2863 = vunpack.c.h.bf16 %v2688
        %v2864 = vunpack.c.l.bf16 %v2689
        %v2865 = vunpack.c.h.bf16 %v2689
        %v2866 = vunpack.c.l.bf16 %v2690
        %v2867 = vunpack.c.h.bf16 %v2690
        %v2868 = vunpack.c.l.bf16 %v2691
        %v2869 = vunpack.c.h.bf16 %v2691
        %v2870 = vunpack.c.l.bf16 %v2692
        %v2871 = vunpack.c.h.bf16 %v2692
        %v2872 = vunpack.c.l.bf16 %v2693
        %v2873 = vunpack.c.h.bf16 %v2693
        %v2874 = vunpack.c.l.bf16 %v2694
        %v2875 = vunpack.c.h.bf16 %v2694
        %v2876 = vunpack.c.l.bf16 %v2695
        %v2877 = vunpack.c.h.bf16 %v2695
        %v2878 = vunpack.c.l.bf16 %v2696
        %v2879 = vunpack.c.h.bf16 %v2696
        %v2880 = vunpack.c.l.bf16 %v2697
        %v2881 = vunpack.c.h.bf16 %v2697
        %v2882 = vunpack.c.l.bf16 %v2698
        %v2883 = vunpack.c.h.bf16 %v2698
        %v2884 = vunpack.c.l.bf16 %v2699
        %v2885 = vunpack.c.h.bf16 %v2699
        %v2886 = vunpack.c.l.bf16 %v2700
        %v2887 = vunpack.c.h.bf16 %v2700
        %v2888 = vunpack.c.l.bf16 %v2701
        %v2889 = vunpack.c.h.bf16 %v2701
        %v2890 = vunpack.c.l.bf16 %v2702
        %v2891 = vunpack.c.h.bf16 %v2702
        %v2892 = vunpack.c.l.bf16 %v2703
        %v2893 = vunpack.c.h.bf16 %v2703
        %v2894 = vunpack.c.l.bf16 %v2704
        %v2895 = vunpack.c.h.bf16 %v2704
        %v2896 = vunpack.c.l.bf16 %v2705
        %v2897 = vunpack.c.h.bf16 %v2705
        %v2898 = vunpack.c.l.bf16 %v2706
        %v2899 = vunpack.c.h.bf16 %v2706
        %v2900 = vunpack.c.l.bf16 %v2707
        %v2901 = vunpack.c.h.bf16 %v2707
        %v2902 = vunpack.c.l.bf16 %v2708
        %v2903 = vunpack.c.h.bf16 %v2708
        %v2904 = vunpack.c.l.bf16 %v2709
        %v2905 = vunpack.c.h.bf16 %v2709
        %v2906 = vunpack.c.l.bf16 %v2710
        %v2907 = vunpack.c.h.bf16 %v2710
        %v2908 = vunpack.c.l.bf16 %v2711
        %v2909 = vunpack.c.h.bf16 %v2711
        %v2910 = vunpack.c.l.bf16 %v2712
        %v2911 = vunpack.c.h.bf16 %v2712
        %v2912 = vunpack.c.l.bf16 %v2713
        %v2913 = vunpack.c.h.bf16 %v2713
        %v2914 = vunpack.c.l.bf16 %v2714
        %v2915 = vunpack.c.h.bf16 %v2714
        %v2916 = vunpack.c.l.bf16 %v2715
        %v2917 = vunpack.c.h.bf16 %v2715
        %v2918 = vunpack.c.l.bf16 %v2716
        %v2919 = vunpack.c.h.bf16 %v2716
        %v2920 = vunpack.c.l.bf16 %v2717
        %v2921 = vunpack.c.h.bf16 %v2717
        %v2922 = vunpack.c.l.bf16 %v2718
        %v2923 = vunpack.c.h.bf16 %v2718
        %v2924 = vunpack.c.l.bf16 %v2719
        %v2925 = vunpack.c.h.bf16 %v2719
        %v2926 = vunpack.c.l.bf16 %v2720
        %v2927 = vunpack.c.h.bf16 %v2720
        %v2928 = vunpack.c.l.bf16 %v2721
        %v2929 = vunpack.c.h.bf16 %v2721
        %v2930 = vunpack.c.l.bf16 %v2722
        %v2931 = vunpack.c.h.bf16 %v2722
        %v2932 = vunpack.c.l.bf16 %v2723
        %v2933 = vunpack.c.h.bf16 %v2723
        %v2934 = vunpack.c.l.bf16 %v2724
        %v2935 = vunpack.c.h.bf16 %v2724
        %v2936 = vunpack.c.l.bf16 %v2725
        %v2937 = vunpack.c.h.bf16 %v2725
        %v2938 = vunpack.c.l.bf16 %v2726
        %v2939 = vunpack.c.h.bf16 %v2726
        %v2940 = vunpack.c.l.bf16 %v2727
        %v2941 = vunpack.c.h.bf16 %v2727
        %v2942 = vunpack.c.l.bf16 %v2728
        %v2943 = vunpack.c.h.bf16 %v2728
        %v2944 = vunpack.c.l.bf16 %v2729
        %v2945 = vunpack.c.h.bf16 %v2729
        %v2946 = vunpack.c.l.bf16 %v2730
        %v2947 = vunpack.c.h.bf16 %v2730
        %v2948 = vunpack.c.l.bf16 %v2731
        %v2949 = vunpack.c.h.bf16 %v2731
        %v2950 = vunpack.c.l.bf16 %v2732
        %v2951 = vunpack.c.h.bf16 %v2732
        %v2952 = vunpack.c.l.bf16 %v2733
        %v2953 = vunpack.c.h.bf16 %v2733
        %v2954 = vunpack.c.l.bf16 %v2734
        %v2955 = vunpack.c.h.bf16 %v2734
        %v2956 = vunpack.c.l.bf16 %v2735
        %v2957 = vunpack.c.h.bf16 %v2735
        %v2958 = vunpack.c.l.bf16 %v2736
        %v2959 = vunpack.c.h.bf16 %v2736
        %v2960 = vunpack.c.l.bf16 %v2737
        %v2961 = vunpack.c.h.bf16 %v2737
        %v2962 = vunpack.c.l.bf16 %v2738
        %v2963 = vunpack.c.h.bf16 %v2738
        %v2964 = vunpack.c.l.bf16 %v2739
        %v2965 = vunpack.c.h.bf16 %v2739
        %v2966 = vunpack.c.l.bf16 %v2740
        %v2967 = vunpack.c.h.bf16 %v2740
        %v2968 = vunpack.c.l.bf16 %v2741
        %v2969 = vunpack.c.h.bf16 %v2741
        %v2970 = vunpack.c.l.bf16 %v2742
        %v2971 = vunpack.c.h.bf16 %v2742
        %v2972 = vunpack.c.l.bf16 %v2743
        %v2973 = vunpack.c.h.bf16 %v2743
        %v2974 = vunpack.c.l.bf16 %v2744
        %v2975 = vunpack.c.h.bf16 %v2744
        %v2976 = vunpack.c.l.bf16 %v2745
        %v2977 = vunpack.c.h.bf16 %v2745
        %v2978 = vunpack.c.l.bf16 %v2746
        %v2979 = vunpack.c.h.bf16 %v2746
        %v2980 = vunpack.c.l.bf16 %v2747
        %v2981 = vunpack.c.h.bf16 %v2747
        %v2982 = vunpack.c.l.bf16 %v2748
        %v2983 = vunpack.c.h.bf16 %v2748
        %v2984 = vunpack.c.l.bf16 %v2749
        %v2985 = vunpack.c.h.bf16 %v2749
        %v2986 = vunpack.c.l.bf16 %v2750
        %v2987 = vunpack.c.h.bf16 %v2750
        %v2988 = vunpack.c.l.bf16 %v2751
        %v2989 = vunpack.c.h.bf16 %v2751
        %v2990 = vunpack.c.l.bf16 %v2752
        %v2991 = vunpack.c.h.bf16 %v2752
        %v2992 = vunpack.c.l.bf16 %v2753
        %v2993 = vunpack.c.h.bf16 %v2753
        %v2994 = vunpack.c.l.bf16 %v2754
        %v2995 = vunpack.c.h.bf16 %v2754
        %v2996 = vunpack.c.l.bf16 %v2755
        %v2997 = vunpack.c.h.bf16 %v2755
        %v2998 = vunpack.c.l.bf16 %v2756
        %v2999 = vunpack.c.h.bf16 %v2756
        %v3000 = vunpack.c.l.bf16 %v2757
        %v3001 = vunpack.c.h.bf16 %v2757
        %v3002 = vunpack.c.l.bf16 %v2758
        %v3003 = vunpack.c.h.bf16 %v2758
        %v3004 = vunpack.c.l.bf16 %v2759
        %v3005 = vunpack.c.h.bf16 %v2759
        %v3006 = vunpack.c.l.bf16 %v2760
        %v3007 = vunpack.c.h.bf16 %v2760
        %v3008 = vunpack.c.l.bf16 %v2761
        %v3009 = vunpack.c.h.bf16 %v2761
        %v3010 = vunpack.c.l.bf16 %v2762
        %v3011 = vunpack.c.h.bf16 %v2762
        %v3012 = vunpack.c.l.bf16 %v2763
        %v3013 = vunpack.c.h.bf16 %v2763
        %v3014 = vunpack.c.l.bf16 %v2764
        %v3015 = vunpack.c.h.bf16 %v2764
        %v3016 = vunpack.c.l.bf16 %v2765
        %v3017 = vunpack.c.h.bf16 %v2765
        %v3018 = vunpack.c.l.bf16 %v2766
        %v3019 = vunpack.c.h.bf16 %v2766
        %v3020 = vunpack.c.l.bf16 %v2767
        %v3021 = vunpack.c.h.bf16 %v2767
        %v3022 = vunpack.c.l.bf16 %v2768
        %v3023 = vunpack.c.h.bf16 %v2768
        %v3024 = vunpack.c.l.bf16 %v2769
        %v3025 = vunpack.c.h.bf16 %v2769
        %v3026 = vsel %vm630, %v2770, 0.0
        %3027 = vadd.xlane.f32.xlu0 %v3026
        %v3028 = vpop.xlane.xlu0 %3027
        %v3029 = vsel %vm630, %v2771, 0.0
        %3030 = vadd.xlane.f32.xlu0 %v3029
        %v3031 = vpop.xlane.xlu0 %3030
        %v3032 = vsel %vm630, %v2772, 0.0
        %3033 = vadd.xlane.f32.xlu0 %v3032
        %v3034 = vpop.xlane.xlu0 %3033
        %v3035 = vsel %vm630, %v2773, 0.0
        %3036 = vadd.xlane.f32.xlu0 %v3035
        %v3037 = vpop.xlane.xlu0 %3036
        %v3038 = vsel %vm630, %v2774, 0.0
        %3039 = vadd.xlane.f32.xlu0 %v3038
        %v3040 = vpop.xlane.xlu0 %3039
        %v3041 = vsel %vm630, %v2775, 0.0
        %3042 = vadd.xlane.f32.xlu0 %v3041
        %v3043 = vpop.xlane.xlu0 %3042
        %v3044 = vsel %vm630, %v2776, 0.0
        %3045 = vadd.xlane.f32.xlu0 %v3044
        %v3046 = vpop.xlane.xlu0 %3045
        %v3047 = vsel %vm630, %v2777, 0.0
        %3048 = vadd.xlane.f32.xlu0 %v3047
        %v3049 = vpop.xlane.xlu0 %3048
        %v3050 = vsel %vm630, %v2778, 0.0
        %3051 = vadd.xlane.f32.xlu0 %v3050
        %v3052 = vpop.xlane.xlu0 %3051
        %v3053 = vsel %vm630, %v2779, 0.0
        %3054 = vadd.xlane.f32.xlu0 %v3053
        %v3055 = vpop.xlane.xlu0 %3054
        %v3056 = vsel %vm630, %v2780, 0.0
        %3057 = vadd.xlane.f32.xlu0 %v3056
        %v3058 = vpop.xlane.xlu0 %3057
        %v3059 = vsel %vm630, %v2781, 0.0
        %3060 = vadd.xlane.f32.xlu0 %v3059
        %v3061 = vpop.xlane.xlu0 %3060
        %v3062 = vsel %vm630, %v2782, 0.0
        %3063 = vadd.xlane.f32.xlu0 %v3062
        %v3064 = vpop.xlane.xlu0 %3063
        %v3065 = vsel %vm630, %v2783, 0.0
        %3066 = vadd.xlane.f32.xlu0 %v3065
        %v3067 = vpop.xlane.xlu0 %3066
        %v3068 = vsel %vm630, %v2784, 0.0
        %3069 = vadd.xlane.f32.xlu0 %v3068
        %v3070 = vpop.xlane.xlu0 %3069
        %v3071 = vsel %vm630, %v2785, 0.0
        %3072 = vadd.xlane.f32.xlu0 %v3071
        %v3073 = vpop.xlane.xlu0 %3072
        %v3074 = vsel %vm630, %v2786, 0.0
        %3075 = vadd.xlane.f32.xlu0 %v3074
        %v3076 = vpop.xlane.xlu0 %3075
        %v3077 = vsel %vm630, %v2787, 0.0
        %3078 = vadd.xlane.f32.xlu0 %v3077
        %v3079 = vpop.xlane.xlu0 %3078
        %v3080 = vsel %vm630, %v2788, 0.0
        %3081 = vadd.xlane.f32.xlu0 %v3080
        %v3082 = vpop.xlane.xlu0 %3081
        %v3083 = vsel %vm630, %v2789, 0.0
        %3084 = vadd.xlane.f32.xlu0 %v3083
        %v3085 = vpop.xlane.xlu0 %3084
        %v3086 = vsel %vm630, %v2790, 0.0
        %3087 = vadd.xlane.f32.xlu0 %v3086
        %v3088 = vpop.xlane.xlu0 %3087
        %v3089 = vsel %vm630, %v2791, 0.0
        %3090 = vadd.xlane.f32.xlu0 %v3089
        %v3091 = vpop.xlane.xlu0 %3090
        %v3092 = vsel %vm630, %v2792, 0.0
        %3093 = vadd.xlane.f32.xlu0 %v3092
        %v3094 = vpop.xlane.xlu0 %3093
        %v3095 = vsel %vm630, %v2793, 0.0
        %3096 = vadd.xlane.f32.xlu0 %v3095
        %v3097 = vpop.xlane.xlu0 %3096
        %v3098 = vsel %vm630, %v2794, 0.0
        %3099 = vadd.xlane.f32.xlu0 %v3098
        %v3100 = vpop.xlane.xlu0 %3099
        %v3101 = vsel %vm630, %v2795, 0.0
        %3102 = vadd.xlane.f32.xlu0 %v3101
        %v3103 = vpop.xlane.xlu0 %3102
        %v3104 = vsel %vm630, %v2796, 0.0
        %3105 = vadd.xlane.f32.xlu0 %v3104
        %v3106 = vpop.xlane.xlu0 %3105
        %v3107 = vsel %vm630, %v2797, 0.0
        %3108 = vadd.xlane.f32.xlu0 %v3107
        %v3109 = vpop.xlane.xlu0 %3108
        %v3110 = vsel %vm630, %v2798, 0.0
        %3111 = vadd.xlane.f32.xlu0 %v3110
        %v3112 = vpop.xlane.xlu0 %3111
        %v3113 = vsel %vm630, %v2799, 0.0
        %3114 = vadd.xlane.f32.xlu0 %v3113
        %v3115 = vpop.xlane.xlu0 %3114
        %v3116 = vsel %vm630, %v2800, 0.0
        %3117 = vadd.xlane.f32.xlu0 %v3116
        %v3118 = vpop.xlane.xlu0 %3117
        %v3119 = vsel %vm630, %v2801, 0.0
        %3120 = vadd.xlane.f32.xlu0 %v3119
        %v3121 = vpop.xlane.xlu0 %3120
        %v3122 = vsel %vm630, %v2802, 0.0
        %3123 = vadd.xlane.f32.xlu0 %v3122
        %v3124 = vpop.xlane.xlu0 %3123
        %v3125 = vsel %vm630, %v2803, 0.0
        %3126 = vadd.xlane.f32.xlu0 %v3125
        %v3127 = vpop.xlane.xlu0 %3126
        %v3128 = vsel %vm630, %v2804, 0.0
        %3129 = vadd.xlane.f32.xlu0 %v3128
        %v3130 = vpop.xlane.xlu0 %3129
        %v3131 = vsel %vm630, %v2805, 0.0
        %3132 = vadd.xlane.f32.xlu0 %v3131
        %v3133 = vpop.xlane.xlu0 %3132
        %v3134 = vsel %vm630, %v2806, 0.0
        %3135 = vadd.xlane.f32.xlu0 %v3134
        %v3136 = vpop.xlane.xlu0 %3135
        %v3137 = vsel %vm630, %v2807, 0.0
        %3138 = vadd.xlane.f32.xlu0 %v3137
        %v3139 = vpop.xlane.xlu0 %3138
        %v3140 = vsel %vm630, %v2808, 0.0
        %3141 = vadd.xlane.f32.xlu0 %v3140
        %v3142 = vpop.xlane.xlu0 %3141
        %v3143 = vsel %vm630, %v2809, 0.0
        %3144 = vadd.xlane.f32.xlu0 %v3143
        %v3145 = vpop.xlane.xlu0 %3144
        %v3146 = vsel %vm630, %v2810, 0.0
        %3147 = vadd.xlane.f32.xlu0 %v3146
        %v3148 = vpop.xlane.xlu0 %3147
        %v3149 = vsel %vm630, %v2811, 0.0
        %3150 = vadd.xlane.f32.xlu0 %v3149
        %v3151 = vpop.xlane.xlu0 %3150
        %v3152 = vsel %vm630, %v2812, 0.0
        %3153 = vadd.xlane.f32.xlu0 %v3152
        %v3154 = vpop.xlane.xlu0 %3153
        %v3155 = vsel %vm630, %v2813, 0.0
        %3156 = vadd.xlane.f32.xlu0 %v3155
        %v3157 = vpop.xlane.xlu0 %3156
        %v3158 = vsel %vm630, %v2814, 0.0
        %3159 = vadd.xlane.f32.xlu0 %v3158
        %v3160 = vpop.xlane.xlu0 %3159
        %v3161 = vsel %vm630, %v2815, 0.0
        %3162 = vadd.xlane.f32.xlu0 %v3161
        %v3163 = vpop.xlane.xlu0 %3162
        %v3164 = vsel %vm630, %v2816, 0.0
        %3165 = vadd.xlane.f32.xlu0 %v3164
        %v3166 = vpop.xlane.xlu0 %3165
        %v3167 = vsel %vm630, %v2817, 0.0
        %3168 = vadd.xlane.f32.xlu0 %v3167
        %v3169 = vpop.xlane.xlu0 %3168
        %v3170 = vsel %vm630, %v2818, 0.0
        %3171 = vadd.xlane.f32.xlu0 %v3170
        %v3172 = vpop.xlane.xlu0 %3171
        %v3173 = vsel %vm630, %v2819, 0.0
        %3174 = vadd.xlane.f32.xlu0 %v3173
        %v3175 = vpop.xlane.xlu0 %3174
        %v3176 = vsel %vm630, %v2820, 0.0
        %3177 = vadd.xlane.f32.xlu0 %v3176
        %v3178 = vpop.xlane.xlu0 %3177
        %v3179 = vsel %vm630, %v2821, 0.0
        %3180 = vadd.xlane.f32.xlu0 %v3179
        %v3181 = vpop.xlane.xlu0 %3180
        %v3182 = vsel %vm630, %v2822, 0.0
        %3183 = vadd.xlane.f32.xlu0 %v3182
        %v3184 = vpop.xlane.xlu0 %3183
        %v3185 = vsel %vm630, %v2823, 0.0
        %3186 = vadd.xlane.f32.xlu0 %v3185
        %v3187 = vpop.xlane.xlu0 %3186
        %v3188 = vsel %vm630, %v2824, 0.0
        %3189 = vadd.xlane.f32.xlu0 %v3188
        %v3190 = vpop.xlane.xlu0 %3189
        %v3191 = vsel %vm630, %v2825, 0.0
        %3192 = vadd.xlane.f32.xlu0 %v3191
        %v3193 = vpop.xlane.xlu0 %3192
        %v3194 = vsel %vm630, %v2826, 0.0
        %3195 = vadd.xlane.f32.xlu0 %v3194
        %v3196 = vpop.xlane.xlu0 %3195
        %v3197 = vsel %vm630, %v2827, 0.0
        %3198 = vadd.xlane.f32.xlu0 %v3197
        %v3199 = vpop.xlane.xlu0 %3198
        %v3200 = vsel %vm630, %v2828, 0.0
        %3201 = vadd.xlane.f32.xlu0 %v3200
        %v3202 = vpop.xlane.xlu0 %3201
        %v3203 = vsel %vm630, %v2829, 0.0
        %3204 = vadd.xlane.f32.xlu0 %v3203
        %v3205 = vpop.xlane.xlu0 %3204
        %v3206 = vsel %vm630, %v2830, 0.0
        %3207 = vadd.xlane.f32.xlu0 %v3206
        %v3208 = vpop.xlane.xlu0 %3207
        %v3209 = vsel %vm630, %v2831, 0.0
        %3210 = vadd.xlane.f32.xlu0 %v3209
        %v3211 = vpop.xlane.xlu0 %3210
        %v3212 = vsel %vm630, %v2832, 0.0
        %3213 = vadd.xlane.f32.xlu0 %v3212
        %v3214 = vpop.xlane.xlu0 %3213
        %v3215 = vsel %vm630, %v2833, 0.0
        %3216 = vadd.xlane.f32.xlu0 %v3215
        %v3217 = vpop.xlane.xlu0 %3216
        %v3218 = vsel %vm630, %v2834, 0.0
        %3219 = vadd.xlane.f32.xlu0 %v3218
        %v3220 = vpop.xlane.xlu0 %3219
        %v3221 = vsel %vm630, %v2835, 0.0
        %3222 = vadd.xlane.f32.xlu0 %v3221
        %v3223 = vpop.xlane.xlu0 %3222
        %v3224 = vsel %vm630, %v2836, 0.0
        %3225 = vadd.xlane.f32.xlu0 %v3224
        %v3226 = vpop.xlane.xlu0 %3225
        %v3227 = vsel %vm630, %v2837, 0.0
        %3228 = vadd.xlane.f32.xlu0 %v3227
        %v3229 = vpop.xlane.xlu0 %3228
        %v3230 = vsel %vm630, %v2838, 0.0
        %3231 = vadd.xlane.f32.xlu0 %v3230
        %v3232 = vpop.xlane.xlu0 %3231
        %v3233 = vsel %vm630, %v2839, 0.0
        %3234 = vadd.xlane.f32.xlu0 %v3233
        %v3235 = vpop.xlane.xlu0 %3234
        %v3236 = vsel %vm630, %v2840, 0.0
        %3237 = vadd.xlane.f32.xlu0 %v3236
        %v3238 = vpop.xlane.xlu0 %3237
        %v3239 = vsel %vm630, %v2841, 0.0
        %3240 = vadd.xlane.f32.xlu0 %v3239
        %v3241 = vpop.xlane.xlu0 %3240
        %v3242 = vsel %vm630, %v2842, 0.0
        %3243 = vadd.xlane.f32.xlu0 %v3242
        %v3244 = vpop.xlane.xlu0 %3243
        %v3245 = vsel %vm630, %v2843, 0.0
        %3246 = vadd.xlane.f32.xlu0 %v3245
        %v3247 = vpop.xlane.xlu0 %3246
        %v3248 = vsel %vm630, %v2844, 0.0
        %3249 = vadd.xlane.f32.xlu0 %v3248
        %v3250 = vpop.xlane.xlu0 %3249
        %v3251 = vsel %vm630, %v2845, 0.0
        %3252 = vadd.xlane.f32.xlu0 %v3251
        %v3253 = vpop.xlane.xlu0 %3252
        %v3254 = vsel %vm630, %v2846, 0.0
        %3255 = vadd.xlane.f32.xlu0 %v3254
        %v3256 = vpop.xlane.xlu0 %3255
        %v3257 = vsel %vm630, %v2847, 0.0
        %3258 = vadd.xlane.f32.xlu0 %v3257
        %v3259 = vpop.xlane.xlu0 %3258
        %v3260 = vsel %vm630, %v2848, 0.0
        %3261 = vadd.xlane.f32.xlu0 %v3260
        %v3262 = vpop.xlane.xlu0 %3261
        %v3263 = vsel %vm630, %v2849, 0.0
        %3264 = vadd.xlane.f32.xlu0 %v3263
        %v3265 = vpop.xlane.xlu0 %3264
        %v3266 = vsel %vm630, %v2850, 0.0
        %3267 = vadd.xlane.f32.xlu0 %v3266
        %v3268 = vpop.xlane.xlu0 %3267
        %v3269 = vsel %vm630, %v2851, 0.0
        %3270 = vadd.xlane.f32.xlu0 %v3269
        %v3271 = vpop.xlane.xlu0 %3270
        %v3272 = vsel %vm630, %v2852, 0.0
        %3273 = vadd.xlane.f32.xlu0 %v3272
        %v3274 = vpop.xlane.xlu0 %3273
        %v3275 = vsel %vm630, %v2853, 0.0
        %3276 = vadd.xlane.f32.xlu0 %v3275
        %v3277 = vpop.xlane.xlu0 %3276
        %v3278 = vsel %vm630, %v2854, 0.0
        %3279 = vadd.xlane.f32.xlu0 %v3278
        %v3280 = vpop.xlane.xlu0 %3279
        %v3281 = vsel %vm630, %v2855, 0.0
        %3282 = vadd.xlane.f32.xlu0 %v3281
        %v3283 = vpop.xlane.xlu0 %3282
        %v3284 = vsel %vm630, %v2856, 0.0
        %3285 = vadd.xlane.f32.xlu0 %v3284
        %v3286 = vpop.xlane.xlu0 %3285
        %v3287 = vsel %vm630, %v2857, 0.0
        %3288 = vadd.xlane.f32.xlu0 %v3287
        %v3289 = vpop.xlane.xlu0 %3288
        %v3290 = vsel %vm630, %v2858, 0.0
        %3291 = vadd.xlane.f32.xlu0 %v3290
        %v3292 = vpop.xlane.xlu0 %3291
        %v3293 = vsel %vm630, %v2859, 0.0
        %3294 = vadd.xlane.f32.xlu0 %v3293
        %v3295 = vpop.xlane.xlu0 %3294
        %v3296 = vsel %vm630, %v2860, 0.0
        %3297 = vadd.xlane.f32.xlu0 %v3296
        %v3298 = vpop.xlane.xlu0 %3297
        %v3299 = vsel %vm630, %v2861, 0.0
        %3300 = vadd.xlane.f32.xlu0 %v3299
        %v3301 = vpop.xlane.xlu0 %3300
        %v3302 = vsel %vm630, %v2862, 0.0
        %3303 = vadd.xlane.f32.xlu0 %v3302
        %v3304 = vpop.xlane.xlu0 %3303
        %v3305 = vsel %vm630, %v2863, 0.0
        %3306 = vadd.xlane.f32.xlu0 %v3305
        %v3307 = vpop.xlane.xlu0 %3306
        %v3308 = vsel %vm630, %v2864, 0.0
        %3309 = vadd.xlane.f32.xlu0 %v3308
        %v3310 = vpop.xlane.xlu0 %3309
        %v3311 = vsel %vm630, %v2865, 0.0
        %3312 = vadd.xlane.f32.xlu0 %v3311
        %v3313 = vpop.xlane.xlu0 %3312
        %v3314 = vsel %vm630, %v2866, 0.0
        %3315 = vadd.xlane.f32.xlu0 %v3314
        %v3316 = vpop.xlane.xlu0 %3315
        %v3317 = vsel %vm630, %v2867, 0.0
        %3318 = vadd.xlane.f32.xlu0 %v3317
        %v3319 = vpop.xlane.xlu0 %3318
        %v3320 = vsel %vm630, %v2868, 0.0
        %3321 = vadd.xlane.f32.xlu0 %v3320
        %v3322 = vpop.xlane.xlu0 %3321
        %v3323 = vsel %vm630, %v2869, 0.0
        %3324 = vadd.xlane.f32.xlu0 %v3323
        %v3325 = vpop.xlane.xlu0 %3324
        %v3326 = vsel %vm630, %v2870, 0.0
        %3327 = vadd.xlane.f32.xlu0 %v3326
        %v3328 = vpop.xlane.xlu0 %3327
        %v3329 = vsel %vm630, %v2871, 0.0
        %3330 = vadd.xlane.f32.xlu0 %v3329
        %v3331 = vpop.xlane.xlu0 %3330
        %v3332 = vsel %vm630, %v2872, 0.0
        %3333 = vadd.xlane.f32.xlu0 %v3332
        %v3334 = vpop.xlane.xlu0 %3333
        %v3335 = vsel %vm630, %v2873, 0.0
        %3336 = vadd.xlane.f32.xlu0 %v3335
        %v3337 = vpop.xlane.xlu0 %3336
        %v3338 = vsel %vm630, %v2874, 0.0
        %3339 = vadd.xlane.f32.xlu0 %v3338
        %v3340 = vpop.xlane.xlu0 %3339
        %v3341 = vsel %vm630, %v2875, 0.0
        %3342 = vadd.xlane.f32.xlu0 %v3341
        %v3343 = vpop.xlane.xlu0 %3342
        %v3344 = vsel %vm630, %v2876, 0.0
        %3345 = vadd.xlane.f32.xlu0 %v3344
        %v3346 = vpop.xlane.xlu0 %3345
        %v3347 = vsel %vm630, %v2877, 0.0
        %3348 = vadd.xlane.f32.xlu0 %v3347
        %v3349 = vpop.xlane.xlu0 %3348
        %v3350 = vsel %vm630, %v2878, 0.0
        %3351 = vadd.xlane.f32.xlu0 %v3350
        %v3352 = vpop.xlane.xlu0 %3351
        %v3353 = vsel %vm630, %v2879, 0.0
        %3354 = vadd.xlane.f32.xlu0 %v3353
        %v3355 = vpop.xlane.xlu0 %3354
        %v3356 = vsel %vm630, %v2880, 0.0
        %3357 = vadd.xlane.f32.xlu0 %v3356
        %v3358 = vpop.xlane.xlu0 %3357
        %v3359 = vsel %vm630, %v2881, 0.0
        %3360 = vadd.xlane.f32.xlu0 %v3359
        %v3361 = vpop.xlane.xlu0 %3360
        %v3362 = vsel %vm630, %v2882, 0.0
        %3363 = vadd.xlane.f32.xlu0 %v3362
        %v3364 = vpop.xlane.xlu0 %3363
        %v3365 = vsel %vm630, %v2883, 0.0
        %3366 = vadd.xlane.f32.xlu0 %v3365
        %v3367 = vpop.xlane.xlu0 %3366
        %v3368 = vsel %vm630, %v2884, 0.0
        %3369 = vadd.xlane.f32.xlu0 %v3368
        %v3370 = vpop.xlane.xlu0 %3369
        %v3371 = vsel %vm630, %v2885, 0.0
        %3372 = vadd.xlane.f32.xlu0 %v3371
        %v3373 = vpop.xlane.xlu0 %3372
        %v3374 = vsel %vm630, %v2886, 0.0
        %3375 = vadd.xlane.f32.xlu0 %v3374
        %v3376 = vpop.xlane.xlu0 %3375
        %v3377 = vsel %vm630, %v2887, 0.0
        %3378 = vadd.xlane.f32.xlu0 %v3377
        %v3379 = vpop.xlane.xlu0 %3378
        %v3380 = vsel %vm630, %v2888, 0.0
        %3381 = vadd.xlane.f32.xlu0 %v3380
        %v3382 = vpop.xlane.xlu0 %3381
        %v3383 = vsel %vm630, %v2889, 0.0
        %3384 = vadd.xlane.f32.xlu0 %v3383
        %v3385 = vpop.xlane.xlu0 %3384
        %v3386 = vsel %vm630, %v2890, 0.0
        %3387 = vadd.xlane.f32.xlu0 %v3386
        %v3388 = vpop.xlane.xlu0 %3387
        %v3389 = vsel %vm630, %v2891, 0.0
        %3390 = vadd.xlane.f32.xlu0 %v3389
        %v3391 = vpop.xlane.xlu0 %3390
        %v3392 = vsel %vm630, %v2892, 0.0
        %3393 = vadd.xlane.f32.xlu0 %v3392
        %v3394 = vpop.xlane.xlu0 %3393
        %v3395 = vsel %vm630, %v2893, 0.0
        %3396 = vadd.xlane.f32.xlu0 %v3395
        %v3397 = vpop.xlane.xlu0 %3396
        %v3398 = vsel %vm630, %v2894, 0.0
        %3399 = vadd.xlane.f32.xlu0 %v3398
        %v3400 = vpop.xlane.xlu0 %3399
        %v3401 = vsel %vm630, %v2895, 0.0
        %3402 = vadd.xlane.f32.xlu0 %v3401
        %v3403 = vpop.xlane.xlu0 %3402
        %v3404 = vsel %vm630, %v2896, 0.0
        %3405 = vadd.xlane.f32.xlu0 %v3404
        %v3406 = vpop.xlane.xlu0 %3405
        %v3407 = vsel %vm630, %v2897, 0.0
        %3408 = vadd.xlane.f32.xlu0 %v3407
        %v3409 = vpop.xlane.xlu0 %3408
        %v3410 = vsel %vm630, %v2898, 0.0
        %3411 = vadd.xlane.f32.xlu0 %v3410
        %v3412 = vpop.xlane.xlu0 %3411
        %v3413 = vsel %vm630, %v2899, 0.0
        %3414 = vadd.xlane.f32.xlu0 %v3413
        %v3415 = vpop.xlane.xlu0 %3414
        %v3416 = vsel %vm630, %v2900, 0.0
        %3417 = vadd.xlane.f32.xlu0 %v3416
        %v3418 = vpop.xlane.xlu0 %3417
        %v3419 = vsel %vm630, %v2901, 0.0
        %3420 = vadd.xlane.f32.xlu0 %v3419
        %v3421 = vpop.xlane.xlu0 %3420
        %v3422 = vsel %vm630, %v2902, 0.0
        %3423 = vadd.xlane.f32.xlu0 %v3422
        %v3424 = vpop.xlane.xlu0 %3423
        %v3425 = vsel %vm630, %v2903, 0.0
        %3426 = vadd.xlane.f32.xlu0 %v3425
        %v3427 = vpop.xlane.xlu0 %3426
        %v3428 = vsel %vm630, %v2904, 0.0
        %3429 = vadd.xlane.f32.xlu0 %v3428
        %v3430 = vpop.xlane.xlu0 %3429
        %v3431 = vsel %vm630, %v2905, 0.0
        %3432 = vadd.xlane.f32.xlu0 %v3431
        %v3433 = vpop.xlane.xlu0 %3432
        %v3434 = vsel %vm630, %v2906, 0.0
        %3435 = vadd.xlane.f32.xlu0 %v3434
        %v3436 = vpop.xlane.xlu0 %3435
        %v3437 = vsel %vm630, %v2907, 0.0
        %3438 = vadd.xlane.f32.xlu0 %v3437
        %v3439 = vpop.xlane.xlu0 %3438
        %v3440 = vsel %vm630, %v2908, 0.0
        %3441 = vadd.xlane.f32.xlu0 %v3440
        %v3442 = vpop.xlane.xlu0 %3441
        %v3443 = vsel %vm630, %v2909, 0.0
        %3444 = vadd.xlane.f32.xlu0 %v3443
        %v3445 = vpop.xlane.xlu0 %3444
        %v3446 = vsel %vm630, %v2910, 0.0
        %3447 = vadd.xlane.f32.xlu0 %v3446
        %v3448 = vpop.xlane.xlu0 %3447
        %v3449 = vsel %vm630, %v2911, 0.0
        %3450 = vadd.xlane.f32.xlu0 %v3449
        %v3451 = vpop.xlane.xlu0 %3450
        %v3452 = vsel %vm630, %v2912, 0.0
        %3453 = vadd.xlane.f32.xlu0 %v3452
        %v3454 = vpop.xlane.xlu0 %3453
        %v3455 = vsel %vm630, %v2913, 0.0
        %3456 = vadd.xlane.f32.xlu0 %v3455
        %v3457 = vpop.xlane.xlu0 %3456
        %v3458 = vsel %vm630, %v2914, 0.0
        %3459 = vadd.xlane.f32.xlu0 %v3458
        %v3460 = vpop.xlane.xlu0 %3459
        %v3461 = vsel %vm630, %v2915, 0.0
        %3462 = vadd.xlane.f32.xlu0 %v3461
        %v3463 = vpop.xlane.xlu0 %3462
        %v3464 = vsel %vm630, %v2916, 0.0
        %3465 = vadd.xlane.f32.xlu0 %v3464
        %v3466 = vpop.xlane.xlu0 %3465
        %v3467 = vsel %vm630, %v2917, 0.0
        %3468 = vadd.xlane.f32.xlu0 %v3467
        %v3469 = vpop.xlane.xlu0 %3468
        %v3470 = vsel %vm630, %v2918, 0.0
        %3471 = vadd.xlane.f32.xlu0 %v3470
        %v3472 = vpop.xlane.xlu0 %3471
        %v3473 = vsel %vm630, %v2919, 0.0
        %3474 = vadd.xlane.f32.xlu0 %v3473
        %v3475 = vpop.xlane.xlu0 %3474
        %v3476 = vsel %vm630, %v2920, 0.0
        %3477 = vadd.xlane.f32.xlu0 %v3476
        %v3478 = vpop.xlane.xlu0 %3477
        %v3479 = vsel %vm630, %v2921, 0.0
        %3480 = vadd.xlane.f32.xlu0 %v3479
        %v3481 = vpop.xlane.xlu0 %3480
        %v3482 = vsel %vm630, %v2922, 0.0
        %3483 = vadd.xlane.f32.xlu0 %v3482
        %v3484 = vpop.xlane.xlu0 %3483
        %v3485 = vsel %vm630, %v2923, 0.0
        %3486 = vadd.xlane.f32.xlu0 %v3485
        %v3487 = vpop.xlane.xlu0 %3486
        %v3488 = vsel %vm630, %v2924, 0.0
        %3489 = vadd.xlane.f32.xlu0 %v3488
        %v3490 = vpop.xlane.xlu0 %3489
        %v3491 = vsel %vm630, %v2925, 0.0
        %3492 = vadd.xlane.f32.xlu0 %v3491
        %v3493 = vpop.xlane.xlu0 %3492
        %v3494 = vsel %vm630, %v2926, 0.0
        %3495 = vadd.xlane.f32.xlu0 %v3494
        %v3496 = vpop.xlane.xlu0 %3495
        %v3497 = vsel %vm630, %v2927, 0.0
        %3498 = vadd.xlane.f32.xlu0 %v3497
        %v3499 = vpop.xlane.xlu0 %3498
        %v3500 = vsel %vm630, %v2928, 0.0
        %3501 = vadd.xlane.f32.xlu0 %v3500
        %v3502 = vpop.xlane.xlu0 %3501
        %v3503 = vsel %vm630, %v2929, 0.0
        %3504 = vadd.xlane.f32.xlu0 %v3503
        %v3505 = vpop.xlane.xlu0 %3504
        %v3506 = vsel %vm630, %v2930, 0.0
        %3507 = vadd.xlane.f32.xlu0 %v3506
        %v3508 = vpop.xlane.xlu0 %3507
        %v3509 = vsel %vm630, %v2931, 0.0
        %3510 = vadd.xlane.f32.xlu0 %v3509
        %v3511 = vpop.xlane.xlu0 %3510
        %v3512 = vsel %vm630, %v2932, 0.0
        %3513 = vadd.xlane.f32.xlu0 %v3512
        %v3514 = vpop.xlane.xlu0 %3513
        %v3515 = vsel %vm630, %v2933, 0.0
        %3516 = vadd.xlane.f32.xlu0 %v3515
        %v3517 = vpop.xlane.xlu0 %3516
        %v3518 = vsel %vm630, %v2934, 0.0
        %3519 = vadd.xlane.f32.xlu0 %v3518
        %v3520 = vpop.xlane.xlu0 %3519
        %v3521 = vsel %vm630, %v2935, 0.0
        %3522 = vadd.xlane.f32.xlu0 %v3521
        %v3523 = vpop.xlane.xlu0 %3522
        %v3524 = vsel %vm630, %v2936, 0.0
        %3525 = vadd.xlane.f32.xlu0 %v3524
        %v3526 = vpop.xlane.xlu0 %3525
        %v3527 = vsel %vm630, %v2937, 0.0
        %3528 = vadd.xlane.f32.xlu0 %v3527
        %v3529 = vpop.xlane.xlu0 %3528
        %v3530 = vsel %vm630, %v2938, 0.0
        %3531 = vadd.xlane.f32.xlu0 %v3530
        %v3532 = vpop.xlane.xlu0 %3531
        %v3533 = vsel %vm630, %v2939, 0.0
        %3534 = vadd.xlane.f32.xlu0 %v3533
        %v3535 = vpop.xlane.xlu0 %3534
        %v3536 = vsel %vm630, %v2940, 0.0
        %3537 = vadd.xlane.f32.xlu0 %v3536
        %v3538 = vpop.xlane.xlu0 %3537
        %v3539 = vsel %vm630, %v2941, 0.0
        %3540 = vadd.xlane.f32.xlu0 %v3539
        %v3541 = vpop.xlane.xlu0 %3540
        %v3542 = vsel %vm630, %v2942, 0.0
        %3543 = vadd.xlane.f32.xlu0 %v3542
        %v3544 = vpop.xlane.xlu0 %3543
        %v3545 = vsel %vm630, %v2943, 0.0
        %3546 = vadd.xlane.f32.xlu0 %v3545
        %v3547 = vpop.xlane.xlu0 %3546
        %v3548 = vsel %vm630, %v2944, 0.0
        %3549 = vadd.xlane.f32.xlu0 %v3548
        %v3550 = vpop.xlane.xlu0 %3549
        %v3551 = vsel %vm630, %v2945, 0.0
        %3552 = vadd.xlane.f32.xlu0 %v3551
        %v3553 = vpop.xlane.xlu0 %3552
        %v3554 = vsel %vm630, %v2946, 0.0
        %3555 = vadd.xlane.f32.xlu0 %v3554
        %v3556 = vpop.xlane.xlu0 %3555
        %v3557 = vsel %vm630, %v2947, 0.0
        %3558 = vadd.xlane.f32.xlu0 %v3557
        %v3559 = vpop.xlane.xlu0 %3558
        %v3560 = vsel %vm630, %v2948, 0.0
        %3561 = vadd.xlane.f32.xlu0 %v3560
        %v3562 = vpop.xlane.xlu0 %3561
        %v3563 = vsel %vm630, %v2949, 0.0
        %3564 = vadd.xlane.f32.xlu0 %v3563
        %v3565 = vpop.xlane.xlu0 %3564
        %v3566 = vsel %vm630, %v2950, 0.0
        %3567 = vadd.xlane.f32.xlu0 %v3566
        %v3568 = vpop.xlane.xlu0 %3567
        %v3569 = vsel %vm630, %v2951, 0.0
        %3570 = vadd.xlane.f32.xlu0 %v3569
        %v3571 = vpop.xlane.xlu0 %3570
        %v3572 = vsel %vm630, %v2952, 0.0
        %3573 = vadd.xlane.f32.xlu0 %v3572
        %v3574 = vpop.xlane.xlu0 %3573
        %v3575 = vsel %vm630, %v2953, 0.0
        %3576 = vadd.xlane.f32.xlu0 %v3575
        %v3577 = vpop.xlane.xlu0 %3576
        %v3578 = vsel %vm630, %v2954, 0.0
        %3579 = vadd.xlane.f32.xlu0 %v3578
        %v3580 = vpop.xlane.xlu0 %3579
        %v3581 = vsel %vm630, %v2955, 0.0
        %3582 = vadd.xlane.f32.xlu0 %v3581
        %v3583 = vpop.xlane.xlu0 %3582
        %v3584 = vsel %vm630, %v2956, 0.0
        %3585 = vadd.xlane.f32.xlu0 %v3584
        %v3586 = vpop.xlane.xlu0 %3585
        %v3587 = vsel %vm630, %v2957, 0.0
        %3588 = vadd.xlane.f32.xlu0 %v3587
        %v3589 = vpop.xlane.xlu0 %3588
        %v3590 = vsel %vm630, %v2958, 0.0
        %3591 = vadd.xlane.f32.xlu0 %v3590
        %v3592 = vpop.xlane.xlu0 %3591
        %v3593 = vsel %vm630, %v2959, 0.0
        %3594 = vadd.xlane.f32.xlu0 %v3593
        %v3595 = vpop.xlane.xlu0 %3594
        %v3596 = vsel %vm630, %v2960, 0.0
        %3597 = vadd.xlane.f32.xlu0 %v3596
        %v3598 = vpop.xlane.xlu0 %3597
        %v3599 = vsel %vm630, %v2961, 0.0
        %3600 = vadd.xlane.f32.xlu0 %v3599
        %v3601 = vpop.xlane.xlu0 %3600
        %v3602 = vsel %vm630, %v2962, 0.0
        %3603 = vadd.xlane.f32.xlu0 %v3602
        %v3604 = vpop.xlane.xlu0 %3603
        %v3605 = vsel %vm630, %v2963, 0.0
        %3606 = vadd.xlane.f32.xlu0 %v3605
        %v3607 = vpop.xlane.xlu0 %3606
        %v3608 = vsel %vm630, %v2964, 0.0
        %3609 = vadd.xlane.f32.xlu0 %v3608
        %v3610 = vpop.xlane.xlu0 %3609
        %v3611 = vsel %vm630, %v2965, 0.0
        %3612 = vadd.xlane.f32.xlu0 %v3611
        %v3613 = vpop.xlane.xlu0 %3612
        %v3614 = vsel %vm630, %v2966, 0.0
        %3615 = vadd.xlane.f32.xlu0 %v3614
        %v3616 = vpop.xlane.xlu0 %3615
        %v3617 = vsel %vm630, %v2967, 0.0
        %3618 = vadd.xlane.f32.xlu0 %v3617
        %v3619 = vpop.xlane.xlu0 %3618
        %v3620 = vsel %vm630, %v2968, 0.0
        %3621 = vadd.xlane.f32.xlu0 %v3620
        %v3622 = vpop.xlane.xlu0 %3621
        %v3623 = vsel %vm630, %v2969, 0.0
        %3624 = vadd.xlane.f32.xlu0 %v3623
        %v3625 = vpop.xlane.xlu0 %3624
        %v3626 = vsel %vm630, %v2970, 0.0
        %3627 = vadd.xlane.f32.xlu0 %v3626
        %v3628 = vpop.xlane.xlu0 %3627
        %v3629 = vsel %vm630, %v2971, 0.0
        %3630 = vadd.xlane.f32.xlu0 %v3629
        %v3631 = vpop.xlane.xlu0 %3630
        %v3632 = vsel %vm630, %v2972, 0.0
        %3633 = vadd.xlane.f32.xlu0 %v3632
        %v3634 = vpop.xlane.xlu0 %3633
        %v3635 = vsel %vm630, %v2973, 0.0
        %3636 = vadd.xlane.f32.xlu0 %v3635
        %v3637 = vpop.xlane.xlu0 %3636
        %v3638 = vsel %vm630, %v2974, 0.0
        %3639 = vadd.xlane.f32.xlu0 %v3638
        %v3640 = vpop.xlane.xlu0 %3639
        %v3641 = vsel %vm630, %v2975, 0.0
        %3642 = vadd.xlane.f32.xlu0 %v3641
        %v3643 = vpop.xlane.xlu0 %3642
        %v3644 = vsel %vm630, %v2976, 0.0
        %3645 = vadd.xlane.f32.xlu0 %v3644
        %v3646 = vpop.xlane.xlu0 %3645
        %v3647 = vsel %vm630, %v2977, 0.0
        %3648 = vadd.xlane.f32.xlu0 %v3647
        %v3649 = vpop.xlane.xlu0 %3648
        %v3650 = vsel %vm630, %v2978, 0.0
        %3651 = vadd.xlane.f32.xlu0 %v3650
        %v3652 = vpop.xlane.xlu0 %3651
        %v3653 = vsel %vm630, %v2979, 0.0
        %3654 = vadd.xlane.f32.xlu0 %v3653
        %v3655 = vpop.xlane.xlu0 %3654
        %v3656 = vsel %vm630, %v2980, 0.0
        %3657 = vadd.xlane.f32.xlu0 %v3656
        %v3658 = vpop.xlane.xlu0 %3657
        %v3659 = vsel %vm630, %v2981, 0.0
        %3660 = vadd.xlane.f32.xlu0 %v3659
        %v3661 = vpop.xlane.xlu0 %3660
        %v3662 = vsel %vm630, %v2982, 0.0
        %3663 = vadd.xlane.f32.xlu0 %v3662
        %v3664 = vpop.xlane.xlu0 %3663
        %v3665 = vsel %vm630, %v2983, 0.0
        %3666 = vadd.xlane.f32.xlu0 %v3665
        %v3667 = vpop.xlane.xlu0 %3666
        %v3668 = vsel %vm630, %v2984, 0.0
        %3669 = vadd.xlane.f32.xlu0 %v3668
        %v3670 = vpop.xlane.xlu0 %3669
        %v3671 = vsel %vm630, %v2985, 0.0
        %3672 = vadd.xlane.f32.xlu0 %v3671
        %v3673 = vpop.xlane.xlu0 %3672
        %v3674 = vsel %vm630, %v2986, 0.0
        %3675 = vadd.xlane.f32.xlu0 %v3674
        %v3676 = vpop.xlane.xlu0 %3675
        %v3677 = vsel %vm630, %v2987, 0.0
        %3678 = vadd.xlane.f32.xlu0 %v3677
        %v3679 = vpop.xlane.xlu0 %3678
        %v3680 = vsel %vm630, %v2988, 0.0
        %3681 = vadd.xlane.f32.xlu0 %v3680
        %v3682 = vpop.xlane.xlu0 %3681
        %v3683 = vsel %vm630, %v2989, 0.0
        %3684 = vadd.xlane.f32.xlu0 %v3683
        %v3685 = vpop.xlane.xlu0 %3684
        %v3686 = vsel %vm630, %v2990, 0.0
        %3687 = vadd.xlane.f32.xlu0 %v3686
        %v3688 = vpop.xlane.xlu0 %3687
        %v3689 = vsel %vm630, %v2991, 0.0
        %3690 = vadd.xlane.f32.xlu0 %v3689
        %v3691 = vpop.xlane.xlu0 %3690
        %v3692 = vsel %vm630, %v2992, 0.0
        %3693 = vadd.xlane.f32.xlu0 %v3692
        %v3694 = vpop.xlane.xlu0 %3693
        %v3695 = vsel %vm630, %v2993, 0.0
        %3696 = vadd.xlane.f32.xlu0 %v3695
        %v3697 = vpop.xlane.xlu0 %3696
        %v3698 = vsel %vm630, %v2994, 0.0
        %3699 = vadd.xlane.f32.xlu0 %v3698
        %v3700 = vpop.xlane.xlu0 %3699
        %v3701 = vsel %vm630, %v2995, 0.0
        %3702 = vadd.xlane.f32.xlu0 %v3701
        %v3703 = vpop.xlane.xlu0 %3702
        %v3704 = vsel %vm630, %v2996, 0.0
        %3705 = vadd.xlane.f32.xlu0 %v3704
        %v3706 = vpop.xlane.xlu0 %3705
        %v3707 = vsel %vm630, %v2997, 0.0
        %3708 = vadd.xlane.f32.xlu0 %v3707
        %v3709 = vpop.xlane.xlu0 %3708
        %v3710 = vsel %vm630, %v2998, 0.0
        %3711 = vadd.xlane.f32.xlu0 %v3710
        %v3712 = vpop.xlane.xlu0 %3711
        %v3713 = vsel %vm630, %v2999, 0.0
        %3714 = vadd.xlane.f32.xlu0 %v3713
        %v3715 = vpop.xlane.xlu0 %3714
        %v3716 = vsel %vm630, %v3000, 0.0
        %3717 = vadd.xlane.f32.xlu0 %v3716
        %v3718 = vpop.xlane.xlu0 %3717
        %v3719 = vsel %vm630, %v3001, 0.0
        %3720 = vadd.xlane.f32.xlu0 %v3719
        %v3721 = vpop.xlane.xlu0 %3720
        %v3722 = vsel %vm630, %v3002, 0.0
        %3723 = vadd.xlane.f32.xlu0 %v3722
        %v3724 = vpop.xlane.xlu0 %3723
        %v3725 = vsel %vm630, %v3003, 0.0
        %3726 = vadd.xlane.f32.xlu0 %v3725
        %v3727 = vpop.xlane.xlu0 %3726
        %v3728 = vsel %vm630, %v3004, 0.0
        %3729 = vadd.xlane.f32.xlu0 %v3728
        %v3730 = vpop.xlane.xlu0 %3729
        %v3731 = vsel %vm630, %v3005, 0.0
        %3732 = vadd.xlane.f32.xlu0 %v3731
        %v3733 = vpop.xlane.xlu0 %3732
        %v3734 = vsel %vm630, %v3006, 0.0
        %3735 = vadd.xlane.f32.xlu0 %v3734
        %v3736 = vpop.xlane.xlu0 %3735
        %v3737 = vsel %vm630, %v3007, 0.0
        %3738 = vadd.xlane.f32.xlu0 %v3737
        %v3739 = vpop.xlane.xlu0 %3738
        %v3740 = vsel %vm630, %v3008, 0.0
        %3741 = vadd.xlane.f32.xlu0 %v3740
        %v3742 = vpop.xlane.xlu0 %3741
        %v3743 = vsel %vm630, %v3009, 0.0
        %3744 = vadd.xlane.f32.xlu0 %v3743
        %v3745 = vpop.xlane.xlu0 %3744
        %v3746 = vsel %vm630, %v3010, 0.0
        %3747 = vadd.xlane.f32.xlu0 %v3746
        %v3748 = vpop.xlane.xlu0 %3747
        %v3749 = vsel %vm630, %v3011, 0.0
        %3750 = vadd.xlane.f32.xlu0 %v3749
        %v3751 = vpop.xlane.xlu0 %3750
        %v3752 = vsel %vm630, %v3012, 0.0
        %3753 = vadd.xlane.f32.xlu0 %v3752
        %v3754 = vpop.xlane.xlu0 %3753
        %v3755 = vsel %vm630, %v3013, 0.0
        %3756 = vadd.xlane.f32.xlu0 %v3755
        %v3757 = vpop.xlane.xlu0 %3756
        %v3758 = vsel %vm630, %v3014, 0.0
        %3759 = vadd.xlane.f32.xlu0 %v3758
        %v3760 = vpop.xlane.xlu0 %3759
        %v3761 = vsel %vm630, %v3015, 0.0
        %3762 = vadd.xlane.f32.xlu0 %v3761
        %v3763 = vpop.xlane.xlu0 %3762
        %v3764 = vsel %vm630, %v3016, 0.0
        %3765 = vadd.xlane.f32.xlu0 %v3764
        %v3766 = vpop.xlane.xlu0 %3765
        %v3767 = vsel %vm630, %v3017, 0.0
        %3768 = vadd.xlane.f32.xlu0 %v3767
        %v3769 = vpop.xlane.xlu0 %3768
        %v3770 = vsel %vm630, %v3018, 0.0
        %3771 = vadd.xlane.f32.xlu0 %v3770
        %v3772 = vpop.xlane.xlu0 %3771
        %v3773 = vsel %vm630, %v3019, 0.0
        %3774 = vadd.xlane.f32.xlu0 %v3773
        %v3775 = vpop.xlane.xlu0 %3774
        %v3776 = vsel %vm630, %v3020, 0.0
        %3777 = vadd.xlane.f32.xlu0 %v3776
        %v3778 = vpop.xlane.xlu0 %3777
        %v3779 = vsel %vm630, %v3021, 0.0
        %3780 = vadd.xlane.f32.xlu0 %v3779
        %v3781 = vpop.xlane.xlu0 %3780
        %v3782 = vsel %vm630, %v3022, 0.0
        %3783 = vadd.xlane.f32.xlu0 %v3782
        %v3784 = vpop.xlane.xlu0 %3783
        %v3785 = vsel %vm630, %v3023, 0.0
        %3786 = vadd.xlane.f32.xlu0 %v3785
        %v3787 = vpop.xlane.xlu0 %3786
        %v3788 = vsel %vm630, %v3024, 0.0
        %3789 = vadd.xlane.f32.xlu0 %v3788
        %v3790 = vpop.xlane.xlu0 %3789
        %v3791 = vsel %vm630, %v3025, 0.0
        %3792 = vadd.xlane.f32.xlu0 %v3791
        %v3793 = vpop.xlane.xlu0 %3792
        %v3794 = vld [vmem:[%s448] sm:$0x1]
        %vm3795 = vcmp.gt.f32.partialorder %v3794, 0.0
        %v3796 = vsel %vm3795, 1, 0
        %v3797 = vperm.slane %v3796, 0
        %vm3798 = vcmp.eq.s32.totalorder %v3797, 1
        %v4055 = vlaneseq
        %v4056 = vand.u32 %v4055, 127
        %v4057 = vperm.slane %v3028, %v4056
        %v4058 = vadd.s32 %v4056, 4294967288
        %v4059 = vperm.slane %v3031, %v4058
        %vm4060 = vcmask 130112
        %v4061 = vsel %vm4060, %v4059, %v4057
        %v4062 = vadd.s32 %v4056, 4294967280
        %v4063 = vperm.slane %v3034, %v4062
        %vm4064 = vcmask 195712
        %v4065 = vsel %vm4064, %v4063, %v4061
        %v4066 = vadd.s32 %v4056, 4294967272
        %v4067 = vperm.slane %v3037, %v4066
        %vm4068 = vcmask 261312
        %v4069 = vsel %vm4068, %v4067, %v4065
        %v4070 = vadd.s32 %v4056, 4294967264
        %v4071 = vperm.slane %v3040, %v4070
        %vm4072 = vcmask 326912
        %v4073 = vsel %vm4072, %v4071, %v4069
        %v4074 = vadd.s32 %v4056, 4294967256
        %v4075 = vperm.slane %v3043, %v4074
        %vm4076 = vcmask 392512
        %v4077 = vsel %vm4076, %v4075, %v4073
        %v4078 = vadd.s32 %v4056, 4294967248
        %v4079 = vperm.slane %v3046, %v4078
        %vm4080 = vcmask 458112
        %v4081 = vsel %vm4080, %v4079, %v4077
        %v4082 = vadd.s32 %v4056, 4294967240
        %v4083 = vperm.slane %v3049, %v4082
        %vm4084 = vcmask 523712
        %v4085 = vsel %vm4084, %v4083, %v4081
        %v4086 = vadd.s32 %v4056, 4294967232
        %v4087 = vperm.slane %v3052, %v4086
        %vm4088 = vcmask 589312
        %v4089 = vsel %vm4088, %v4087, %v4085
        %v4090 = vadd.s32 %v4056, 4294967224
        %v4091 = vperm.slane %v3055, %v4090
        %vm4092 = vcmask 654912
        %v4093 = vsel %vm4092, %v4091, %v4089
        %v4094 = vadd.s32 %v4056, 4294967216
        %v4095 = vperm.slane %v3058, %v4094
        %vm4096 = vcmask 720512
        %v4097 = vsel %vm4096, %v4095, %v4093
        %v4098 = vadd.s32 %v4056, 4294967208
        %v4099 = vperm.slane %v3061, %v4098
        %vm4100 = vcmask 786112
        %v4101 = vsel %vm4100, %v4099, %v4097
        %v4102 = vadd.s32 %v4056, 4294967200
        %v4103 = vperm.slane %v3064, %v4102
        %vm4104 = vcmask 851712
        %v4105 = vsel %vm4104, %v4103, %v4101
        %v4106 = vadd.s32 %v4056, 4294967192
        %v4107 = vperm.slane %v3067, %v4106
        %vm4108 = vcmask 917312
        %v4109 = vsel %vm4108, %v4107, %v4105
        %v4110 = vadd.s32 %v4056, 4294967184
        %v4111 = vperm.slane %v3070, %v4110
        %vm4112 = vcmask 982912
        %v4113 = vsel %vm4112, %v4111, %v4109
        %v4114 = vadd.s32 %v4056, 4294967176
        %v4115 = vperm.slane %v3073, %v4114
        %vm4116 = vcmask 1048512
        %v4117 = vsel %vm4116, %v4115, %v4113
        %v4118 = vperm.slane %v3076, %v4056
        %v4119 = vperm.slane %v3079, %v4058
        %v4120 = vsel %vm4060, %v4119, %v4118
        %v4121 = vperm.slane %v3082, %v4062
        %v4122 = vsel %vm4064, %v4121, %v4120
        %v4123 = vperm.slane %v3085, %v4066
        %v4124 = vsel %vm4068, %v4123, %v4122
        %v4125 = vperm.slane %v3088, %v4070
        %v4126 = vsel %vm4072, %v4125, %v4124
        %v4127 = vperm.slane %v3091, %v4074
        %v4128 = vsel %vm4076, %v4127, %v4126
        %v4129 = vperm.slane %v3094, %v4078
        %v4130 = vsel %vm4080, %v4129, %v4128
        %v4131 = vperm.slane %v3097, %v4082
        %v4132 = vsel %vm4084, %v4131, %v4130
        %v4133 = vperm.slane %v3100, %v4086
        %v4134 = vsel %vm4088, %v4133, %v4132
        %v4135 = vperm.slane %v3103, %v4090
        %v4136 = vsel %vm4092, %v4135, %v4134
        %v4137 = vperm.slane %v3106, %v4094
        %v4138 = vsel %vm4096, %v4137, %v4136
        %v4139 = vperm.slane %v3109, %v4098
        %v4140 = vsel %vm4100, %v4139, %v4138
        %v4141 = vperm.slane %v3112, %v4102
        %v4142 = vsel %vm4104, %v4141, %v4140
        %v4143 = vperm.slane %v3115, %v4106
        %v4144 = vsel %vm4108, %v4143, %v4142
        %v4145 = vperm.slane %v3118, %v4110
        %v4146 = vsel %vm4112, %v4145, %v4144
        %v4147 = vperm.slane %v3121, %v4114
        %v4148 = vsel %vm4116, %v4147, %v4146
        %v4149 = vperm.slane %v3124, %v4056
        %v4150 = vperm.slane %v3127, %v4058
        %v4151 = vsel %vm4060, %v4150, %v4149
        %v4152 = vperm.slane %v3130, %v4062
        %v4153 = vsel %vm4064, %v4152, %v4151
        %v4154 = vperm.slane %v3133, %v4066
        %v4155 = vsel %vm4068, %v4154, %v4153
        %v4156 = vperm.slane %v3136, %v4070
        %v4157 = vsel %vm4072, %v4156, %v4155
        %v4158 = vperm.slane %v3139, %v4074
        %v4159 = vsel %vm4076, %v4158, %v4157
        %v4160 = vperm.slane %v3142, %v4078
        %v4161 = vsel %vm4080, %v4160, %v4159
        %v4162 = vperm.slane %v3145, %v4082
        %v4163 = vsel %vm4084, %v4162, %v4161
        %v4164 = vperm.slane %v3148, %v4086
        %v4165 = vsel %vm4088, %v4164, %v4163
        %v4166 = vperm.slane %v3151, %v4090
        %v4167 = vsel %vm4092, %v4166, %v4165
        %v4168 = vperm.slane %v3154, %v4094
        %v4169 = vsel %vm4096, %v4168, %v4167
        %v4170 = vperm.slane %v3157, %v4098
        %v4171 = vsel %vm4100, %v4170, %v4169
        %v4172 = vperm.slane %v3160, %v4102
        %v4173 = vsel %vm4104, %v4172, %v4171
        %v4174 = vperm.slane %v3163, %v4106
        %v4175 = vsel %vm4108, %v4174, %v4173
        %v4176 = vperm.slane %v3166, %v4110
        %v4177 = vsel %vm4112, %v4176, %v4175
        %v4178 = vperm.slane %v3169, %v4114
        %v4179 = vsel %vm4116, %v4178, %v4177
        %v4180 = vperm.slane %v3172, %v4056
        %v4181 = vperm.slane %v3175, %v4058
        %v4182 = vsel %vm4060, %v4181, %v4180
        %v4183 = vperm.slane %v3178, %v4062
        %v4184 = vsel %vm4064, %v4183, %v4182
        %v4185 = vperm.slane %v3181, %v4066
        %v4186 = vsel %vm4068, %v4185, %v4184
        %v4187 = vperm.slane %v3184, %v4070
        %v4188 = vsel %vm4072, %v4187, %v4186
        %v4189 = vperm.slane %v3187, %v4074
        %v4190 = vsel %vm4076, %v4189, %v4188
        %v4191 = vperm.slane %v3190, %v4078
        %v4192 = vsel %vm4080, %v4191, %v4190
        %v4193 = vperm.slane %v3193, %v4082
        %v4194 = vsel %vm4084, %v4193, %v4192
        %v4195 = vperm.slane %v3196, %v4086
        %v4196 = vsel %vm4088, %v4195, %v4194
        %v4197 = vperm.slane %v3199, %v4090
        %v4198 = vsel %vm4092, %v4197, %v4196
        %v4199 = vperm.slane %v3202, %v4094
        %v4200 = vsel %vm4096, %v4199, %v4198
        %v4201 = vperm.slane %v3205, %v4098
        %v4202 = vsel %vm4100, %v4201, %v4200
        %v4203 = vperm.slane %v3208, %v4102
        %v4204 = vsel %vm4104, %v4203, %v4202
        %v4205 = vperm.slane %v3211, %v4106
        %v4206 = vsel %vm4108, %v4205, %v4204
        %v4207 = vperm.slane %v3214, %v4110
        %v4208 = vsel %vm4112, %v4207, %v4206
        %v4209 = vperm.slane %v3217, %v4114
        %v4210 = vsel %vm4116, %v4209, %v4208
        %v4211 = vperm.slane %v3220, %v4056
        %v4212 = vperm.slane %v3223, %v4058
        %v4213 = vsel %vm4060, %v4212, %v4211
        %v4214 = vperm.slane %v3226, %v4062
        %v4215 = vsel %vm4064, %v4214, %v4213
        %v4216 = vperm.slane %v3229, %v4066
        %v4217 = vsel %vm4068, %v4216, %v4215
        %v4218 = vperm.slane %v3232, %v4070
        %v4219 = vsel %vm4072, %v4218, %v4217
        %v4220 = vperm.slane %v3235, %v4074
        %v4221 = vsel %vm4076, %v4220, %v4219
        %v4222 = vperm.slane %v3238, %v4078
        %v4223 = vsel %vm4080, %v4222, %v4221
        %v4224 = vperm.slane %v3241, %v4082
        %v4225 = vsel %vm4084, %v4224, %v4223
        %v4226 = vperm.slane %v3244, %v4086
        %v4227 = vsel %vm4088, %v4226, %v4225
        %v4228 = vperm.slane %v3247, %v4090
        %v4229 = vsel %vm4092, %v4228, %v4227
        %v4230 = vperm.slane %v3250, %v4094
        %v4231 = vsel %vm4096, %v4230, %v4229
        %v4232 = vperm.slane %v3253, %v4098
        %v4233 = vsel %vm4100, %v4232, %v4231
        %v4234 = vperm.slane %v3256, %v4102
        %v4235 = vsel %vm4104, %v4234, %v4233
        %v4236 = vperm.slane %v3259, %v4106
        %v4237 = vsel %vm4108, %v4236, %v4235
        %v4238 = vperm.slane %v3262, %v4110
        %v4239 = vsel %vm4112, %v4238, %v4237
        %v4240 = vperm.slane %v3265, %v4114
        %v4241 = vsel %vm4116, %v4240, %v4239
        %v4242 = vperm.slane %v3268, %v4056
        %v4243 = vperm.slane %v3271, %v4058
        %v4244 = vsel %vm4060, %v4243, %v4242
        %v4245 = vperm.slane %v3274, %v4062
        %v4246 = vsel %vm4064, %v4245, %v4244
        %v4247 = vperm.slane %v3277, %v4066
        %v4248 = vsel %vm4068, %v4247, %v4246
        %v4249 = vperm.slane %v3280, %v4070
        %v4250 = vsel %vm4072, %v4249, %v4248
        %v4251 = vperm.slane %v3283, %v4074
        %v4252 = vsel %vm4076, %v4251, %v4250
        %v4253 = vperm.slane %v3286, %v4078
        %v4254 = vsel %vm4080, %v4253, %v4252
        %v4255 = vperm.slane %v3289, %v4082
        %v4256 = vsel %vm4084, %v4255, %v4254
        %v4257 = vperm.slane %v3292, %v4086
        %v4258 = vsel %vm4088, %v4257, %v4256
        %v4259 = vperm.slane %v3295, %v4090
        %v4260 = vsel %vm4092, %v4259, %v4258
        %v4261 = vperm.slane %v3298, %v4094
        %v4262 = vsel %vm4096, %v4261, %v4260
        %v4263 = vperm.slane %v3301, %v4098
        %v4264 = vsel %vm4100, %v4263, %v4262
        %v4265 = vperm.slane %v3304, %v4102
        %v4266 = vsel %vm4104, %v4265, %v4264
        %v4267 = vperm.slane %v3307, %v4106
        %v4268 = vsel %vm4108, %v4267, %v4266
        %v4269 = vperm.slane %v3310, %v4110
        %v4270 = vsel %vm4112, %v4269, %v4268
        %v4271 = vperm.slane %v3313, %v4114
        %v4272 = vsel %vm4116, %v4271, %v4270
        %v4273 = vperm.slane %v3316, %v4056
        %v4274 = vperm.slane %v3319, %v4058
        %v4275 = vsel %vm4060, %v4274, %v4273
        %v4276 = vperm.slane %v3322, %v4062
        %v4277 = vsel %vm4064, %v4276, %v4275
        %v4278 = vperm.slane %v3325, %v4066
        %v4279 = vsel %vm4068, %v4278, %v4277
        %v4280 = vperm.slane %v3328, %v4070
        %v4281 = vsel %vm4072, %v4280, %v4279
        %v4282 = vperm.slane %v3331, %v4074
        %v4283 = vsel %vm4076, %v4282, %v4281
        %v4284 = vperm.slane %v3334, %v4078
        %v4285 = vsel %vm4080, %v4284, %v4283
        %v4286 = vperm.slane %v3337, %v4082
        %v4287 = vsel %vm4084, %v4286, %v4285
        %v4288 = vperm.slane %v3340, %v4086
        %v4289 = vsel %vm4088, %v4288, %v4287
        %v4290 = vperm.slane %v3343, %v4090
        %v4291 = vsel %vm4092, %v4290, %v4289
        %v4292 = vperm.slane %v3346, %v4094
        %v4293 = vsel %vm4096, %v4292, %v4291
        %v4294 = vperm.slane %v3349, %v4098
        %v4295 = vsel %vm4100, %v4294, %v4293
        %v4296 = vperm.slane %v3352, %v4102
        %v4297 = vsel %vm4104, %v4296, %v4295
        %v4298 = vperm.slane %v3355, %v4106
        %v4299 = vsel %vm4108, %v4298, %v4297
        %v4300 = vperm.slane %v3358, %v4110
        %v4301 = vsel %vm4112, %v4300, %v4299
        %v4302 = vperm.slane %v3361, %v4114
        %v4303 = vsel %vm4116, %v4302, %v4301
        %v4304 = vperm.slane %v3364, %v4056
        %v4305 = vperm.slane %v3367, %v4058
        %v4306 = vsel %vm4060, %v4305, %v4304
        %v4307 = vperm.slane %v3370, %v4062
        %v4308 = vsel %vm4064, %v4307, %v4306
        %v4309 = vperm.slane %v3373, %v4066
        %v4310 = vsel %vm4068, %v4309, %v4308
        %v4311 = vperm.slane %v3376, %v4070
        %v4312 = vsel %vm4072, %v4311, %v4310
        %v4313 = vperm.slane %v3379, %v4074
        %v4314 = vsel %vm4076, %v4313, %v4312
        %v4315 = vperm.slane %v3382, %v4078
        %v4316 = vsel %vm4080, %v4315, %v4314
        %v4317 = vperm.slane %v3385, %v4082
        %v4318 = vsel %vm4084, %v4317, %v4316
        %v4319 = vperm.slane %v3388, %v4086
        %v4320 = vsel %vm4088, %v4319, %v4318
        %v4321 = vperm.slane %v3391, %v4090
        %v4322 = vsel %vm4092, %v4321, %v4320
        %v4323 = vperm.slane %v3394, %v4094
        %v4324 = vsel %vm4096, %v4323, %v4322
        %v4325 = vperm.slane %v3397, %v4098
        %v4326 = vsel %vm4100, %v4325, %v4324
        %v4327 = vperm.slane %v3400, %v4102
        %v4328 = vsel %vm4104, %v4327, %v4326
        %v4329 = vperm.slane %v3403, %v4106
        %v4330 = vsel %vm4108, %v4329, %v4328
        %v4331 = vperm.slane %v3406, %v4110
        %v4332 = vsel %vm4112, %v4331, %v4330
        %v4333 = vperm.slane %v3409, %v4114
        %v4334 = vsel %vm4116, %v4333, %v4332
        %v4335 = vperm.slane %v3412, %v4056
        %v4336 = vperm.slane %v3415, %v4058
        %v4337 = vsel %vm4060, %v4336, %v4335
        %v4338 = vperm.slane %v3418, %v4062
        %v4339 = vsel %vm4064, %v4338, %v4337
        %v4340 = vperm.slane %v3421, %v4066
        %v4341 = vsel %vm4068, %v4340, %v4339
        %v4342 = vperm.slane %v3424, %v4070
        %v4343 = vsel %vm4072, %v4342, %v4341
        %v4344 = vperm.slane %v3427, %v4074
        %v4345 = vsel %vm4076, %v4344, %v4343
        %v4346 = vperm.slane %v3430, %v4078
        %v4347 = vsel %vm4080, %v4346, %v4345
        %v4348 = vperm.slane %v3433, %v4082
        %v4349 = vsel %vm4084, %v4348, %v4347
        %v4350 = vperm.slane %v3436, %v4086
        %v4351 = vsel %vm4088, %v4350, %v4349
        %v4352 = vperm.slane %v3439, %v4090
        %v4353 = vsel %vm4092, %v4352, %v4351
        %v4354 = vperm.slane %v3442, %v4094
        %v4355 = vsel %vm4096, %v4354, %v4353
        %v4356 = vperm.slane %v3445, %v4098
        %v4357 = vsel %vm4100, %v4356, %v4355
        %v4358 = vperm.slane %v3448, %v4102
        %v4359 = vsel %vm4104, %v4358, %v4357
        %v4360 = vperm.slane %v3451, %v4106
        %v4361 = vsel %vm4108, %v4360, %v4359
        %v4362 = vperm.slane %v3454, %v4110
        %v4363 = vsel %vm4112, %v4362, %v4361
        %v4364 = vperm.slane %v3457, %v4114
        %v4365 = vsel %vm4116, %v4364, %v4363
        %v4366 = vperm.slane %v3460, %v4056
        %v4367 = vperm.slane %v3463, %v4058
        %v4368 = vsel %vm4060, %v4367, %v4366
        %v4369 = vperm.slane %v3466, %v4062
        %v4370 = vsel %vm4064, %v4369, %v4368
        %v4371 = vperm.slane %v3469, %v4066
        %v4372 = vsel %vm4068, %v4371, %v4370
        %v4373 = vperm.slane %v3472, %v4070
        %v4374 = vsel %vm4072, %v4373, %v4372
        %v4375 = vperm.slane %v3475, %v4074
        %v4376 = vsel %vm4076, %v4375, %v4374
        %v4377 = vperm.slane %v3478, %v4078
        %v4378 = vsel %vm4080, %v4377, %v4376
        %v4379 = vperm.slane %v3481, %v4082
        %v4380 = vsel %vm4084, %v4379, %v4378
        %v4381 = vperm.slane %v3484, %v4086
        %v4382 = vsel %vm4088, %v4381, %v4380
        %v4383 = vperm.slane %v3487, %v4090
        %v4384 = vsel %vm4092, %v4383, %v4382
        %v4385 = vperm.slane %v3490, %v4094
        %v4386 = vsel %vm4096, %v4385, %v4384
        %v4387 = vperm.slane %v3493, %v4098
        %v4388 = vsel %vm4100, %v4387, %v4386
        %v4389 = vperm.slane %v3496, %v4102
        %v4390 = vsel %vm4104, %v4389, %v4388
        %v4391 = vperm.slane %v3499, %v4106
        %v4392 = vsel %vm4108, %v4391, %v4390
        %v4393 = vperm.slane %v3502, %v4110
        %v4394 = vsel %vm4112, %v4393, %v4392
        %v4395 = vperm.slane %v3505, %v4114
        %v4396 = vsel %vm4116, %v4395, %v4394
        %v4397 = vperm.slane %v3508, %v4056
        %v4398 = vperm.slane %v3511, %v4058
        %v4399 = vsel %vm4060, %v4398, %v4397
        %v4400 = vperm.slane %v3514, %v4062
        %v4401 = vsel %vm4064, %v4400, %v4399
        %v4402 = vperm.slane %v3517, %v4066
        %v4403 = vsel %vm4068, %v4402, %v4401
        %v4404 = vperm.slane %v3520, %v4070
        %v4405 = vsel %vm4072, %v4404, %v4403
        %v4406 = vperm.slane %v3523, %v4074
        %v4407 = vsel %vm4076, %v4406, %v4405
        %v4408 = vperm.slane %v3526, %v4078
        %v4409 = vsel %vm4080, %v4408, %v4407
        %v4410 = vperm.slane %v3529, %v4082
        %v4411 = vsel %vm4084, %v4410, %v4409
        %v4412 = vperm.slane %v3532, %v4086
        %v4413 = vsel %vm4088, %v4412, %v4411
        %v4414 = vperm.slane %v3535, %v4090
        %v4415 = vsel %vm4092, %v4414, %v4413
        %v4416 = vperm.slane %v3538, %v4094
        %v4417 = vsel %vm4096, %v4416, %v4415
        %v4418 = vperm.slane %v3541, %v4098
        %v4419 = vsel %vm4100, %v4418, %v4417
        %v4420 = vperm.slane %v3544, %v4102
        %v4421 = vsel %vm4104, %v4420, %v4419
        %v4422 = vperm.slane %v3547, %v4106
        %v4423 = vsel %vm4108, %v4422, %v4421
        %v4424 = vperm.slane %v3550, %v4110
        %v4425 = vsel %vm4112, %v4424, %v4423
        %v4426 = vperm.slane %v3553, %v4114
        %v4427 = vsel %vm4116, %v4426, %v4425
        %v4428 = vperm.slane %v3556, %v4056
        %v4429 = vperm.slane %v3559, %v4058
        %v4430 = vsel %vm4060, %v4429, %v4428
        %v4431 = vperm.slane %v3562, %v4062
        %v4432 = vsel %vm4064, %v4431, %v4430
        %v4433 = vperm.slane %v3565, %v4066
        %v4434 = vsel %vm4068, %v4433, %v4432
        %v4435 = vperm.slane %v3568, %v4070
        %v4436 = vsel %vm4072, %v4435, %v4434
        %v4437 = vperm.slane %v3571, %v4074
        %v4438 = vsel %vm4076, %v4437, %v4436
        %v4439 = vperm.slane %v3574, %v4078
        %v4440 = vsel %vm4080, %v4439, %v4438
        %v4441 = vperm.slane %v3577, %v4082
        %v4442 = vsel %vm4084, %v4441, %v4440
        %v4443 = vperm.slane %v3580, %v4086
        %v4444 = vsel %vm4088, %v4443, %v4442
        %v4445 = vperm.slane %v3583, %v4090
        %v4446 = vsel %vm4092, %v4445, %v4444
        %v4447 = vperm.slane %v3586, %v4094
        %v4448 = vsel %vm4096, %v4447, %v4446
        %v4449 = vperm.slane %v3589, %v4098
        %v4450 = vsel %vm4100, %v4449, %v4448
        %v4451 = vperm.slane %v3592, %v4102
        %v4452 = vsel %vm4104, %v4451, %v4450
        %v4453 = vperm.slane %v3595, %v4106
        %v4454 = vsel %vm4108, %v4453, %v4452
        %v4455 = vperm.slane %v3598, %v4110
        %v4456 = vsel %vm4112, %v4455, %v4454
        %v4457 = vperm.slane %v3601, %v4114
        %v4458 = vsel %vm4116, %v4457, %v4456
        %v4459 = vperm.slane %v3604, %v4056
        %v4460 = vperm.slane %v3607, %v4058
        %v4461 = vsel %vm4060, %v4460, %v4459
        %v4462 = vperm.slane %v3610, %v4062
        %v4463 = vsel %vm4064, %v4462, %v4461
        %v4464 = vperm.slane %v3613, %v4066
        %v4465 = vsel %vm4068, %v4464, %v4463
        %v4466 = vperm.slane %v3616, %v4070
        %v4467 = vsel %vm4072, %v4466, %v4465
        %v4468 = vperm.slane %v3619, %v4074
        %v4469 = vsel %vm4076, %v4468, %v4467
        %v4470 = vperm.slane %v3622, %v4078
        %v4471 = vsel %vm4080, %v4470, %v4469
        %v4472 = vperm.slane %v3625, %v4082
        %v4473 = vsel %vm4084, %v4472, %v4471
        %v4474 = vperm.slane %v3628, %v4086
        %v4475 = vsel %vm4088, %v4474, %v4473
        %v4476 = vperm.slane %v3631, %v4090
        %v4477 = vsel %vm4092, %v4476, %v4475
        %v4478 = vperm.slane %v3634, %v4094
        %v4479 = vsel %vm4096, %v4478, %v4477
        %v4480 = vperm.slane %v3637, %v4098
        %v4481 = vsel %vm4100, %v4480, %v4479
        %v4482 = vperm.slane %v3640, %v4102
        %v4483 = vsel %vm4104, %v4482, %v4481
        %v4484 = vperm.slane %v3643, %v4106
        %v4485 = vsel %vm4108, %v4484, %v4483
        %v4486 = vperm.slane %v3646, %v4110
        %v4487 = vsel %vm4112, %v4486, %v4485
        %v4488 = vperm.slane %v3649, %v4114
        %v4489 = vsel %vm4116, %v4488, %v4487
        %v4490 = vperm.slane %v3652, %v4056
        %v4491 = vperm.slane %v3655, %v4058
        %v4492 = vsel %vm4060, %v4491, %v4490
        %v4493 = vperm.slane %v3658, %v4062
        %v4494 = vsel %vm4064, %v4493, %v4492
        %v4495 = vperm.slane %v3661, %v4066
        %v4496 = vsel %vm4068, %v4495, %v4494
        %v4497 = vperm.slane %v3664, %v4070
        %v4498 = vsel %vm4072, %v4497, %v4496
        %v4499 = vperm.slane %v3667, %v4074
        %v4500 = vsel %vm4076, %v4499, %v4498
        %v4501 = vperm.slane %v3670, %v4078
        %v4502 = vsel %vm4080, %v4501, %v4500
        %v4503 = vperm.slane %v3673, %v4082
        %v4504 = vsel %vm4084, %v4503, %v4502
        %v4505 = vperm.slane %v3676, %v4086
        %v4506 = vsel %vm4088, %v4505, %v4504
        %v4507 = vperm.slane %v3679, %v4090
        %v4508 = vsel %vm4092, %v4507, %v4506
        %v4509 = vperm.slane %v3682, %v4094
        %v4510 = vsel %vm4096, %v4509, %v4508
        %v4511 = vperm.slane %v3685, %v4098
        %v4512 = vsel %vm4100, %v4511, %v4510
        %v4513 = vperm.slane %v3688, %v4102
        %v4514 = vsel %vm4104, %v4513, %v4512
        %v4515 = vperm.slane %v3691, %v4106
        %v4516 = vsel %vm4108, %v4515, %v4514
        %v4517 = vperm.slane %v3694, %v4110
        %v4518 = vsel %vm4112, %v4517, %v4516
        %v4519 = vperm.slane %v3697, %v4114
        %v4520 = vsel %vm4116, %v4519, %v4518
        %v4521 = vperm.slane %v3700, %v4056
        %v4522 = vperm.slane %v3703, %v4058
        %v4523 = vsel %vm4060, %v4522, %v4521
        %v4524 = vperm.slane %v3706, %v4062
        %v4525 = vsel %vm4064, %v4524, %v4523
        %v4526 = vperm.slane %v3709, %v4066
        %v4527 = vsel %vm4068, %v4526, %v4525
        %v4528 = vperm.slane %v3712, %v4070
        %v4529 = vsel %vm4072, %v4528, %v4527
        %v4530 = vperm.slane %v3715, %v4074
        %v4531 = vsel %vm4076, %v4530, %v4529
        %v4532 = vperm.slane %v3718, %v4078
        %v4533 = vsel %vm4080, %v4532, %v4531
        %v4534 = vperm.slane %v3721, %v4082
        %v4535 = vsel %vm4084, %v4534, %v4533
        %v4536 = vperm.slane %v3724, %v4086
        %v4537 = vsel %vm4088, %v4536, %v4535
        %v4538 = vperm.slane %v3727, %v4090
        %v4539 = vsel %vm4092, %v4538, %v4537
        %v4540 = vperm.slane %v3730, %v4094
        %v4541 = vsel %vm4096, %v4540, %v4539
        %v4542 = vperm.slane %v3733, %v4098
        %v4543 = vsel %vm4100, %v4542, %v4541
        %v4544 = vperm.slane %v3736, %v4102
        %v4545 = vsel %vm4104, %v4544, %v4543
        %v4546 = vperm.slane %v3739, %v4106
        %v4547 = vsel %vm4108, %v4546, %v4545
        %v4548 = vperm.slane %v3742, %v4110
        %v4549 = vsel %vm4112, %v4548, %v4547
        %v4550 = vperm.slane %v3745, %v4114
        %v4551 = vsel %vm4116, %v4550, %v4549
        %v4552 = vperm.slane %v3748, %v4056
        %v4553 = vperm.slane %v3751, %v4058
        %v4554 = vsel %vm4060, %v4553, %v4552
        %v4555 = vperm.slane %v3754, %v4062
        %v4556 = vsel %vm4064, %v4555, %v4554
        %v4557 = vperm.slane %v3757, %v4066
        %v4558 = vsel %vm4068, %v4557, %v4556
        %v4559 = vperm.slane %v3760, %v4070
        %v4560 = vsel %vm4072, %v4559, %v4558
        %v4561 = vperm.slane %v3763, %v4074
        %v4562 = vsel %vm4076, %v4561, %v4560
        %v4563 = vperm.slane %v3766, %v4078
        %v4564 = vsel %vm4080, %v4563, %v4562
        %v4565 = vperm.slane %v3769, %v4082
        %v4566 = vsel %vm4084, %v4565, %v4564
        %v4567 = vperm.slane %v3772, %v4086
        %v4568 = vsel %vm4088, %v4567, %v4566
        %v4569 = vperm.slane %v3775, %v4090
        %v4570 = vsel %vm4092, %v4569, %v4568
        %v4571 = vperm.slane %v3778, %v4094
        %v4572 = vsel %vm4096, %v4571, %v4570
        %v4573 = vperm.slane %v3781, %v4098
        %v4574 = vsel %vm4100, %v4573, %v4572
        %v4575 = vperm.slane %v3784, %v4102
        %v4576 = vsel %vm4104, %v4575, %v4574
        %v4577 = vperm.slane %v3787, %v4106
        %v4578 = vsel %vm4108, %v4577, %v4576
        %v4579 = vperm.slane %v3790, %v4110
        %v4580 = vsel %vm4112, %v4579, %v4578
        %v4581 = vperm.slane %v3793, %v4114
        %v4582 = vsel %vm4116, %v4581, %v4580
        %v4583 = vsel %vm659, %v4148, %v4117
        %v4584 = vsel %vm663, %v4179, %v4583
        %v4585 = vsel %vm667, %v4210, %v4584
        %vm4586 = vcmask 1044484
        %v4587 = vsel %vm4586, %v4241, %v4585
        %vm4588 = vcmask 1045509
        %v4589 = vsel %vm4588, %v4272, %v4587
        %vm4590 = vcmask 1046534
        %v4591 = vsel %vm4590, %v4303, %v4589
        %vm4592 = vcmask 1047559
        %v4593 = vsel %vm4592, %v4334, %v4591
        %v4594 = vsel %vm659, %v4396, %v4365
        %v4595 = vsel %vm663, %v4427, %v4594
        %v4596 = vsel %vm667, %v4458, %v4595
        %v4597 = vsel %vm4586, %v4489, %v4596
        %v4598 = vsel %vm4588, %v4520, %v4597
        %v4599 = vsel %vm4590, %v4551, %v4598
        %v4600 = vsel %vm4592, %v4582, %v4599
        %v4603 = vsel %vm3798, %v4593, -10000.0
        %v4604 = vsel %vm3798, %v4600, -10000.0
        %4605 = vst [vmem:[%s414] sm:$0xff] %v4603
        %4606 = vst [vmem:[%s414 + $0x8] sm:$0xff] %v4604
        %v4607 = vxor.u32 %v4603, 2147483648
        %v4608 = vxor.u32 %v4604, 2147483648
        %v4609 = vmul.f32 %v4607, 1.442695
        %v4610 = vpow.pop %v4609
        %v4611 = vmul.f32 %v4608, 1.442695
        %v4612 = vpow.pop %v4611
        %v4613 = vadd.f32 %v4610, 1.0
        %v4614 = vadd.f32 %v4612, 1.0
        %v4615 = vrcp.pop %v4613
        %v4616 = vmul.f32 %v4613, %v4615
        %v4617 = vsub.f32 1.0, %v4616
        %v4618 = vmul.f32 %v4615, %v4617
        %v4619 = vadd.f32 %v4615, %v4618
        %vm4620 = vweird.f32 %v4613
        %vm4621 = vweird.f32 %v4615
        %vm4622 = vmor %vm4620, %vm4621
        %v4623 = vsel %vm4622, %v4615, %v4619
        %v4624 = vand.u32 2147483647, %v4613
        %vm4625 = vcmp.eq.f32.partialorder %v4624, 8.507059e+37
        %v4626 = vand.u32 %v4613, 2147483648
        %v4627 = vor.u32 1.1754944e-38, %v4626
        %v4628 = vsel %vm4625, %v4627, %v4623
        %v4629 = vmul.f32 1.0, %v4628
        %v4630 = vrcp.pop %v4614
        %v4631 = vmul.f32 %v4614, %v4630
        %v4632 = vsub.f32 1.0, %v4631
        %v4633 = vmul.f32 %v4630, %v4632
        %v4634 = vadd.f32 %v4630, %v4633
        %vm4635 = vweird.f32 %v4614
        %vm4636 = vweird.f32 %v4630
        %vm4637 = vmor %vm4635, %vm4636
        %v4638 = vsel %vm4637, %v4630, %v4634
        %v4639 = vand.u32 2147483647, %v4614
        %vm4640 = vcmp.eq.f32.partialorder %v4639, 8.507059e+37
        %v4641 = vand.u32 %v4614, 2147483648
        %v4642 = vor.u32 1.1754944e-38, %v4641
        %v4643 = vsel %vm4640, %v4642, %v4638
        %v4644 = vmul.f32 1.0, %v4643
        %v4645 = vpack.c.bf16 %v4629, %v4629
        %v4646 = vpack.c.bf16 %v4644, %v4644
        %4647 = vst [vmem:[%s421] sm:$0xf] %v4645
        %4648 = vst [vmem:[%s421 + $0x4] sm:$0xf] %v4646
        %s4649 = sand.u32 %s247, 1
        %s4650 = scalar_lea.sflag [#allocation4], %s4649
        %s4651 = sand.u32 %s247, 1
        %s4652 = smul.addr %s4651, 16
        %s4653 = scalar_lea.vmem [#allocation3], %s4652
        %s4654 = sand.u32 %s277, 1
        %s4655 = scalar_lea.sflag [#allocation6], %s4654
        %s4656 = sand.u32 %s277, 1
        %s4657 = smul.addr %s4656, 8
        %s4658 = scalar_lea.vmem [#allocation5], %s4657
        // Predicated region
        $region57: #{tpu_custom_call.1} parent=51 // pred_check
          %p4659 = pneg %p257
        $region58: #{tpu_custom_call.1} parent=51 // pred_check_branch
          %4661 = sbr.rel (%p4659) target = $region60
        $region59: #{tpu_custom_call.1} parent=51 // pred_region
          %s4662 = smul.u32 2, %s34
          %4664 = vsyncadd %s4650, 0
          %s4665 = smul.addr %s4662, 2
          %s4666 = sadd.s32 %s33, %s4665
          %s4667 = smul.addr %s32, 8
          %s4668 = sadd.s32 %s4666, %s4667
          %s4669 = smul.addr %s4668, 8
          %s4670 = scalar_lea.hbm %s8, %s4669
          %s4671 = sshll.u32 %s4653, 4
          %s4672 = int_to_ptr.vmem [resolvable:$true] %s4671
          %s4673 = sshll.u32 %s4670, 4
          %s4674 = int_to_ptr.hbm [resolvable:$true] %s4673
          %4679 = dma.vmem_to_hbm [thread:$0]  %s4672, 256, %s4674, %s4650, 128, 256, 8
        $region60: #{tpu_custom_call.1} parent=51 // pred_fallthru
          _
        // Predicated region
        $region61: #{tpu_custom_call.1} parent=51 // pred_check
          %p4680 = pneg %p287
        $region62: #{tpu_custom_call.1} parent=51 // pred_check_branch
          %4682 = sbr.rel (%p4680) target = $region64
        $region63: #{tpu_custom_call.1} parent=51 // pred_region
          %s4683 = smul.u32 2, %s34
          %4685 = vsyncadd %s4655, 0
          %s4686 = smul.addr %s4683, 2
          %s4687 = sadd.s32 %s33, %s4686
          %s4688 = smul.addr %s32, 8
          %s4689 = sadd.s32 %s4687, %s4688
          %s4690 = smul.addr %s4689, 4
          %s4691 = scalar_lea.hbm %s9, %s4690
          %s4692 = sshll.u32 %s4658, 4
          %s4693 = int_to_ptr.vmem [resolvable:$true] %s4692
          %s4694 = sshll.u32 %s4691, 4
          %s4695 = int_to_ptr.hbm [resolvable:$true] %s4694
          %4700 = dma.vmem_to_hbm [thread:$0]  %s4693, 128, %s4695, %s4655, 64, 128, 4
        $region64: #{tpu_custom_call.1} parent=51 // pred_fallthru
          _
      $region52: #{tpu_custom_call.1} parent=5 // pred_fallthru
        _
      %p4701 = scmp.le.s32.totalorder 2, %s22
      // Predicated region
      $region65: #{tpu_custom_call.1} parent=5 // pred_check
        %p4702 = pneg %p4701
      $region66: #{tpu_custom_call.1} parent=5 // pred_check_branch
        %4704 = sbr.rel (%p4702) target = $region68
      $region67: #{tpu_custom_call.1} parent=5 // pred_region
        %s4705 = ssub.s32 %s22, 2
        // Predicated region
        $region69: #{tpu_custom_call.1} parent=67 // pred_check
          %p4706 = pneg %p263
        $region70: #{tpu_custom_call.1} parent=67 // pred_check_branch
          %4708 = sbr.rel (%p4706) target = $region72
        $region71: #{tpu_custom_call.1} parent=67 // pred_region
          %s4709 = sand.u32 %s248, 1
          %s4710 = scalar_lea.sflag [#allocation4], %s4709
          %s4711 = sand.u32 %s248, 1
          %s4712 = smul.addr %s4711, 16
          %s4713 = scalar_lea.vmem [#allocation3], %s4712
          %4715 = dma.done %s4710, 256
        $region72: #{tpu_custom_call.1} parent=67 // pred_fallthru
          _
        // Predicated region
        $region73: #{tpu_custom_call.1} parent=67 // pred_check
          %p4716 = pneg %p293
        $region74: #{tpu_custom_call.1} parent=67 // pred_check_branch
          %4718 = sbr.rel (%p4716) target = $region76
        $region75: #{tpu_custom_call.1} parent=67 // pred_region
          %s4719 = sand.u32 %s278, 1
          %s4720 = scalar_lea.sflag [#allocation6], %s4719
          %s4721 = sand.u32 %s278, 1
          %s4722 = smul.addr %s4721, 8
          %s4723 = scalar_lea.vmem [#allocation5], %s4722
          %4725 = dma.done %s4720, 128
        $region76: #{tpu_custom_call.1} parent=67 // pred_fallthru
          _
      $region68: #{tpu_custom_call.1} parent=5 // pred_fallthru
        _
    $region6: #{tpu_custom_call.1} parent=1 // loop_footer
      %s26 = sadd.s32 1, %s22
    $region7: #{tpu_custom_call.1} parent=1 // loop_footer_branch
      %21 = sbr.rel target = $region3
    $region8: #{tpu_custom_call.1} parent=1 // loop_exit
      _
    %4726 = vsyncpa [#allocation4], 1
    %s4727 = scalar_lea.sflag [#allocation4], 1
    %4728 = vsyncpa %s4727, 1
    %4729 = vsyncpa [#allocation6], 1
    %s4730 = scalar_lea.sflag [#allocation6], 1
    %4731 = vsyncpa %s4730, 1

</llo_original>
